<compile_context>
chip_gen: v7x
topology: tpu7x:2x2x1
jax: 0.10.0
libtpu: 0.0.40
codegen_flags: <defaults>
</compile_context>

<pallas_src>
import numpy as np
import jax
import jax.numpy as jnp
from jax.experimental import pallas as pl
from jax.experimental.pallas import tpu as pltpu


_NEG = -1.0e30  # additive mask fill; activations/border constants are >= 0 after ReLU


# ----------------------------------------------------------------------------
# Pallas kernel 1: pairwise squared distances (ball-query hot path)
# ----------------------------------------------------------------------------
def _pairwise_dist2_kernel(a_ref, b_ref, b2_ref, o_ref):
    # a: (B, M, D) queries, b: (B, Npad, D) candidates, b2: (B, 1, Npad) = |b|^2.
    a = a_ref[...]
    b = b_ref[...]
    ab = jax.lax.dot_general(a, b, (((2,), (2,)), ((0,), (0,))),
                             preferred_element_type=jnp.float32)        # (B, M, Npad)
    sqa = jnp.sum(a * a, axis=-1, keepdims=True)                        # lane reduce, (B, M, 1)
    o_ref[...] = sqa + b2_ref[...] - 2.0 * ab


def pairwise_dist2(p1, p2):
    """p1: (B, M, D), p2: (B, N, D) -> (B, M, N) squared L2 distances.

    One program handles the whole batch (batched matmul); the candidate axis is padded to a
    multiple of 128 so the output store is lane-dense (padding is sliced away in the wrapper).
    """
    B, M, D = p1.shape
    _, N, _ = p2.shape
    n_pad = ((N + 127) // 128) * 128
    p2p = p2 if n_pad == N else jnp.pad(p2, ((0, 0), (0, n_pad - N), (0, 0)))
    # |b|^2 precomputed in glue: computing it in-kernel would need a sublane->lane relayout.
    sq2 = jnp.sum(p2p * p2p, axis=-1)[:, None, :]                       # (B, 1, n_pad)
    d2 = pl.pallas_call(
        _pairwise_dist2_kernel,
        out_shape=jax.ShapeDtypeStruct((B, M, n_pad), jnp.float32),
    )(p1, p2p, sq2)
    return d2[:, :, :N]


# ----------------------------------------------------------------------------
# Pallas kernel 2: fused (1x1 conv (+BN) + ReLU) x L  ->  AdaptiveMaxPool2d((out_h, 1))
# ----------------------------------------------------------------------------
def _make_fused_conv_pool_kernel(n_layers):
    L = n_layers

    def kernel(x_ref, *refs):
        w_refs = [refs[2 * i] for i in range(L)]
        b_refs = [refs[2 * i + 1] for i in range(L)]
        rep_ref = refs[2 * L]          # (C, out_h*C) replication matrix
        negmask_ref = refs[2 * L + 1]  # (P, out_h*C) additive bucket-membership mask
        border_ref = refs[2 * L + 2]   # (1, out_h*C) padded-border constants per bucket
        o_ref = refs[2 * L + 3]        # (GB, out_h*C)  (middle dim squeezed by BlockSpec)

        GB, P, K, Cin = x_ref.shape
        # Interior pixels only: 1x1 convs never mix spatial positions, so the whole interior
        # is one flattened matmul per layer.  No physical zero padding is materialised.
        y = x_ref[...].reshape(GB * P * K, Cin)
        for i in range(L):
            y = jnp.maximum(
                jax.lax.dot_general(y, w_refs[i][...], (((1,), (0,)), ((), ())),
                                    preferred_element_type=jnp.float32) + b_refs[i][...],
                0.0)                                                    # conv(+BN) + ReLU
        C = y.shape[1]

        # AdaptiveMaxPool2d((out_h, 1)), interior contribution:
        #   max over the K (width) axis, then a bucketed max over P using an additive
        #   membership mask.  The replication matmul lays the result out lane-dense as
        #   (GB, out_h*C) so each program does GB wide stores instead of GB*out_h masked ones.
        row_max = jnp.max(y.reshape(GB, P, K, C), axis=2)               # (GB, P, C)
        tiled = jax.lax.dot_general(row_max.reshape(GB * P, C), rep_ref[...],
                                    (((1,), (0,)), ((), ())),
                                    preferred_element_type=jnp.float32)  # (GB*P, out_h*C)
        z = tiled.reshape(GB, P, tiled.shape[1]) + negmask_ref[...][None]
        pooled = jnp.max(z, axis=1)                                      # (GB, out_h*C)
        # Padded-border pixels are per-channel constants after 1x1 convs; their per-bucket
        # contribution is precomputed in the wrapper -> one elementwise max.
        o_ref[...] = jnp.maximum(pooled, border_ref[...])

    return kernel


def make_pool_constants(P, out_h, layers):
    """Precompute all data-independent pieces of the fused conv+pool kernel.

    Returns:
      rep:         (C, out_h*C)  block-diagonal tiling of eye(C) (lane-dense replication).
      negmask:     (P, out_h*C)  additive pool-bucket membership mask (0 / -1e30).
      border_flat: (1, out_h*C)  per-bucket max over padded-border constants.

    The frame padded before layer j ends, after layers j..L, as a constant per-channel vector
    c_j; in the final (P+2L, K+2L) grid it sits at distance L-j from the edge.  Every pooling
    bucket of AdaptiveMaxPool2d((out_h, 1)) spans the full width, so the set of constants it
    sees depends only on the bucket's row range (independent of K).
    """
    L = len(layers)
    C = int(layers[-1][0].shape[1])
    Hf = P + 2 * L
    # constant value of the frame at distance d from the final border (padded before layer L-d)
    consts = []
    for d in range(L):
        j0 = L - d
        v = jnp.zeros((1, int(layers[j0 - 1][0].shape[0])), jnp.float32)
        for i in range(j0 - 1, L):
            w, b = layers[i]
            v = jnp.maximum(v @ w + b, 0.0)
        consts.append(v[0])                                             # (C,)

    memb = np.zeros((out_h, P), np.float32)
    border_rows = []
    for j in range(out_h):
        h0 = (j * Hf) // out_h                                          # PyTorch adaptive-pool
        h1 = ((j + 1) * Hf + out_h - 1) // out_h                        # bucket boundaries
        dmax = 0
        for r in range(h0, h1):
            dr = min(r, Hf - 1 - r)
            dmax = max(dmax, min(dr, L - 1))                            # deepest frame visible
            if dr >= L:                                                 # interior row in bucket
                memb[j, r - L] = 1.0
        bmax = consts[0]                                                # outermost frame always
        for d in range(1, dmax + 1):                                    # visible (full width)
            bmax = jnp.maximum(bmax, consts[d])
        border_rows.append(bmax)
    border_flat = jnp.stack(border_rows, axis=0).reshape(1, out_h * C)

    big = np.repeat(memb.T, C, axis=1)                                  # (P, out_h*C)
    negmask = jnp.asarray(np.where(big > 0.5, 0.0, _NEG).astype(np.float32))
    rep = jnp.asarray(np.tile(np.eye(C, dtype=np.float32), (1, out_h)))
    return rep, negmask, border_flat


def fused_conv_pool(stacked, layers, out_h, rep, negmask, border_flat):
    """stacked: (G, P, K, Cin) stacked (radius x batch) slabs.
    layers: list of (w (Cin_i, Cout_i), b (1, Cout_i)) with BN folded.
    Returns (G, out_h, Cout_last)."""
    G, P, K, Cin = stacked.shape
    L = len(layers)
    C = int(layers[-1][0].shape[1])
    F = out_h * C
    # Batch several slabs per grid step (amortise per-step overhead + weight refetch) but keep
    # the grid a multiple of 2 TensorCores on v7x when possible instead of a single program.
    n_prog = 2 if (G % 2 == 0 and G >= 2) else 1
    gb = G // n_prog

    in_specs = [pl.BlockSpec((gb, P, K, Cin), lambda g: (g, 0, 0, 0))]
    args = [stacked]
    for (w, b) in layers:                                               # replicated weights
        ci, co = int(w.shape[0]), int(w.shape[1])
        in_specs.append(pl.BlockSpec((ci, co), lambda g: (0, 0)))
        in_specs.append(pl.BlockSpec((1, co), lambda g: (0, 0)))
        args += [w, b]
    in_specs += [
        pl.BlockSpec((C, F), lambda g: (0, 0)),
        pl.BlockSpec((P, F), lambda g: (0, 0)),
        pl.BlockSpec((1, F), lambda g: (0, 0)),
    ]
    args += [rep, negmask, border_flat]

    out = pl.pallas_call(
        _make_fused_conv_pool_kernel(L),
        out_shape=jax.ShapeDtypeStruct((G, 1, F), jnp.float32),
        grid=(n_prog,),
        in_specs=in_specs,
        # Middle singleton dim is squeezed so the kernel stores a lane-dense (gb, F) tile
        # while the last-two block dims stay equal to the full array dims.
        out_specs=pl.BlockSpec((gb, None, F), lambda g: (g, 0, 0)),
        compiler_params=pltpu.CompilerParams(dimension_semantics=("parallel",)),
    )(*args)
    return out.reshape(G, out_h, C)


# ----------------------------------------------------------------------------
# Pallas kernel 3: final AdaptiveAvgPool2d((None, mlp_feature)) as a flat matmul
# ----------------------------------------------------------------------------
def _matmul_kernel(x_ref, w_ref, o_ref):
    o_ref[...] = jax.lax.dot_general(x_ref[...], w_ref[...],
                                     (((1,), (0,)), ((), ())),
                                     preferred_element_type=jnp.float32)


def adaptive_avg_pool_lastdim(x, pool_mat):
    """x: (B, M, F), pool_mat: (F, out_f) -> (B, M, out_f) in one single-program matmul.
    (At the sizes here this is negligible; larger configs should tile B*M and fold pool_mat
    into the preceding feature concat to keep the output lane-dense.)"""
    B, M, F = x.shape
    out_f = pool_mat.shape[1]
    y = pl.pallas_call(
        _matmul_kernel,
        out_shape=jax.ShapeDtypeStruct((B * M, out_f), jnp.float32),
    )(x.reshape(B * M, F), pool_mat)
    return y.reshape(B, M, out_f)


# ----------------------------------------------------------------------------
# pytorch3d-equivalent helpers (plain-JAX glue around the Pallas distance kernel)
# ----------------------------------------------------------------------------
def sample_farthest_points(points, K):
    """points: (B, N, 3) -> (sampled (B, K, 3), idx (B, K)); start index 0."""
    def one(pts):
        N = pts.shape[0]

        def body(i, state):
            min_d, idxs, last = state
            d = jnp.sum((pts - pts[last]) ** 2, axis=-1)
            min_d = jnp.minimum(min_d, d)
            idxs = idxs.at[i].set(last)
            nxt = jnp.argmax(min_d).astype(jnp.int32)
            return (min_d, idxs, nxt)

        min_d = jnp.full((N,), jnp.inf, dtype=jnp.float32)
        idxs = jnp.zeros((K,), dtype=jnp.int32)
        _, idxs, _ = jax.lax.fori_loop(0, K, body, (min_d, idxs, jnp.int32(0)))
        return pts[idxs], idxs

    return jax.vmap(one)(points)


def gather_points(points, idx):
    """points: (B, N, D), idx: (B, ...) int -> (B, ..., D)  (masked_gather, no -1 entries)."""
    return jax.vmap(lambda p, i: p[i])(points, idx)


def ball_query_nn(p1, p2, K, radius):
    """pytorch3d.ball_query(..., return_nn=True): first K points of p2 within `radius` of p1.
    p1: (B, M, D), p2: (B, N, D) -> nn: (B, M, K, D), zero-filled where < K neighbours."""
    B, M, D = p1.shape
    N = p2.shape[1]
    dist2 = pairwise_dist2(p1, p2)                                      # Pallas hot path
    mask = dist2 < radius * radius                                      # strict, as pytorch3d
    idx_n = jnp.arange(N, dtype=jnp.int32)
    key = jnp.where(mask, idx_n[None, None, :], N + idx_n[None, None, :])
    order = jnp.argsort(key, axis=-1)[:, :, :K].astype(jnp.int32)       # first-K-by-index
    count = jnp.sum(mask, axis=-1, keepdims=True)
    valid = jnp.arange(K, dtype=jnp.int32)[None, None, :] < count
    gidx = jnp.where(valid, order, 0)
    nn = gather_points(p2, gidx)                                        # (B, M, K, D)
    return jnp.where(valid[..., None], nn, 0.0)


# ----------------------------------------------------------------------------
# PointNet block / PointFeature_Trs forward
# ----------------------------------------------------------------------------
def pointnet_forward(pointcloud, cfg, layers):
    """One PointNet block.  pointcloud: (B, N, 3 + D_in)."""
    position = pointcloud[:, :, :3]
    features = pointcloud[:, :, -cfg["feat_in_dim"]:]

    P = cfg["num_points"]
    sample_position, idx = sample_farthest_points(position, P)
    sample_features = gather_points(features, idx)

    # NOTE: ball query is done in feature space (sample_features vs features), matching the
    # provided PyTorch source exactly.
    groups = [ball_query_nn(sample_features, features, K=ns, radius=r)   # (B, P, K, D) each
              for r, ns in zip(cfg["radius"], cfg["n_sample"])]

    # Pool constants are independent of the group width K, so one set per block.
    rep, negmask, border_flat = make_pool_constants(P, P, layers)

    if len(set(cfg["n_sample"])) == 1:
        # The single ConvBlk is shared across all radius levels (as in the PyTorch module):
        # stack them into ONE fused pallas_call with a grid axis over (radius x batch).
        R = len(groups)
        B = groups[0].shape[0]
        stacked = jnp.stack(groups, axis=0).reshape((R * B,) + groups[0].shape[1:])
        pooled = fused_conv_pool(stacked, layers, P, rep, negmask, border_flat)  # (R*B, P, C)
        pooled = pooled.reshape(R, B, P, pooled.shape[-1])
        feature_list = [pooled[r] for r in range(R)]
    else:
        feature_list = [fused_conv_pool(g, layers, P, rep, negmask, border_flat)
                        for g in groups]

    return jnp.concatenate([sample_position] + feature_list, axis=2)


def pointfeature_trs_forward(pointcloud, blocks_cfg, blocks_params, pool_mat):
    x = pointcloud
    for cfg, layers in zip(blocks_cfg, blocks_params):
        x = pointnet_forward(x, cfg, layers)
    x = adaptive_avg_pool_lastdim(x, pool_mat)   # nn.AdaptiveAvgPool2d((None, mlp_feature))
    # TODO(synk): self.EncBlocks (EncoderBlock) source not provided -> encoder stack omitted.
    return x


def adaptive_avg_pool_matrix(in_f, out_f):
    m = np.zeros((in_f, out_f), np.float32)
    for j in range(out_f):
        s = (j * in_f) // out_f
        e = ((j + 1) * in_f + out_f - 1) // out_f
        m[s:e, j] = 1.0 / float(e - s)
    return jnp.asarray(m)


def fold_bn_into_conv(w, b, gamma, beta, mean, var, eps=1e-5):
    """Fold eval-mode BatchNorm2d into 1x1 conv weights: y = x @ w_f + b_f."""
    s = gamma / jnp.sqrt(var + eps)                  # (Cout,)
    w_f = w * s[None, :]
    b_f = (b - mean[None, :]) * s[None, :] + beta[None, :]
    return w_f, b_f


# ----------------------------------------------------------------------------
# main
# ----------------------------------------------------------------------------
if __name__ == "__main__":
    key = jax.random.PRNGKey(0)

    # Small configuration consistent with the module constructor.
    B, N = 2, 64
    feat_in_dim = 3
    num_points = [16, 8]
    n_sample = [[8, 8, 8], [8, 8, 8]]
    radius = [[0.5, 1.0, 2.0], [2.0, 4.0, 8.0]]
    conv_channels = [[8, 8], [8, 8]]
    mlp_feature = 16
    # mlp_blocks=2, mlp_heads=2, mlp_hidden=32 would configure EncoderBlock (omitted, see TODO).

    k_in, k_par = jax.random.split(key)
    pointcloud = jax.random.normal(k_in, (B, N, 3 + feat_in_dim), jnp.float32)

    # in_feat chain as in PointFeature_Trs.__init__
    in_feats = [feat_in_dim] + [3 * c[-1] for c in conv_channels]

    blocks_cfg, blocks_params = [], []
    for i, (npo, nsam, rad, convs) in enumerate(zip(num_points, n_sample, radius, conv_channels)):
        cfg = dict(num_points=npo, feat_in_dim=in_feats[i], n_sample=nsam, radius=rad)
        sizes = [in_feats[i]] + list(convs)
        layers = []
        for cin, cout in zip(sizes, sizes[1:]):
            k_par, kw, kb = jax.random.split(k_par, 3)
            bound = 1.0 / float(cin) ** 0.5
            w = jax.random.uniform(kw, (cin, cout), jnp.float32, -bound, bound)  # 1x1 conv (Cin, Cout)
            b = jax.random.uniform(kb, (1, cout), jnp.float32, -bound, bound)    # conv bias
            # BatchNorm2d eval mode, PyTorch defaults: gamma=1, beta=0, mean=0, var=1, eps=1e-5
            gamma = jnp.ones((cout,), jnp.float32)
            beta = jnp.zeros((cout,), jnp.float32)
            mean = jnp.zeros((cout,), jnp.float32)
            var = jnp.ones((cout,), jnp.float32)
            layers.append(fold_bn_into_conv(w, b, gamma, beta, mean, var))
        blocks_cfg.append(cfg)
        blocks_params.append(layers)

    last_feat = 3 + conv_channels[-1][-1] * len(radius[-1])
    pool_mat = adaptive_avg_pool_matrix(last_feat, mlp_feature)

    fwd = jax.jit(lambda pc: pointfeature_trs_forward(pc, blocks_cfg, blocks_params, pool_mat))
    out = fwd(pointcloud)
    jax.block_until_ready(out)

    assert out.shape == (B, num_points[-1], mlp_feature), out.shape
    assert bool(jnp.all(jnp.isfinite(out)))
    print("KERNEL_OK")
</pallas_src>

<mosaic_0001>
module attributes {stable_mosaic.version = 11 : i64} {
  func.func @_pairwise_dist2_kernel(%arg0: memref<2x16x3xf32, #tpu.memory_space<vmem>>, %arg1: memref<2x128x3xf32, #tpu.memory_space<vmem>>, %arg2: memref<2x1x128xf32, #tpu.memory_space<vmem>>, %arg3: memref<2x16x128xf32, #tpu.memory_space<vmem>>) attributes {dimension_semantics = [], scalar_prefetch = 0 : i64, scratch_operands = 0 : i64, tpu.core_type = #tpu.core_type<tc>} {
    %c0 = arith.constant 0 : index
    %c0_0 = arith.constant 0 : index
    %c0_1 = arith.constant 0 : index
    %0 = vector.load %arg0[%c0, %c0_0, %c0_1] : memref<2x16x3xf32, #tpu.memory_space<vmem>>, vector<2x16x3xf32>
    %c0_2 = arith.constant 0 : index
    %c0_3 = arith.constant 0 : index
    %c0_4 = arith.constant 0 : index
    %1 = vector.load %arg1[%c0_2, %c0_3, %c0_4] : memref<2x128x3xf32, #tpu.memory_space<vmem>>, vector<2x128x3xf32>
    %cst = arith.constant dense<0.000000e+00> : vector<2x16x128xf32>
    %2 = tpu.matmul %0, %1, %cst {dimension_numbers = #tpu.dot_dimension_numbers<[2], [2], [1], [1], [0, 0, 0, 1, 1, 1], [0], [0]>} : vector<2x16x3xf32>, vector<2x128x3xf32>, vector<2x16x128xf32> -> vector<2x16x128xf32>
    %3 = arith.mulf %0, %0 : vector<2x16x3xf32>
    %cst_5 = arith.constant dense<0.000000e+00> : vector<2x16xf32>
    %4 = vector.multi_reduction <add>, %3, %cst_5 [2] : vector<2x16x3xf32> to vector<2x16xf32>
    %5 = vector.shape_cast %4 : vector<2x16xf32> to vector<2x16x1xf32>
    %c0_6 = arith.constant 0 : index
    %c0_7 = arith.constant 0 : index
    %c0_8 = arith.constant 0 : index
    %6 = vector.load %arg2[%c0_6, %c0_7, %c0_8] : memref<2x1x128xf32, #tpu.memory_space<vmem>>, vector<2x1x128xf32>
    %7 = vector.broadcast %5 : vector<2x16x1xf32> to vector<2x16x128xf32>
    %8 = vector.broadcast %6 : vector<2x1x128xf32> to vector<2x16x128xf32>
    %9 = arith.addf %7, %8 : vector<2x16x128xf32>
    %cst_9 = arith.constant 2.000000e+00 : f32
    %10 = vector.broadcast %cst_9 : f32 to vector<2x16x128xf32>
    %11 = arith.mulf %10, %2 : vector<2x16x128xf32>
    %12 = arith.subf %9, %11 : vector<2x16x128xf32>
    %c0_10 = arith.constant 0 : index
    %c0_11 = arith.constant 0 : index
    %c0_12 = arith.constant 0 : index
    %13 = vector.load %arg3[%c0_10, %c0_11, %c0_12] : memref<2x16x128xf32, #tpu.memory_space<vmem>>, vector<2x16x128xf32>
    tpu.vector_store %arg3[%c0_10, %c0_11, %c0_12], %12 {strides = array<i32>} : memref<2x16x128xf32, #tpu.memory_space<vmem>>, vector<2x16x128xf32>,
    return
  }
}

module attributes {stable_mosaic.version = 11 : i64} {
  func.func @kernel(%arg0: i32, %arg1: memref<3x16x8x3xf32, #tpu.memory_space<vmem>>, %arg2: memref<3x8xf32, #tpu.memory_space<vmem>>, %arg3: memref<1x8xf32, #tpu.memory_space<vmem>>, %arg4: memref<8x8xf32, #tpu.memory_space<vmem>>, %arg5: memref<1x8xf32, #tpu.memory_space<vmem>>, %arg6: memref<8x128xf32, #tpu.memory_space<vmem>>, %arg7: memref<16x128xf32, #tpu.memory_space<vmem>>, %arg8: memref<1x128xf32, #tpu.memory_space<vmem>>, %arg9: memref<3x1x128xf32, #tpu.memory_space<vmem>>) attributes {dimension_semantics = [#tpu.dimension_semantics<parallel>], iteration_bounds = array<i64: 2>, scalar_prefetch = 0 : i64, scratch_operands = 0 : i64, tpu.core_type = #tpu.core_type<tc>, window_params = [{transform_indices = @transform_0, window_bounds = array<i64: 3, 16, 8, 3>}, {pipeline_mode = #tpu.pipeline_mode<synchronous>, transform_indices = @transform_1, window_bounds = array<i64: 3, 8>}, {pipeline_mode = #tpu.pipeline_mode<synchronous>, transform_indices = @transform_2, window_bounds = array<i64: 1, 8>}, {pipeline_mode = #tpu.pipeline_mode<synchronous>, transform_indices = @transform_3, window_bounds = array<i64: 8, 8>}, {pipeline_mode = #tpu.pipeline_mode<synchronous>, transform_indices = @transform_4, window_bounds = array<i64: 1, 8>}, {pipeline_mode = #tpu.pipeline_mode<synchronous>, transform_indices = @transform_5, window_bounds = array<i64: 8, 128>}, {pipeline_mode = #tpu.pipeline_mode<synchronous>, transform_indices = @transform_6, window_bounds = array<i64: 16, 128>}, {pipeline_mode = #tpu.pipeline_mode<synchronous>, transform_indices = @transform_7, window_bounds = array<i64: 1, 128>}, {transform_indices = @transform_8, window_bounds = array<i64: 3, 1, 128>}]} {
    %c0 = arith.constant 0 : index
    %c0_0 = arith.constant 0 : index
    %c0_1 = arith.constant 0 : index
    %c0_2 = arith.constant 0 : index
    %0 = vector.load %arg1[%c0, %c0_0, %c0_1, %c0_2] : memref<3x16x8x3xf32, #tpu.memory_space<vmem>>, vector<3x16x8x3xf32>
    %1 = vector.shape_cast %0 : vector<3x16x8x3xf32> to vector<384x3xf32>
    %c0_3 = arith.constant 0 : index
    %c0_4 = arith.constant 0 : index
    %2 = vector.load %arg2[%c0_3, %c0_4] : memref<3x8xf32, #tpu.memory_space<vmem>>, vector<3x8xf32>
    %cst = arith.constant dense<0.000000e+00> : vector<384x8xf32>
    %3 = tpu.matmul %1, %2, %cst {dimension_numbers = #tpu.dot_dimension_numbers<[1], [0], [0], [1], [0, 0, 1, 1], [], []>} : vector<384x3xf32>, vector<3x8xf32>, vector<384x8xf32> -> vector<384x8xf32>
    %c0_5 = arith.constant 0 : index
    %c0_6 = arith.constant 0 : index
    %4 = vector.load %arg3[%c0_5, %c0_6] : memref<1x8xf32, #tpu.memory_space<vmem>>, vector<1x8xf32>
    %5 = vector.broadcast %4 : vector<1x8xf32> to vector<384x8xf32>
    %6 = arith.addf %3, %5 : vector<384x8xf32>
    %cst_7 = arith.constant 0.000000e+00 : f32
    %7 = vector.broadcast %cst_7 : f32 to vector<384x8xf32>
    %8 = arith.maximumf %6, %7 : vector<384x8xf32>
    %c0_8 = arith.constant 0 : index
    %c0_9 = arith.constant 0 : index
    %9 = vector.load %arg4[%c0_8, %c0_9] : memref<8x8xf32, #tpu.memory_space<vmem>>, vector<8x8xf32>
    %cst_10 = arith.constant dense<0.000000e+00> : vector<384x8xf32>
    %10 = tpu.matmul %8, %9, %cst_10 {dimension_numbers = #tpu.dot_dimension_numbers<[1], [0], [0], [1], [0, 0, 1, 1], [], []>} : vector<384x8xf32>, vector<8x8xf32>, vector<384x8xf32> -> vector<384x8xf32>
    %c0_11 = arith.constant 0 : index
    %c0_12 = arith.constant 0 : index
    %11 = vector.load %arg5[%c0_11, %c0_12] : memref<1x8xf32, #tpu.memory_space<vmem>>, vector<1x8xf32>
    %12 = vector.broadcast %11 : vector<1x8xf32> to vector<384x8xf32>
    %13 = arith.addf %10, %12 : vector<384x8xf32>
    %cst_13 = arith.constant 0.000000e+00 : f32
    %14 = vector.broadcast %cst_13 : f32 to vector<384x8xf32>
    %15 = arith.maximumf %13, %14 : vector<384x8xf32>
    %16 = vector.shape_cast %15 : vector<384x8xf32> to vector<3x16x8x8xf32>
    %cst_14 = arith.constant dense<0xFF800000> : vector<3x16x8xf32>
    %17 = vector.multi_reduction <maximumf>, %16, %cst_14 [2] : vector<3x16x8x8xf32> to vector<3x16x8xf32>
    %18 = vector.shape_cast %17 : vector<3x16x8xf32> to vector<48x8xf32>
    %c0_15 = arith.constant 0 : index
    %c0_16 = arith.constant 0 : index
    %19 = vector.load %arg6[%c0_15, %c0_16] : memref<8x128xf32, #tpu.memory_space<vmem>>, vector<8x128xf32>
    %cst_17 = arith.constant dense<0.000000e+00> : vector<48x128xf32>
    %20 = tpu.matmul %18, %19, %cst_17 {dimension_numbers = #tpu.dot_dimension_numbers<[1], [0], [0], [1], [0, 0, 1, 1], [], []>} : vector<48x8xf32>, vector<8x128xf32>, vector<48x128xf32> -> vector<48x128xf32>
    %21 = vector.shape_cast %20 : vector<48x128xf32> to vector<3x16x128xf32>
    %c0_18 = arith.constant 0 : index
    %c0_19 = arith.constant 0 : index
    %22 = vector.load %arg7[%c0_18, %c0_19] : memref<16x128xf32, #tpu.memory_space<vmem>>, vector<16x128xf32>
    %23 = vector.shape_cast %22 : vector<16x128xf32> to vector<1x16x128xf32>
    %24 = vector.broadcast %23 : vector<1x16x128xf32> to vector<3x16x128xf32>
    %25 = arith.addf %21, %24 : vector<3x16x128xf32>
    %cst_20 = arith.constant dense<0xFF800000> : vector<3x128xf32>
    %26 = vector.multi_reduction <maximumf>, %25, %cst_20 [1] : vector<3x16x128xf32> to vector<3x128xf32>
    %c0_21 = arith.constant 0 : index
    %c0_22 = arith.constant 0 : index
    %27 = vector.load %arg8[%c0_21, %c0_22] : memref<1x128xf32, #tpu.memory_space<vmem>>, vector<1x128xf32>
    %28 = vector.broadcast %27 : vector<1x128xf32> to vector<3x128xf32>
    %29 = arith.maximumf %26, %28 : vector<3x128xf32>
    %c0_23 = arith.constant 0 : index
    %c0_24 = arith.constant 0 : index
    %c0_25 = arith.constant 0 : index
    %30 = vector.load %arg9[%c0_23, %c0_24, %c0_25] : memref<3x1x128xf32, #tpu.memory_space<vmem>>, vector<3x1x128xf32>
    %31 = vector.shape_cast %30 : vector<3x1x128xf32> to vector<3x128xf32>
    %32 = vector.shape_cast %29 : vector<3x128xf32> to vector<3x1x128xf32>
    tpu.vector_store %arg9[%c0_23, %c0_24, %c0_25], %32 {strides = array<i32>} : memref<3x1x128xf32, #tpu.memory_space<vmem>>, vector<3x1x128xf32>,
    return
  }
  func.func @transform_0(%arg0: i32) -> (i32, i32, i32, i32) {
    %c0_i32 = arith.constant 0 : i32
    %c0_i32_0 = arith.constant 0 : i32
    %c0_i32_1 = arith.constant 0 : i32
    %c0_i32_2 = arith.constant 0 : i32
    return %arg0, %c0_i32, %c0_i32_0, %c0_i32_1 : i32, i32, i32, i32
  }
  func.func @transform_1(%arg0: i32) -> (i32, i32) {
    %c0_i32 = arith.constant 0 : i32
    %c0_i32_0 = arith.constant 0 : i32
    %c0_i32_1 = arith.constant 0 : i32
    return %c0_i32, %c0_i32_0 : i32, i32
  }
  func.func @transform_2(%arg0: i32) -> (i32, i32) {
    %c0_i32 = arith.constant 0 : i32
    %c0_i32_0 = arith.constant 0 : i32
    %c0_i32_1 = arith.constant 0 : i32
    return %c0_i32, %c0_i32_0 : i32, i32
  }
  func.func @transform_3(%arg0: i32) -> (i32, i32) {
    %c0_i32 = arith.constant 0 : i32
    %c0_i32_0 = arith.constant 0 : i32
    %c0_i32_1 = arith.constant 0 : i32
    return %c0_i32, %c0_i32_0 : i32, i32
  }
  func.func @transform_4(%arg0: i32) -> (i32, i32) {
    %c0_i32 = arith.constant 0 : i32
    %c0_i32_0 = arith.constant 0 : i32
    %c0_i32_1 = arith.constant 0 : i32
    return %c0_i32, %c0_i32_0 : i32, i32
  }
  func.func @transform_5(%arg0: i32) -> (i32, i32) {
    %c0_i32 = arith.constant 0 : i32
    %c0_i32_0 = arith.constant 0 : i32
    %c0_i32_1 = arith.constant 0 : i32
    return %c0_i32, %c0_i32_0 : i32, i32
  }
  func.func @transform_6(%arg0: i32) -> (i32, i32) {
    %c0_i32 = arith.constant 0 : i32
    %c0_i32_0 = arith.constant 0 : i32
    %c0_i32_1 = arith.constant 0 : i32
    return %c0_i32, %c0_i32_0 : i32, i32
  }
  func.func @transform_7(%arg0: i32) -> (i32, i32) {
    %c0_i32 = arith.constant 0 : i32
    %c0_i32_0 = arith.constant 0 : i32
    %c0_i32_1 = arith.constant 0 : i32
    return %c0_i32, %c0_i32_0 : i32, i32
  }
  func.func @transform_8(%arg0: i32) -> (i32, i32, i32) {
    %c0_i32 = arith.constant 0 : i32
    %c0_i32_0 = arith.constant 0 : i32
    %c0_i32_1 = arith.constant 0 : i32
    return %arg0, %c0_i32, %c0_i32_0 : i32, i32, i32
  }
}

module attributes {stable_mosaic.version = 11 : i64} {
  func.func @_pairwise_dist2_kernel(%arg0: memref<2x8x24xf32, #tpu.memory_space<vmem>>, %arg1: memref<2x128x24xf32, #tpu.memory_space<vmem>>, %arg2: memref<2x1x128xf32, #tpu.memory_space<vmem>>, %arg3: memref<2x8x128xf32, #tpu.memory_space<vmem>>) attributes {dimension_semantics = [], scalar_prefetch = 0 : i64, scratch_operands = 0 : i64, tpu.core_type = #tpu.core_type<tc>} {
    %c0 = arith.constant 0 : index
    %c0_0 = arith.constant 0 : index
    %c0_1 = arith.constant 0 : index
    %0 = vector.load %arg0[%c0, %c0_0, %c0_1] : memref<2x8x24xf32, #tpu.memory_space<vmem>>, vector<2x8x24xf32>
    %c0_2 = arith.constant 0 : index
    %c0_3 = arith.constant 0 : index
    %c0_4 = arith.constant 0 : index
    %1 = vector.load %arg1[%c0_2, %c0_3, %c0_4] : memref<2x128x24xf32, #tpu.memory_space<vmem>>, vector<2x128x24xf32>
    %cst = arith.constant dense<0.000000e+00> : vector<2x8x128xf32>
    %2 = tpu.matmul %0, %1, %cst {dimension_numbers = #tpu.dot_dimension_numbers<[2], [2], [1], [1], [0, 0, 0, 1, 1, 1], [0], [0]>} : vector<2x8x24xf32>, vector<2x128x24xf32>, vector<2x8x128xf32> -> vector<2x8x128xf32>
    %3 = arith.mulf %0, %0 : vector<2x8x24xf32>
    %cst_5 = arith.constant dense<0.000000e+00> : vector<2x8xf32>
    %4 = vector.multi_reduction <add>, %3, %cst_5 [2] : vector<2x8x24xf32> to vector<2x8xf32>
    %5 = vector.shape_cast %4 : vector<2x8xf32> to vector<2x8x1xf32>
    %c0_6 = arith.constant 0 : index
    %c0_7 = arith.constant 0 : index
    %c0_8 = arith.constant 0 : index
    %6 = vector.load %arg2[%c0_6, %c0_7, %c0_8] : memref<2x1x128xf32, #tpu.memory_space<vmem>>, vector<2x1x128xf32>
    %7 = vector.broadcast %5 : vector<2x8x1xf32> to vector<2x8x128xf32>
    %8 = vector.broadcast %6 : vector<2x1x128xf32> to vector<2x8x128xf32>
    %9 = arith.addf %7, %8 : vector<2x8x128xf32>
    %cst_9 = arith.constant 2.000000e+00 : f32
    %10 = vector.broadcast %cst_9 : f32 to vector<2x8x128xf32>
    %11 = arith.mulf %10, %2 : vector<2x8x128xf32>
    %12 = arith.subf %9, %11 : vector<2x8x128xf32>
    %c0_10 = arith.constant 0 : index
    %c0_11 = arith.constant 0 : index
    %c0_12 = arith.constant 0 : index
    %13 = vector.load %arg3[%c0_10, %c0_11, %c0_12] : memref<2x8x128xf32, #tpu.memory_space<vmem>>, vector<2x8x128xf32>
    tpu.vector_store %arg3[%c0_10, %c0_11, %c0_12], %12 {strides = array<i32>} : memref<2x8x128xf32, #tpu.memory_space<vmem>>, vector<2x8x128xf32>,
    return
  }
}

module attributes {stable_mosaic.version = 11 : i64} {
  func.func @kernel(%arg0: i32, %arg1: memref<3x8x8x24xf32, #tpu.memory_space<vmem>>, %arg2: memref<24x8xf32, #tpu.memory_space<vmem>>, %arg3: memref<1x8xf32, #tpu.memory_space<vmem>>, %arg4: memref<8x8xf32, #tpu.memory_space<vmem>>, %arg5: memref<1x8xf32, #tpu.memory_space<vmem>>, %arg6: memref<8x64xf32, #tpu.memory_space<vmem>>, %arg7: memref<8x64xf32, #tpu.memory_space<vmem>>, %arg8: memref<1x64xf32, #tpu.memory_space<vmem>>, %arg9: memref<3x1x64xf32, #tpu.memory_space<vmem>>) attributes {dimension_semantics = [#tpu.dimension_semantics<parallel>], iteration_bounds = array<i64: 2>, scalar_prefetch = 0 : i64, scratch_operands = 0 : i64, tpu.core_type = #tpu.core_type<tc>, window_params = [{transform_indices = @transform_0, window_bounds = array<i64: 3, 8, 8, 24>}, {pipeline_mode = #tpu.pipeline_mode<synchronous>, transform_indices = @transform_1, window_bounds = array<i64: 24, 8>}, {pipeline_mode = #tpu.pipeline_mode<synchronous>, transform_indices = @transform_2, window_bounds = array<i64: 1, 8>}, {pipeline_mode = #tpu.pipeline_mode<synchronous>, transform_indices = @transform_3, window_bounds = array<i64: 8, 8>}, {pipeline_mode = #tpu.pipeline_mode<synchronous>, transform_indices = @transform_4, window_bounds = array<i64: 1, 8>}, {pipeline_mode = #tpu.pipeline_mode<synchronous>, transform_indices = @transform_5, window_bounds = array<i64: 8, 64>}, {pipeline_mode = #tpu.pipeline_mode<synchronous>, transform_indices = @transform_6, window_bounds = array<i64: 8, 64>}, {pipeline_mode = #tpu.pipeline_mode<synchronous>, transform_indices = @transform_7, window_bounds = array<i64: 1, 64>}, {transform_indices = @transform_8, window_bounds = array<i64: 3, 1, 64>}]} {
    %c0 = arith.constant 0 : index
    %c0_0 = arith.constant 0 : index
    %c0_1 = arith.constant 0 : index
    %c0_2 = arith.constant 0 : index
    %0 = vector.load %arg1[%c0, %c0_0, %c0_1, %c0_2] : memref<3x8x8x24xf32, #tpu.memory_space<vmem>>, vector<3x8x8x24xf32>
    %1 = vector.shape_cast %0 : vector<3x8x8x24xf32> to vector<192x24xf32>
    %c0_3 = arith.constant 0 : index
    %c0_4 = arith.constant 0 : index
    %2 = vector.load %arg2[%c0_3, %c0_4] : memref<24x8xf32, #tpu.memory_space<vmem>>, vector<24x8xf32>
    %cst = arith.constant dense<0.000000e+00> : vector<192x8xf32>
    %3 = tpu.matmul %1, %2, %cst {dimension_numbers = #tpu.dot_dimension_numbers<[1], [0], [0], [1], [0, 0, 1, 1], [], []>} : vector<192x24xf32>, vector<24x8xf32>, vector<192x8xf32> -> vector<192x8xf32>
    %c0_5 = arith.constant 0 : index
    %c0_6 = arith.constant 0 : index
    %4 = vector.load %arg3[%c0_5, %c0_6] : memref<1x8xf32, #tpu.memory_space<vmem>>, vector<1x8xf32>
    %5 = vector.broadcast %4 : vector<1x8xf32> to vector<192x8xf32>
    %6 = arith.addf %3, %5 : vector<192x8xf32>
    %cst_7 = arith.constant 0.000000e+00 : f32
    %7 = vector.broadcast %cst_7 : f32 to vector<192x8xf32>
    %8 = arith.maximumf %6, %7 : vector<192x8xf32>
    %c0_8 = arith.constant 0 : index
    %c0_9 = arith.constant 0 : index
    %9 = vector.load %arg4[%c0_8, %c0_9] : memref<8x8xf32, #tpu.memory_space<vmem>>, vector<8x8xf32>
    %cst_10 = arith.constant dense<0.000000e+00> : vector<192x8xf32>
    %10 = tpu.matmul %8, %9, %cst_10 {dimension_numbers = #tpu.dot_dimension_numbers<[1], [0], [0], [1], [0, 0, 1, 1], [], []>} : vector<192x8xf32>, vector<8x8xf32>, vector<192x8xf32> -> vector<192x8xf32>
    %c0_11 = arith.constant 0 : index
    %c0_12 = arith.constant 0 : index
    %11 = vector.load %arg5[%c0_11, %c0_12] : memref<1x8xf32, #tpu.memory_space<vmem>>, vector<1x8xf32>
    %12 = vector.broadcast %11 : vector<1x8xf32> to vector<192x8xf32>
    %13 = arith.addf %10, %12 : vector<192x8xf32>
    %cst_13 = arith.constant 0.000000e+00 : f32
    %14 = vector.broadcast %cst_13 : f32 to vector<192x8xf32>
    %15 = arith.maximumf %13, %14 : vector<192x8xf32>
    %16 = vector.shape_cast %15 : vector<192x8xf32> to vector<3x8x8x8xf32>
    %cst_14 = arith.constant dense<0xFF800000> : vector<3x8x8xf32>
    %17 = vector.multi_reduction <maximumf>, %16, %cst_14 [2] : vector<3x8x8x8xf32> to vector<3x8x8xf32>
    %18 = vector.shape_cast %17 : vector<3x8x8xf32> to vector<24x8xf32>
    %c0_15 = arith.constant 0 : index
    %c0_16 = arith.constant 0 : index
    %19 = vector.load %arg6[%c0_15, %c0_16] : memref<8x64xf32, #tpu.memory_space<vmem>>, vector<8x64xf32>
    %cst_17 = arith.constant dense<0.000000e+00> : vector<24x64xf32>
    %20 = tpu.matmul %18, %19, %cst_17 {dimension_numbers = #tpu.dot_dimension_numbers<[1], [0], [0], [1], [0, 0, 1, 1], [], []>} : vector<24x8xf32>, vector<8x64xf32>, vector<24x64xf32> -> vector<24x64xf32>
    %21 = vector.shape_cast %20 : vector<24x64xf32> to vector<3x8x64xf32>
    %c0_18 = arith.constant 0 : index
    %c0_19 = arith.constant 0 : index
    %22 = vector.load %arg7[%c0_18, %c0_19] : memref<8x64xf32, #tpu.memory_space<vmem>>, vector<8x64xf32>
    %23 = vector.shape_cast %22 : vector<8x64xf32> to vector<1x8x64xf32>
    %24 = vector.broadcast %23 : vector<1x8x64xf32> to vector<3x8x64xf32>
    %25 = arith.addf %21, %24 : vector<3x8x64xf32>
    %cst_20 = arith.constant dense<0xFF800000> : vector<3x64xf32>
    %26 = vector.multi_reduction <maximumf>, %25, %cst_20 [1] : vector<3x8x64xf32> to vector<3x64xf32>
    %c0_21 = arith.constant 0 : index
    %c0_22 = arith.constant 0 : index
    %27 = vector.load %arg8[%c0_21, %c0_22] : memref<1x64xf32, #tpu.memory_space<vmem>>, vector<1x64xf32>
    %28 = vector.broadcast %27 : vector<1x64xf32> to vector<3x64xf32>
    %29 = arith.maximumf %26, %28 : vector<3x64xf32>
    %c0_23 = arith.constant 0 : index
    %c0_24 = arith.constant 0 : index
    %c0_25 = arith.constant 0 : index
    %30 = vector.load %arg9[%c0_23, %c0_24, %c0_25] : memref<3x1x64xf32, #tpu.memory_space<vmem>>, vector<3x1x64xf32>
    %31 = vector.shape_cast %30 : vector<3x1x64xf32> to vector<3x64xf32>
    %32 = vector.shape_cast %29 : vector<3x64xf32> to vector<3x1x64xf32>
    tpu.vector_store %arg9[%c0_23, %c0_24, %c0_25], %32 {strides = array<i32>} : memref<3x1x64xf32, #tpu.memory_space<vmem>>, vector<3x1x64xf32>,
    return
  }
  func.func @transform_0(%arg0: i32) -> (i32, i32, i32, i32) {
    %c0_i32 = arith.constant 0 : i32
    %c0_i32_0 = arith.constant 0 : i32
    %c0_i32_1 = arith.constant 0 : i32
    %c0_i32_2 = arith.constant 0 : i32
    return %arg0, %c0_i32, %c0_i32_0, %c0_i32_1 : i32, i32, i32, i32
  }
  func.func @transform_1(%arg0: i32) -> (i32, i32) {
    %c0_i32 = arith.constant 0 : i32
    %c0_i32_0 = arith.constant 0 : i32
    %c0_i32_1 = arith.constant 0 : i32
    return %c0_i32, %c0_i32_0 : i32, i32
  }
  func.func @transform_2(%arg0: i32) -> (i32, i32) {
    %c0_i32 = arith.constant 0 : i32
    %c0_i32_0 = arith.constant 0 : i32
    %c0_i32_1 = arith.constant 0 : i32
    return %c0_i32, %c0_i32_0 : i32, i32
  }
  func.func @transform_3(%arg0: i32) -> (i32, i32) {
    %c0_i32 = arith.constant 0 : i32
    %c0_i32_0 = arith.constant 0 : i32
    %c0_i32_1 = arith.constant 0 : i32
    return %c0_i32, %c0_i32_0 : i32, i32
  }
  func.func @transform_4(%arg0: i32) -> (i32, i32) {
    %c0_i32 = arith.constant 0 : i32
    %c0_i32_0 = arith.constant 0 : i32
    %c0_i32_1 = arith.constant 0 : i32
    return %c0_i32, %c0_i32_0 : i32, i32
  }
  func.func @transform_5(%arg0: i32) -> (i32, i32) {
    %c0_i32 = arith.constant 0 : i32
    %c0_i32_0 = arith.constant 0 : i32
    %c0_i32_1 = arith.constant 0 : i32
    return %c0_i32, %c0_i32_0 : i32, i32
  }
  func.func @transform_6(%arg0: i32) -> (i32, i32) {
    %c0_i32 = arith.constant 0 : i32
    %c0_i32_0 = arith.constant 0 : i32
    %c0_i32_1 = arith.constant 0 : i32
    return %c0_i32, %c0_i32_0 : i32, i32
  }
  func.func @transform_7(%arg0: i32) -> (i32, i32) {
    %c0_i32 = arith.constant 0 : i32
    %c0_i32_0 = arith.constant 0 : i32
    %c0_i32_1 = arith.constant 0 : i32
    return %c0_i32, %c0_i32_0 : i32, i32
  }
  func.func @transform_8(%arg0: i32) -> (i32, i32, i32) {
    %c0_i32 = arith.constant 0 : i32
    %c0_i32_0 = arith.constant 0 : i32
    %c0_i32_1 = arith.constant 0 : i32
    return %arg0, %c0_i32, %c0_i32_0 : i32, i32, i32
  }
}

module attributes {stable_mosaic.version = 11 : i64} {
  func.func @_matmul_kernel(%arg0: memref<16x27xf32, #tpu.memory_space<vmem>>, %arg1: memref<27x16xf32, #tpu.memory_space<vmem>>, %arg2: memref<16x16xf32, #tpu.memory_space<vmem>>) attributes {dimension_semantics = [], scalar_prefetch = 0 : i64, scratch_operands = 0 : i64, tpu.core_type = #tpu.core_type<tc>} {
    %c0 = arith.constant 0 : index
    %c0_0 = arith.constant 0 : index
    %0 = vector.load %arg0[%c0, %c0_0] : memref<16x27xf32, #tpu.memory_space<vmem>>, vector<16x27xf32>
    %c0_1 = arith.constant 0 : index
    %c0_2 = arith.constant 0 : index
    %1 = vector.load %arg1[%c0_1, %c0_2] : memref<27x16xf32, #tpu.memory_space<vmem>>, vector<27x16xf32>
    %cst = arith.constant dense<0.000000e+00> : vector<16x16xf32>
    %2 = tpu.matmul %0, %1, %cst {dimension_numbers = #tpu.dot_dimension_numbers<[1], [0], [0], [1], [0, 0, 1, 1], [], []>} : vector<16x27xf32>, vector<27x16xf32>, vector<16x16xf32> -> vector<16x16xf32>
    %c0_3 = arith.constant 0 : index
    %c0_4 = arith.constant 0 : index
    %3 = vector.load %arg2[%c0_3, %c0_4] : memref<16x16xf32, #tpu.memory_space<vmem>>, vector<16x16xf32>
    tpu.vector_store %arg2[%c0_3, %c0_4], %2 {strides = array<i32>} : memref<16x16xf32, #tpu.memory_space<vmem>>, vector<16x16xf32>,
    return
  }
}

</mosaic_0001>

<llo_original>
// kernel: custom-call.25
$region0: #{custom-call.25}
  %s0 = inlined_call_operand.vmem [shape: f32[2,16], index: 0, kind: output, shape index: {}]

// kernel: custom-call.24
$region0: #{custom-call.24}
  %s0 = inlined_call_operand.vmem [shape: f32[2,64], index: 0, kind: output, shape index: {}]

// kernel: _lambda_.9
$region0: #{_lambda_.9}
  #allocation0 [shape = 'u32[]', space=smem, size = 0x4, offset = 0x4, fixed_abs, tag = 'smem constant byte address 0x4 - core index']
  #allocation1 [shape = 'u32[144,128]{1,0:T(1,128)}', space=vmem, size = 0x12000, scoped, tag = 'internal scratch']
  %s0 = inlined_call_operand.vmem [shape: f32[2,16,3], index: 0, kind: input, shape index: {}]
  %s1 = inlined_call_operand.vmem [shape: f32[2,128,3], index: 1, kind: input, shape index: {}]
  %s2 = inlined_call_operand.vmem [shape: f32[2,1,128], index: 2, kind: input, shape index: {}]
  %s3 = inlined_call_operand.vmem [shape: f32[2,16,128], index: 3, kind: output, shape index: {}]
  %s4 = sld [smem:[#allocation0]]
  $region22: #{_lambda_.9} parent=0
    _
  %s6 = ssub.s32 1, %s4
  %s7 = scalar_select 0, %s6, %s4
  // Predicated region
  $region2: #{_lambda_.9} parent=0 // pred_check
    _
  $region3: #{_lambda_.9} parent=0 // pred_check_branch
    %9 = sbr.rel (0) target = $region5
  $region4: #{_lambda_.9} parent=0 // pred_region
    _
  $region5: #{_lambda_.9} parent=0 // pred_fallthru
    _
  // Predicated region
  $region6: #{_lambda_.9} parent=0 // pred_check
    _
  $region7: #{_lambda_.9} parent=0 // pred_check_branch
    %11 = sbr.rel (0) target = $region9
  $region8: #{_lambda_.9} parent=0 // pred_region
    _
  $region9: #{_lambda_.9} parent=0 // pred_fallthru
    _
  // Predicated region
  $region10: #{_lambda_.9} parent=0 // pred_check
    _
  $region11: #{_lambda_.9} parent=0 // pred_check_branch
    %13 = sbr.rel (0) target = $region13
  $region12: #{_lambda_.9} parent=0 // pred_region
    _
  $region13: #{_lambda_.9} parent=0 // pred_fallthru
    _
  %v14 = vld [vmem:[%s0] sm:$0xff]
  %v15 = vld [vmem:[%s0 + $0x8] sm:$0xff]
  %v16 = vld [vmem:[%s0 + $0x10] sm:$0xff]
  %v17 = vld [vmem:[%s0 + $0x18] sm:$0xff]
  %v18 = vld [vmem:[%s1] sm:$0xff]
  %v19 = vld [vmem:[%s1 + $0x8] sm:$0xff]
  %v20 = vld [vmem:[%s1 + $0x10] sm:$0xff]
  %v21 = vld [vmem:[%s1 + $0x18] sm:$0xff]
  %v22 = vld [vmem:[%s1 + $0x20] sm:$0xff]
  %v23 = vld [vmem:[%s1 + $0x28] sm:$0xff]
  %v24 = vld [vmem:[%s1 + $0x30] sm:$0xff]
  %v25 = vld [vmem:[%s1 + $0x38] sm:$0xff]
  %v26 = vld [vmem:[%s1 + $0x40] sm:$0xff]
  %v27 = vld [vmem:[%s1 + $0x48] sm:$0xff]
  %v28 = vld [vmem:[%s1 + $0x50] sm:$0xff]
  %v29 = vld [vmem:[%s1 + $0x58] sm:$0xff]
  %v30 = vld [vmem:[%s1 + $0x60] sm:$0xff]
  %v31 = vld [vmem:[%s1 + $0x68] sm:$0xff]
  %v32 = vld [vmem:[%s1 + $0x70] sm:$0xff]
  %v33 = vld [vmem:[%s1 + $0x78] sm:$0xff]
  %v34 = vld [vmem:[%s1 + $0x80] sm:$0xff]
  %v35 = vld [vmem:[%s1 + $0x88] sm:$0xff]
  %v36 = vld [vmem:[%s1 + $0x90] sm:$0xff]
  %v37 = vld [vmem:[%s1 + $0x98] sm:$0xff]
  %v38 = vld [vmem:[%s1 + $0xa0] sm:$0xff]
  %v39 = vld [vmem:[%s1 + $0xa8] sm:$0xff]
  %v40 = vld [vmem:[%s1 + $0xb0] sm:$0xff]
  %v41 = vld [vmem:[%s1 + $0xb8] sm:$0xff]
  %v42 = vld [vmem:[%s1 + $0xc0] sm:$0xff]
  %v43 = vld [vmem:[%s1 + $0xc8] sm:$0xff]
  %v44 = vld [vmem:[%s1 + $0xd0] sm:$0xff]
  %v45 = vld [vmem:[%s1 + $0xd8] sm:$0xff]
  %v46 = vld [vmem:[%s1 + $0xe0] sm:$0xff]
  %v47 = vld [vmem:[%s1 + $0xe8] sm:$0xff]
  %v48 = vld [vmem:[%s1 + $0xf0] sm:$0xff]
  %v49 = vld [vmem:[%s1 + $0xf8] sm:$0xff]
  %vm50 = vcmask 23552
  %v52 = vsel %vm50, %v14, 0
  %v55 = vsel %vm50, %v15, 0
  %v58 = vsel %vm50, %v18, 0
  %v61 = vsel %vm50, %v19, 0
  %v64 = vsel %vm50, %v20, 0
  %v67 = vsel %vm50, %v21, 0
  %v70 = vsel %vm50, %v22, 0
  %v73 = vsel %vm50, %v23, 0
  %v76 = vsel %vm50, %v24, 0
  %v79 = vsel %vm50, %v25, 0
  %v82 = vsel %vm50, %v26, 0
  %v85 = vsel %vm50, %v27, 0
  %v88 = vsel %vm50, %v28, 0
  %v91 = vsel %vm50, %v29, 0
  %v94 = vsel %vm50, %v30, 0
  %v97 = vsel %vm50, %v31, 0
  %v100 = vsel %vm50, %v32, 0
  %v103 = vsel %vm50, %v33, 0
  %105 = vmatprep.subr.mxu0 0.0
  %106 = vmatpush1.xpose.msra.mxu0 %v58
  %107 = vmatprep.subr.mxu0 0.0
  %108 = vmatpush1.xpose.msra.mxu0 %v61
  %109 = vmatprep.subr.mxu0 0.0
  %110 = vmatpush1.xpose.msra.mxu0 %v64
  %111 = vmatprep.subr.mxu0 0.0
  %112 = vmatpush1.xpose.msra.mxu0 %v67
  %113 = vmatprep.subr.mxu0 0.0
  %114 = vmatpush1.xpose.msra.mxu0 %v70
  %115 = vmatprep.subr.mxu0 0.0
  %116 = vmatpush1.xpose.msra.mxu0 %v73
  %117 = vmatprep.subr.mxu0 0.0
  %118 = vmatpush1.xpose.msra.mxu0 %v76
  %119 = vmatprep.subr.mxu0 0.0
  %120 = vmatpush1.xpose.msra.mxu0 %v79
  %121 = vmatprep.subr.mxu0 0.0
  %122 = vmatpush1.xpose.msra.mxu0 %v82
  %123 = vmatprep.subr.mxu0 0.0
  %124 = vmatpush1.xpose.msra.mxu0 %v85
  %125 = vmatprep.subr.mxu0 0.0
  %126 = vmatpush1.xpose.msra.mxu0 %v88
  %127 = vmatprep.subr.mxu0 0.0
  %128 = vmatpush1.xpose.msra.mxu0 %v91
  %129 = vmatprep.subr.mxu0 0.0
  %130 = vmatpush1.xpose.msra.mxu0 %v94
  %131 = vmatprep.subr.mxu0 0.0
  %132 = vmatpush1.xpose.msra.mxu0 %v97
  %133 = vmatprep.subr.mxu0 0.0
  %134 = vmatpush1.xpose.msra.mxu0 %v100
  %135 = vmatprep.subr.mxu0 0.0
  %136 = vmatpush1.xpose.msra.mxu0 %v103
  %137 = vmatprep.subr.mxu0 0.0
  %138 = vmatpush1.xpose.msra.mxu0 0.0
  %139 = vmatprep.subr.mxu0 0.0
  %140 = vmatpush1.xpose.msra.mxu0 0.0
  %141 = vmatprep.subr.mxu0 0.0
  %142 = vmatpush1.xpose.msra.mxu0 0.0
  %143 = vmatprep.subr.mxu0 0.0
  %144 = vmatpush1.xpose.msra.mxu0 0.0
  %145 = vmatprep.subr.mxu0 0.0
  %146 = vmatpush1.xpose.msra.mxu0 0.0
  %147 = vmatprep.subr.mxu0 0.0
  %148 = vmatpush1.xpose.msra.mxu0 0.0
  %149 = vmatprep.subr.mxu0 0.0
  %150 = vmatpush1.xpose.msra.mxu0 0.0
  %151 = vmatprep.subr.mxu0 0.0
  %152 = vmatpush1.xpose.msra.mxu0 0.0
  %153 = vmatprep.subr.mxu0 0.0
  %154 = vmatpush1.xpose.msra.mxu0 0.0
  %155 = vmatprep.subr.mxu0 0.0
  %156 = vmatpush1.xpose.msra.mxu0 0.0
  %157 = vmatprep.subr.mxu0 0.0
  %158 = vmatpush1.xpose.msra.mxu0 0.0
  %159 = vmatprep.subr.mxu0 0.0
  %160 = vmatpush1.xpose.msra.mxu0 0.0
  %161 = vmatprep.subr.mxu0 0.0
  %162 = vmatpush1.xpose.msra.mxu0 0.0
  %163 = vmatprep.subr.mxu0 0.0
  %164 = vmatpush1.xpose.msra.mxu0 0.0
  %165 = vmatprep.subr.mxu0 0.0
  %166 = vmatpush1.xpose.msra.mxu0 0.0
  %167 = vmatprep.subr.mxu0 0.0
  %168 = vmatpush1.xpose.msra.mxu0 0.0
  %169 = vmatprep.mubr.f32.mxu0 0.0
  %170 = vmatmul.mubr.f32.gmra.mrb[0].mxu0 %v52
  %v171 = vpop.f32.mrb[0].mxu0
  %v172 = vadd.f32 0.0, %v171
  %v173 = vpop.f32.mrb[0].mxu0
  %174 = vmatprep.mubr.f32.mxu0 0.0
  %175 = vmatmul.mubr.f32.gmra.mrb[0].mxu0 %v55
  %v176 = vpop.f32.mrb[0].mxu0
  %v177 = vadd.f32 0.0, %v176
  %v178 = vpop.f32.mrb[0].mxu0
  %179 = vdwg.mxu0
  %v181 = vsel %vm50, %v16, 0
  %v184 = vsel %vm50, %v17, 0
  %v187 = vsel %vm50, %v34, 0
  %v190 = vsel %vm50, %v35, 0
  %v193 = vsel %vm50, %v36, 0
  %v196 = vsel %vm50, %v37, 0
  %v199 = vsel %vm50, %v38, 0
  %v202 = vsel %vm50, %v39, 0
  %v205 = vsel %vm50, %v40, 0
  %v208 = vsel %vm50, %v41, 0
  %v211 = vsel %vm50, %v42, 0
  %v214 = vsel %vm50, %v43, 0
  %v217 = vsel %vm50, %v44, 0
  %v220 = vsel %vm50, %v45, 0
  %v223 = vsel %vm50, %v46, 0
  %v226 = vsel %vm50, %v47, 0
  %v229 = vsel %vm50, %v48, 0
  %v232 = vsel %vm50, %v49, 0
  %234 = vmatprep.subr.mxu0 0.0
  %235 = vmatpush1.xpose.msra.mxu0 %v187
  %236 = vmatprep.subr.mxu0 0.0
  %237 = vmatpush1.xpose.msra.mxu0 %v190
  %238 = vmatprep.subr.mxu0 0.0
  %239 = vmatpush1.xpose.msra.mxu0 %v193
  %240 = vmatprep.subr.mxu0 0.0
  %241 = vmatpush1.xpose.msra.mxu0 %v196
  %242 = vmatprep.subr.mxu0 0.0
  %243 = vmatpush1.xpose.msra.mxu0 %v199
  %244 = vmatprep.subr.mxu0 0.0
  %245 = vmatpush1.xpose.msra.mxu0 %v202
  %246 = vmatprep.subr.mxu0 0.0
  %247 = vmatpush1.xpose.msra.mxu0 %v205
  %248 = vmatprep.subr.mxu0 0.0
  %249 = vmatpush1.xpose.msra.mxu0 %v208
  %250 = vmatprep.subr.mxu0 0.0
  %251 = vmatpush1.xpose.msra.mxu0 %v211
  %252 = vmatprep.subr.mxu0 0.0
  %253 = vmatpush1.xpose.msra.mxu0 %v214
  %254 = vmatprep.subr.mxu0 0.0
  %255 = vmatpush1.xpose.msra.mxu0 %v217
  %256 = vmatprep.subr.mxu0 0.0
  %257 = vmatpush1.xpose.msra.mxu0 %v220
  %258 = vmatprep.subr.mxu0 0.0
  %259 = vmatpush1.xpose.msra.mxu0 %v223
  %260 = vmatprep.subr.mxu0 0.0
  %261 = vmatpush1.xpose.msra.mxu0 %v226
  %262 = vmatprep.subr.mxu0 0.0
  %263 = vmatpush1.xpose.msra.mxu0 %v229
  %264 = vmatprep.subr.mxu0 0.0
  %265 = vmatpush1.xpose.msra.mxu0 %v232
  %266 = vmatprep.subr.mxu0 0.0
  %267 = vmatpush1.xpose.msra.mxu0 0.0
  %268 = vmatprep.subr.mxu0 0.0
  %269 = vmatpush1.xpose.msra.mxu0 0.0
  %270 = vmatprep.subr.mxu0 0.0
  %271 = vmatpush1.xpose.msra.mxu0 0.0
  %272 = vmatprep.subr.mxu0 0.0
  %273 = vmatpush1.xpose.msra.mxu0 0.0
  %274 = vmatprep.subr.mxu0 0.0
  %275 = vmatpush1.xpose.msra.mxu0 0.0
  %276 = vmatprep.subr.mxu0 0.0
  %277 = vmatpush1.xpose.msra.mxu0 0.0
  %278 = vmatprep.subr.mxu0 0.0
  %279 = vmatpush1.xpose.msra.mxu0 0.0
  %280 = vmatprep.subr.mxu0 0.0
  %281 = vmatpush1.xpose.msra.mxu0 0.0
  %282 = vmatprep.subr.mxu0 0.0
  %283 = vmatpush1.xpose.msra.mxu0 0.0
  %284 = vmatprep.subr.mxu0 0.0
  %285 = vmatpush1.xpose.msra.mxu0 0.0
  %286 = vmatprep.subr.mxu0 0.0
  %287 = vmatpush1.xpose.msra.mxu0 0.0
  %288 = vmatprep.subr.mxu0 0.0
  %289 = vmatpush1.xpose.msra.mxu0 0.0
  %290 = vmatprep.subr.mxu0 0.0
  %291 = vmatpush1.xpose.msra.mxu0 0.0
  %292 = vmatprep.subr.mxu0 0.0
  %293 = vmatpush1.xpose.msra.mxu0 0.0
  %294 = vmatprep.subr.mxu0 0.0
  %295 = vmatpush1.xpose.msra.mxu0 0.0
  %296 = vmatprep.subr.mxu0 0.0
  %297 = vmatpush1.xpose.msra.mxu0 0.0
  %298 = vmatprep.mubr.f32.mxu0 0.0
  %299 = vmatmul.mubr.f32.gmra.mrb[0].mxu0 %v181
  %v300 = vpop.f32.mrb[0].mxu0
  %v301 = vadd.f32 0.0, %v300
  %v302 = vpop.f32.mrb[0].mxu0
  %303 = vmatprep.mubr.f32.mxu0 0.0
  %304 = vmatmul.mubr.f32.gmra.mrb[0].mxu0 %v184
  %v305 = vpop.f32.mrb[0].mxu0
  %v306 = vadd.f32 0.0, %v305
  %v307 = vpop.f32.mrb[0].mxu0
  %308 = vdwg.mxu0
  %v309 = vmul.f32 %v14, %v14
  %v310 = vmul.f32 %v15, %v15
  %v311 = vmul.f32 %v16, %v16
  %v312 = vmul.f32 %v17, %v17
  %v313 = vsel %vm50, %v309, 0.0
  %314 = vadd.xlane.f32.xlu0 %v313
  %v315 = vpop.xlane.xlu0 %314
  %v316 = vsel %vm50, %v310, 0.0
  %317 = vadd.xlane.f32.xlu0 %v316
  %v318 = vpop.xlane.xlu0 %317
  %v319 = vsel %vm50, %v311, 0.0
  %320 = vadd.xlane.f32.xlu0 %v319
  %v321 = vpop.xlane.xlu0 %320
  %v322 = vsel %vm50, %v312, 0.0
  %323 = vadd.xlane.f32.xlu0 %v322
  %v324 = vpop.xlane.xlu0 %323
  %v325 = vld [vmem:[%s2] sm:$0x1]
  %v326 = vld [vmem:[%s2 + $0x1] sm:$0x1]
  %v329 = vlaneseq
  %v330 = vshrl.u32 %v329, 7
  %v331 = vsub.s32 0, %v330
  %v332 = vrot.slane %v325, %v331
  %v333 = vlaneseq
  %v334 = vshrl.u32 %v333, 7
  %v335 = vsub.s32 0, %v334
  %v336 = vrot.slane %v326, %v335
  %v339 = vadd.f32 %v315, %v332
  %v340 = vadd.f32 %v318, %v332
  %v341 = vadd.f32 %v321, %v336
  %v342 = vadd.f32 %v324, %v336
  %v343 = vmul.f32 %v172, 2.0
  %v344 = vmul.f32 %v177, 2.0
  %v345 = vmul.f32 %v301, 2.0
  %v346 = vmul.f32 %v306, 2.0
  %v347 = vsub.f32 %v339, %v343
  %v348 = vsub.f32 %v340, %v344
  %v349 = vsub.f32 %v341, %v345
  %v350 = vsub.f32 %v342, %v346
  %351 = vst [vmem:[%s3] sm:$0xff] %v347
  %352 = vst [vmem:[%s3 + $0x8] sm:$0xff] %v348
  %353 = vst [vmem:[%s3 + $0x10] sm:$0xff] %v349
  %354 = vst [vmem:[%s3 + $0x18] sm:$0xff] %v350
  // Predicated region
  $region14: #{_lambda_.9} parent=0 // pred_check
    _
  $region15: #{_lambda_.9} parent=0 // pred_check_branch
    %356 = sbr.rel (0) target = $region17
  $region16: #{_lambda_.9} parent=0 // pred_region
    _
  $region17: #{_lambda_.9} parent=0 // pred_fallthru
    _
  // Predicated region
  $region18: #{_lambda_.9} parent=0 // pred_check
    _
  $region19: #{_lambda_.9} parent=0 // pred_check_branch
    %358 = sbr.rel (0) target = $region21
  $region20: #{_lambda_.9} parent=0 // pred_region
    _
  $region21: #{_lambda_.9} parent=0 // pred_fallthru
    _

// kernel: squeeze.12
$region0: #{squeeze.12}
  %s0 = inlined_call_operand.vmem [shape: f32[2,128], index: 0, kind: input, shape index: {}]
  %s1 = inlined_call_operand.vmem [shape: f32[2,16,8], index: 1, kind: output, shape index: {}]
  $region1: #{squeeze.12} parent=0
    #allocation0 [shape = 'u8[4096]{0}', space=vmem, size = 0x1000, scoped, tag = 'scoped mem for input reshape']
    %s3 = sshllo.u32 0, 2
    %v4 = vld [vmem:[%s0] sm:%s3]
    %5 = vst [vmem:[#allocation0] sm:%s3] %v4
    %v6 = vld [vmem:[#allocation0] sm:$0x3]
    %vm7 = vcmask 64512
    %8 = vst.msk [vmem:[%s1] ss:$16 sm:$0x3] %vm7, %v6
    %v9 = vld [vmem:[#allocation0] sm:$0x3]
    %10 = vrot.lane.b32.xlu0 %v9, 120
    %v11 = vpop.permute.xlu0 %10
    %vm12 = vcmask 64512
    %s13 = scalar_lea.vmem %s1, 1
    %14 = vst.msk [vmem:[%s13] ss:$16 sm:$0x3] %vm12, %v11
    %v15 = vld [vmem:[#allocation0] sm:$0x3]
    %16 = vrot.lane.b32.xlu0 %v15, 112
    %v17 = vpop.permute.xlu0 %16
    %vm18 = vcmask 64512
    %s19 = scalar_lea.vmem %s1, 2
    %20 = vst.msk [vmem:[%s19] ss:$16 sm:$0x3] %vm18, %v17
    %v21 = vld [vmem:[#allocation0] sm:$0x3]
    %22 = vrot.lane.b32.xlu0 %v21, 104
    %v23 = vpop.permute.xlu0 %22
    %vm24 = vcmask 64512
    %s25 = scalar_lea.vmem %s1, 3
    %26 = vst.msk [vmem:[%s25] ss:$16 sm:$0x3] %vm24, %v23
    %v27 = vld [vmem:[#allocation0] sm:$0x3]
    %28 = vrot.lane.b32.xlu0 %v27, 96
    %v29 = vpop.permute.xlu0 %28
    %vm30 = vcmask 64512
    %s31 = scalar_lea.vmem %s1, 4
    %32 = vst.msk [vmem:[%s31] ss:$16 sm:$0x3] %vm30, %v29
    %v33 = vld [vmem:[#allocation0] sm:$0x3]
    %34 = vrot.lane.b32.xlu0 %v33, 88
    %v35 = vpop.permute.xlu0 %34
    %vm36 = vcmask 64512
    %s37 = scalar_lea.vmem %s1, 5
    %38 = vst.msk [vmem:[%s37] ss:$16 sm:$0x3] %vm36, %v35
    %v39 = vld [vmem:[#allocation0] sm:$0x3]
    %40 = vrot.lane.b32.xlu0 %v39, 80
    %v41 = vpop.permute.xlu0 %40
    %vm42 = vcmask 64512
    %s43 = scalar_lea.vmem %s1, 6
    %44 = vst.msk [vmem:[%s43] ss:$16 sm:$0x3] %vm42, %v41
    %v45 = vld [vmem:[#allocation0] sm:$0x3]
    %46 = vrot.lane.b32.xlu0 %v45, 72
    %v47 = vpop.permute.xlu0 %46
    %vm48 = vcmask 64512
    %s49 = scalar_lea.vmem %s1, 7
    %50 = vst.msk [vmem:[%s49] ss:$16 sm:$0x3] %vm48, %v47
    %v51 = vld [vmem:[#allocation0] sm:$0x3]
    %52 = vrot.lane.b32.xlu0 %v51, 64
    %v53 = vpop.permute.xlu0 %52
    %vm54 = vcmask 64512
    %s55 = scalar_lea.vmem %s1, 8
    %56 = vst.msk [vmem:[%s55] ss:$16 sm:$0x3] %vm54, %v53
    %v57 = vld [vmem:[#allocation0] sm:$0x3]
    %58 = vrot.lane.b32.xlu0 %v57, 56
    %v59 = vpop.permute.xlu0 %58
    %vm60 = vcmask 64512
    %s61 = scalar_lea.vmem %s1, 9
    %62 = vst.msk [vmem:[%s61] ss:$16 sm:$0x3] %vm60, %v59
    %v63 = vld [vmem:[#allocation0] sm:$0x3]
    %64 = vrot.lane.b32.xlu0 %v63, 48
    %v65 = vpop.permute.xlu0 %64
    %vm66 = vcmask 64512
    %s67 = scalar_lea.vmem %s1, 10
    %68 = vst.msk [vmem:[%s67] ss:$16 sm:$0x3] %vm66, %v65
    %v69 = vld [vmem:[#allocation0] sm:$0x3]
    %70 = vrot.lane.b32.xlu0 %v69, 40
    %v71 = vpop.permute.xlu0 %70
    %vm72 = vcmask 64512
    %s73 = scalar_lea.vmem %s1, 11
    %74 = vst.msk [vmem:[%s73] ss:$16 sm:$0x3] %vm72, %v71
    %v75 = vld [vmem:[#allocation0] sm:$0x3]
    %76 = vrot.lane.b32.xlu0 %v75, 32
    %v77 = vpop.permute.xlu0 %76
    %vm78 = vcmask 64512
    %s79 = scalar_lea.vmem %s1, 12
    %80 = vst.msk [vmem:[%s79] ss:$16 sm:$0x3] %vm78, %v77
    %v81 = vld [vmem:[#allocation0] sm:$0x3]
    %82 = vrot.lane.b32.xlu0 %v81, 24
    %v83 = vpop.permute.xlu0 %82
    %vm84 = vcmask 64512
    %s85 = scalar_lea.vmem %s1, 13
    %86 = vst.msk [vmem:[%s85] ss:$16 sm:$0x3] %vm84, %v83
    %v87 = vld [vmem:[#allocation0] sm:$0x3]
    %88 = vrot.lane.b32.xlu0 %v87, 16
    %v89 = vpop.permute.xlu0 %88
    %vm90 = vcmask 64512
    %s91 = scalar_lea.vmem %s1, 14
    %92 = vst.msk [vmem:[%s91] ss:$16 sm:$0x3] %vm90, %v89
    %v93 = vld [vmem:[#allocation0] sm:$0x3]
    %94 = vrot.lane.b32.xlu0 %v93, 8
    %v95 = vpop.permute.xlu0 %94
    %vm96 = vcmask 64512
    %s97 = scalar_lea.vmem %s1, 15
    %98 = vst.msk [vmem:[%s97] ss:$16 sm:$0x3] %vm96, %v95

// kernel: _lambda_.10
$region0: #{_lambda_.10}
  #allocation0 [shape = 'u32[]', space=smem, size = 0x4, offset = 0x4, fixed_abs, tag = 'smem constant byte address 0x4 - core index']
  #allocation1 [shape = 'u32[144,128]{1,0:T(1,128)}', space=vmem, size = 0x12000, scoped, tag = 'internal scratch']
  %s0 = inlined_call_operand.vmem [shape: f32[6,16,8,3], index: 0, kind: input, shape index: {}]
  %s1 = inlined_call_operand.vmem [shape: f32[3,8], index: 1, kind: input, shape index: {}]
  %s2 = inlined_call_operand.vmem [shape: f32[1,8], index: 2, kind: input, shape index: {}]
  %s3 = inlined_call_operand.vmem [shape: f32[8,8], index: 3, kind: input, shape index: {}]
  %s4 = inlined_call_operand.vmem [shape: f32[1,8], index: 4, kind: input, shape index: {}]
  %s5 = inlined_call_operand.vmem [shape: f32[8,128], index: 5, kind: input, shape index: {}]
  %s6 = inlined_call_operand.vmem [shape: f32[16,128], index: 6, kind: input, shape index: {}]
  %s7 = inlined_call_operand.vmem [shape: f32[1,128], index: 7, kind: input, shape index: {}]
  %s8 = inlined_call_operand.vmem [shape: f32[6,1,128], index: 8, kind: output, shape index: {}]
  %s9 = sld [smem:[#allocation0]]
  $region65: #{_lambda_.10} parent=0
    _
  %s11 = ssub.s32 1, %s9
  %s12 = scalar_select 0, %s11, %s9
  loop: start=0, step=1, limit=4
  $region2: #{_lambda_.10} parent=0 // loop_pre_header
    _
  $region3: #{_lambda_.10} parent=0 // loop_header
    %s14 = sphi 0, %s18
    %p15 = scmp.ge.s32.totalorder %s14, 4
    %s24 = sphi 0, %s26
    %s27 = sphi 0, %s24
    %s28 = sphi 0, %s27
    %s44 = sphi 0, %s28
    %s48 = sphi 0, %s48
    %s50 = sphi 0, %s48
    %s51 = sphi 0, %s50
    %s65 = sphi 0, %s51
    %s69 = sphi 0, %s69
    %s71 = sphi 0, %s69
    %s72 = sphi 0, %s71
    %s86 = sphi 0, %s72
    %s90 = sphi 0, %s90
    %s92 = sphi 0, %s90
    %s93 = sphi 0, %s92
    %s107 = sphi 0, %s93
    %s111 = sphi 0, %s111
    %s113 = sphi 0, %s111
    %s114 = sphi 0, %s113
    %s128 = sphi 0, %s114
    %s132 = sphi 0, %s132
    %s134 = sphi 0, %s132
    %s135 = sphi 0, %s134
    %s149 = sphi 0, %s135
    %s153 = sphi 0, %s153
    %s155 = sphi 0, %s153
    %s156 = sphi 0, %s155
    %s170 = sphi 0, %s156
    %s174 = sphi 0, %s174
    %s176 = sphi 0, %s174
    %s177 = sphi 0, %s176
    %s191 = sphi 0, %s177
    %s197 = sphi 0, %s199
    %s200 = sphi 0, %s197
    %s201 = sphi 0, %s200
    %s217 = sphi 0, %s201
  $region4: #{_lambda_.10} parent=0 // loop_header_branch
    %17 = sbr.rel (%p15) target = $region8
  $region5: #{_lambda_.10} parent=0 // loop_body
    %s19 = ssub.s32 %s14, 1
    %s20 = ssub.s32 %s14, 2
    %s21 = sadd.s32 %s14, 1
    %s22 = ssub.s32 %s14, %s21
    %p23 = scmp.eq.s32.totalorder %s22, 0
    %s25 = sadd.s32 %s24, 1
    %s26 = scalar_select %p23, %s24, %s25
    %p29 = pneg %p23
    %p30 = scmp.eq.s32.totalorder %s14, 1
    %p31 = por %p29, %p30
    %p32 = scmp.ne.s32.totalorder %s24, %s27
    %p33 = scmp.eq.s32.totalorder %s14, 0
    %p34 = por %p32, %p33
    %p35 = scmp.ne.s32.totalorder %s24, %s27
    %p36 = scmp.eq.s32.totalorder %s19, 1
    %p37 = por %p35, %p36
    %p38 = scmp.ne.s32.totalorder %s27, %s28
    %p39 = scmp.eq.s32.totalorder %s19, 0
    %p40 = por %p38, %p39
    %p41 = scmp.ne.s32.totalorder %s27, %s28
    %p42 = scmp.eq.s32.totalorder %s20, 1
    %p43 = por %p41, %p42
    %p45 = scmp.ne.s32.totalorder %s28, %s44
    %p46 = scmp.eq.s32.totalorder %s20, 0
    %p47 = por %p45, %p46
    %s49 = sadd.s32 %s48, 1
    %p52 = scmp.eq.s32.totalorder %s14, 1
    %p53 = scmp.ne.s32.totalorder %s48, %s50
    %p54 = scmp.eq.s32.totalorder %s14, 0
    %p55 = por %p53, %p54
    %p56 = scmp.ne.s32.totalorder %s48, %s50
    %p57 = scmp.eq.s32.totalorder %s19, 1
    %p58 = por %p56, %p57
    %p59 = scmp.ne.s32.totalorder %s50, %s51
    %p60 = scmp.eq.s32.totalorder %s19, 0
    %p61 = por %p59, %p60
    %p62 = scmp.ne.s32.totalorder %s50, %s51
    %p63 = scmp.eq.s32.totalorder %s20, 1
    %p64 = por %p62, %p63
    %p66 = scmp.ne.s32.totalorder %s51, %s65
    %p67 = scmp.eq.s32.totalorder %s20, 0
    %p68 = por %p66, %p67
    %s70 = sadd.s32 %s69, 1
    %p73 = scmp.eq.s32.totalorder %s14, 1
    %p74 = scmp.ne.s32.totalorder %s69, %s71
    %p75 = scmp.eq.s32.totalorder %s14, 0
    %p76 = por %p74, %p75
    %p77 = scmp.ne.s32.totalorder %s69, %s71
    %p78 = scmp.eq.s32.totalorder %s19, 1
    %p79 = por %p77, %p78
    %p80 = scmp.ne.s32.totalorder %s71, %s72
    %p81 = scmp.eq.s32.totalorder %s19, 0
    %p82 = por %p80, %p81
    %p83 = scmp.ne.s32.totalorder %s71, %s72
    %p84 = scmp.eq.s32.totalorder %s20, 1
    %p85 = por %p83, %p84
    %p87 = scmp.ne.s32.totalorder %s72, %s86
    %p88 = scmp.eq.s32.totalorder %s20, 0
    %p89 = por %p87, %p88
    %s91 = sadd.s32 %s90, 1
    %p94 = scmp.eq.s32.totalorder %s14, 1
    %p95 = scmp.ne.s32.totalorder %s90, %s92
    %p96 = scmp.eq.s32.totalorder %s14, 0
    %p97 = por %p95, %p96
    %p98 = scmp.ne.s32.totalorder %s90, %s92
    %p99 = scmp.eq.s32.totalorder %s19, 1
    %p100 = por %p98, %p99
    %p101 = scmp.ne.s32.totalorder %s92, %s93
    %p102 = scmp.eq.s32.totalorder %s19, 0
    %p103 = por %p101, %p102
    %p104 = scmp.ne.s32.totalorder %s92, %s93
    %p105 = scmp.eq.s32.totalorder %s20, 1
    %p106 = por %p104, %p105
    %p108 = scmp.ne.s32.totalorder %s93, %s107
    %p109 = scmp.eq.s32.totalorder %s20, 0
    %p110 = por %p108, %p109
    %s112 = sadd.s32 %s111, 1
    %p115 = scmp.eq.s32.totalorder %s14, 1
    %p116 = scmp.ne.s32.totalorder %s111, %s113
    %p117 = scmp.eq.s32.totalorder %s14, 0
    %p118 = por %p116, %p117
    %p119 = scmp.ne.s32.totalorder %s111, %s113
    %p120 = scmp.eq.s32.totalorder %s19, 1
    %p121 = por %p119, %p120
    %p122 = scmp.ne.s32.totalorder %s113, %s114
    %p123 = scmp.eq.s32.totalorder %s19, 0
    %p124 = por %p122, %p123
    %p125 = scmp.ne.s32.totalorder %s113, %s114
    %p126 = scmp.eq.s32.totalorder %s20, 1
    %p127 = por %p125, %p126
    %p129 = scmp.ne.s32.totalorder %s114, %s128
    %p130 = scmp.eq.s32.totalorder %s20, 0
    %p131 = por %p129, %p130
    %s133 = sadd.s32 %s132, 1
    %p136 = scmp.eq.s32.totalorder %s14, 1
    %p137 = scmp.ne.s32.totalorder %s132, %s134
    %p138 = scmp.eq.s32.totalorder %s14, 0
    %p139 = por %p137, %p138
    %p140 = scmp.ne.s32.totalorder %s132, %s134
    %p141 = scmp.eq.s32.totalorder %s19, 1
    %p142 = por %p140, %p141
    %p143 = scmp.ne.s32.totalorder %s134, %s135
    %p144 = scmp.eq.s32.totalorder %s19, 0
    %p145 = por %p143, %p144
    %p146 = scmp.ne.s32.totalorder %s134, %s135
    %p147 = scmp.eq.s32.totalorder %s20, 1
    %p148 = por %p146, %p147
    %p150 = scmp.ne.s32.totalorder %s135, %s149
    %p151 = scmp.eq.s32.totalorder %s20, 0
    %p152 = por %p150, %p151
    %s154 = sadd.s32 %s153, 1
    %p157 = scmp.eq.s32.totalorder %s14, 1
    %p158 = scmp.ne.s32.totalorder %s153, %s155
    %p159 = scmp.eq.s32.totalorder %s14, 0
    %p160 = por %p158, %p159
    %p161 = scmp.ne.s32.totalorder %s153, %s155
    %p162 = scmp.eq.s32.totalorder %s19, 1
    %p163 = por %p161, %p162
    %p164 = scmp.ne.s32.totalorder %s155, %s156
    %p165 = scmp.eq.s32.totalorder %s19, 0
    %p166 = por %p164, %p165
    %p167 = scmp.ne.s32.totalorder %s155, %s156
    %p168 = scmp.eq.s32.totalorder %s20, 1
    %p169 = por %p167, %p168
    %p171 = scmp.ne.s32.totalorder %s156, %s170
    %p172 = scmp.eq.s32.totalorder %s20, 0
    %p173 = por %p171, %p172
    %s175 = sadd.s32 %s174, 1
    %p178 = scmp.eq.s32.totalorder %s14, 1
    %p179 = scmp.ne.s32.totalorder %s174, %s176
    %p180 = scmp.eq.s32.totalorder %s14, 0
    %p181 = por %p179, %p180
    %p182 = scmp.ne.s32.totalorder %s174, %s176
    %p183 = scmp.eq.s32.totalorder %s19, 1
    %p184 = por %p182, %p183
    %p185 = scmp.ne.s32.totalorder %s176, %s177
    %p186 = scmp.eq.s32.totalorder %s19, 0
    %p187 = por %p185, %p186
    %p188 = scmp.ne.s32.totalorder %s176, %s177
    %p189 = scmp.eq.s32.totalorder %s20, 1
    %p190 = por %p188, %p189
    %p192 = scmp.ne.s32.totalorder %s177, %s191
    %p193 = scmp.eq.s32.totalorder %s20, 0
    %p194 = por %p192, %p193
    %s195 = ssub.s32 %s14, %s21
    %p196 = scmp.eq.s32.totalorder %s195, 0
    %s198 = sadd.s32 %s197, 1
    %s199 = scalar_select %p196, %s197, %s198
    %p202 = pneg %p196
    %p203 = scmp.eq.s32.totalorder %s14, 1
    %p204 = por %p202, %p203
    %p205 = scmp.ne.s32.totalorder %s197, %s200
    %p206 = scmp.eq.s32.totalorder %s14, 0
    %p207 = por %p205, %p206
    %p208 = scmp.ne.s32.totalorder %s197, %s200
    %p209 = scmp.eq.s32.totalorder %s19, 1
    %p210 = por %p208, %p209
    %p211 = scmp.ne.s32.totalorder %s200, %s201
    %p212 = scmp.eq.s32.totalorder %s19, 0
    %p213 = por %p211, %p212
    %p214 = scmp.ne.s32.totalorder %s200, %s201
    %p215 = scmp.eq.s32.totalorder %s20, 1
    %p216 = por %p214, %p215
    %p218 = scmp.ne.s32.totalorder %s201, %s217
    %p219 = scmp.eq.s32.totalorder %s20, 0
    %p220 = por %p218, %p219
    %p221 = scmp.le.s32.totalorder 1, %s14
    %p222 = scmp.lt.s32.totalorder %s14, 3
    %p223 = pnand %p221, %p222
    %p224 = pneg %p223
    // Predicated region
    $region9: #{_lambda_.10} parent=5 // pred_check
      _
    $region10: #{_lambda_.10} parent=5 // pred_check_branch
      %226 = sbr.rel (%p223) target = $region12
    $region11: #{_lambda_.10} parent=5 // pred_region
      %s227 = ssub.s32 %s14, 1
      // Predicated region
      $region13: #{_lambda_.10} parent=11 // pred_check
        %p228 = pneg %p61
      $region14: #{_lambda_.10} parent=11 // pred_check_branch
        %230 = sbr.rel (%p228) target = $region16
      $region15: #{_lambda_.10} parent=11 // pred_region
        _
      $region16: #{_lambda_.10} parent=11 // pred_fallthru
        _
      // Predicated region
      $region17: #{_lambda_.10} parent=11 // pred_check
        %p231 = pneg %p82
      $region18: #{_lambda_.10} parent=11 // pred_check_branch
        %233 = sbr.rel (%p231) target = $region20
      $region19: #{_lambda_.10} parent=11 // pred_region
        _
      $region20: #{_lambda_.10} parent=11 // pred_fallthru
        _
      // Predicated region
      $region21: #{_lambda_.10} parent=11 // pred_check
        %p234 = pneg %p103
      $region22: #{_lambda_.10} parent=11 // pred_check_branch
        %236 = sbr.rel (%p234) target = $region24
      $region23: #{_lambda_.10} parent=11 // pred_region
        _
      $region24: #{_lambda_.10} parent=11 // pred_fallthru
        _
      // Predicated region
      $region25: #{_lambda_.10} parent=11 // pred_check
        %p237 = pneg %p124
      $region26: #{_lambda_.10} parent=11 // pred_check_branch
        %239 = sbr.rel (%p237) target = $region28
      $region27: #{_lambda_.10} parent=11 // pred_region
        _
      $region28: #{_lambda_.10} parent=11 // pred_fallthru
        _
      // Predicated region
      $region29: #{_lambda_.10} parent=11 // pred_check
        %p240 = pneg %p145
      $region30: #{_lambda_.10} parent=11 // pred_check_branch
        %242 = sbr.rel (%p240) target = $region32
      $region31: #{_lambda_.10} parent=11 // pred_region
        _
      $region32: #{_lambda_.10} parent=11 // pred_fallthru
        _
      // Predicated region
      $region33: #{_lambda_.10} parent=11 // pred_check
        %p243 = pneg %p166
      $region34: #{_lambda_.10} parent=11 // pred_check_branch
        %245 = sbr.rel (%p243) target = $region36
      $region35: #{_lambda_.10} parent=11 // pred_region
        _
      $region36: #{_lambda_.10} parent=11 // pred_fallthru
        _
      // Predicated region
      $region37: #{_lambda_.10} parent=11 // pred_check
        %p246 = pneg %p187
      $region38: #{_lambda_.10} parent=11 // pred_check_branch
        %248 = sbr.rel (%p246) target = $region40
      $region39: #{_lambda_.10} parent=11 // pred_region
        _
      $region40: #{_lambda_.10} parent=11 // pred_fallthru
        _
    $region12: #{_lambda_.10} parent=5 // pred_fallthru
      _
    %p249 = scmp.lt.s32.totalorder %s14, 2
    // Predicated region
    $region41: #{_lambda_.10} parent=5 // pred_check
      %p250 = pneg %p249
    $region42: #{_lambda_.10} parent=5 // pred_check_branch
      %252 = sbr.rel (%p250) target = $region44
    $region43: #{_lambda_.10} parent=5 // pred_region
      // Predicated region
      $region45: #{_lambda_.10} parent=43 // pred_check
        %p253 = pneg %p34
      $region46: #{_lambda_.10} parent=43 // pred_check_branch
        %255 = sbr.rel (%p253) target = $region48
      $region47: #{_lambda_.10} parent=43 // pred_region
        %s256 = smul.u32 3, %s14
        %p257 = scmp.lt.s32.totalorder %s256, 5
        %s258 = scalar_select %p257, %s256, 5
        %s259 = smul.addr %s258, 16
        %s260 = smul.addr %s259, 8
        %s261 = scalar_lea.vmem %s0, %s260
        %s262 = smul.u32 3, %s14
      $region48: #{_lambda_.10} parent=43 // pred_fallthru
        _
    $region44: #{_lambda_.10} parent=5 // pred_fallthru
      _
    %p263 = scmp.le.s32.totalorder 1, %s14
    %p264 = scmp.lt.s32.totalorder %s14, 3
    %p265 = pnand %p263, %p264
    %p266 = pneg %p265
    // Predicated region
    $region49: #{_lambda_.10} parent=5 // pred_check
      _
    $region50: #{_lambda_.10} parent=5 // pred_check_branch
      %268 = sbr.rel (%p265) target = $region52
    $region51: #{_lambda_.10} parent=5 // pred_region
      %s269 = ssub.s32 %s14, 1
      %s270 = smul.u32 3, %s19
      %p271 = scmp.lt.s32.totalorder %s270, 5
      %s272 = scalar_select %p271, %s270, 5
      %s273 = smul.addr %s272, 16
      %s274 = smul.addr %s273, 8
      %s275 = scalar_lea.vmem %s0, %s274
      %p276 = pneg %p40
      %p277 = pneg %p37
      %p278 = pneg %p61
      %p279 = pneg %p58
      %p280 = pneg %p82
      %p281 = pneg %p79
      %p282 = pneg %p103
      %p283 = pneg %p100
      %p284 = pneg %p124
      %p285 = pneg %p121
      %p286 = pneg %p145
      %p287 = pneg %p142
      %p288 = pneg %p166
      %p289 = pneg %p163
      %p290 = pneg %p187
      %p291 = pneg %p184
      %p292 = pneg %p213
      %p293 = pneg %p210
      %s294 = smul.u32 3, %s19
      %p295 = scmp.lt.s32.totalorder %s294, 5
      %s296 = scalar_select %p295, %s294, 5
      %s297 = scalar_lea.vmem %s8, %s296
      %s298 = smul.u32 3, %s19
      %p299 = scmp.lt.s32.totalorder %s298, 5
      %s300 = scalar_select %p299, %s298, 5
      %s301 = smul.addr %s300, 16
      %s302 = smul.addr %s301, 8
      %s303 = scalar_lea.vmem %s0, %s302
      %s304 = smul.u32 3, %s19
      %s305 = smul.u32 3, %s19
      %p306 = scmp.lt.s32.totalorder %s305, 5
      %s307 = scalar_select %p306, %s305, 5
      %s308 = scalar_lea.vmem %s8, %s307
      %s309 = smul.u32 3, %s19
      %v310 = vld [vmem:[%s303] sm:$0xff]
      %v311 = vld [vmem:[%s303 + $0x8] sm:$0xff]
      %v312 = vld [vmem:[%s303 + $0x10] sm:$0xff]
      %v313 = vld [vmem:[%s303 + $0x18] sm:$0xff]
      %v314 = vld [vmem:[%s303 + $0x20] sm:$0xff]
      %v315 = vld [vmem:[%s303 + $0x28] sm:$0xff]
      %v316 = vld [vmem:[%s303 + $0x30] sm:$0xff]
      %v317 = vld [vmem:[%s303 + $0x38] sm:$0xff]
      %v318 = vld [vmem:[%s303 + $0x40] sm:$0xff]
      %v319 = vld [vmem:[%s303 + $0x48] sm:$0xff]
      %v320 = vld [vmem:[%s303 + $0x50] sm:$0xff]
      %v321 = vld [vmem:[%s303 + $0x58] sm:$0xff]
      %v322 = vld [vmem:[%s303 + $0x60] sm:$0xff]
      %v323 = vld [vmem:[%s303 + $0x68] sm:$0xff]
      %v324 = vld [vmem:[%s303 + $0x70] sm:$0xff]
      %v325 = vld [vmem:[%s303 + $0x78] sm:$0xff]
      %v326 = vld [vmem:[%s303 + $0x80] sm:$0xff]
      %v327 = vld [vmem:[%s303 + $0x88] sm:$0xff]
      %v328 = vld [vmem:[%s303 + $0x90] sm:$0xff]
      %v329 = vld [vmem:[%s303 + $0x98] sm:$0xff]
      %v330 = vld [vmem:[%s303 + $0xa0] sm:$0xff]
      %v331 = vld [vmem:[%s303 + $0xa8] sm:$0xff]
      %v332 = vld [vmem:[%s303 + $0xb0] sm:$0xff]
      %v333 = vld [vmem:[%s303 + $0xb8] sm:$0xff]
      %v334 = vld [vmem:[%s303 + $0xc0] sm:$0xff]
      %v335 = vld [vmem:[%s303 + $0xc8] sm:$0xff]
      %v336 = vld [vmem:[%s303 + $0xd0] sm:$0xff]
      %v337 = vld [vmem:[%s303 + $0xd8] sm:$0xff]
      %v338 = vld [vmem:[%s303 + $0xe0] sm:$0xff]
      %v339 = vld [vmem:[%s303 + $0xe8] sm:$0xff]
      %v340 = vld [vmem:[%s303 + $0xf0] sm:$0xff]
      %v341 = vld [vmem:[%s303 + $0xf8] sm:$0xff]
      %v342 = vld [vmem:[%s303 + $0x100] sm:$0xff]
      %v343 = vld [vmem:[%s303 + $0x108] sm:$0xff]
      %v344 = vld [vmem:[%s303 + $0x110] sm:$0xff]
      %v345 = vld [vmem:[%s303 + $0x118] sm:$0xff]
      %v346 = vld [vmem:[%s303 + $0x120] sm:$0xff]
      %v347 = vld [vmem:[%s303 + $0x128] sm:$0xff]
      %v348 = vld [vmem:[%s303 + $0x130] sm:$0xff]
      %v349 = vld [vmem:[%s303 + $0x138] sm:$0xff]
      %v350 = vld [vmem:[%s303 + $0x140] sm:$0xff]
      %v351 = vld [vmem:[%s303 + $0x148] sm:$0xff]
      %v352 = vld [vmem:[%s303 + $0x150] sm:$0xff]
      %v353 = vld [vmem:[%s303 + $0x158] sm:$0xff]
      %v354 = vld [vmem:[%s303 + $0x160] sm:$0xff]
      %v355 = vld [vmem:[%s303 + $0x168] sm:$0xff]
      %v356 = vld [vmem:[%s303 + $0x170] sm:$0xff]
      %v357 = vld [vmem:[%s303 + $0x178] sm:$0xff]
      %v358 = vld [vmem:[%s1] sm:$0x7]
      %v359 = vld [vmem:[%s2] sm:$0x1]
      %v361 = vlaneseq
      %v362 = vshrl.u32 %v361, 7
      %v363 = vsub.s32 0, %v362
      %v364 = vrot.slane %v359, %v363
      %vm366 = vcmask 23552
      %v368 = vsel %vm366, %v310, 0
      %v371 = vsel %vm366, %v311, 0
      %v374 = vsel %vm366, %v312, 0
      %v377 = vsel %vm366, %v313, 0
      %v380 = vsel %vm366, %v314, 0
      %v383 = vsel %vm366, %v315, 0
      %v386 = vsel %vm366, %v316, 0
      %v389 = vsel %vm366, %v317, 0
      %v392 = vsel %vm366, %v318, 0
      %v395 = vsel %vm366, %v319, 0
      %v398 = vsel %vm366, %v320, 0
      %v401 = vsel %vm366, %v321, 0
      %v404 = vsel %vm366, %v322, 0
      %v407 = vsel %vm366, %v323, 0
      %v410 = vsel %vm366, %v324, 0
      %v413 = vsel %vm366, %v325, 0
      %v416 = vsel %vm366, %v326, 0
      %v419 = vsel %vm366, %v327, 0
      %v422 = vsel %vm366, %v328, 0
      %v425 = vsel %vm366, %v329, 0
      %v428 = vsel %vm366, %v330, 0
      %v431 = vsel %vm366, %v331, 0
      %v434 = vsel %vm366, %v332, 0
      %v437 = vsel %vm366, %v333, 0
      %v440 = vsel %vm366, %v334, 0
      %v443 = vsel %vm366, %v335, 0
      %v446 = vsel %vm366, %v336, 0
      %v449 = vsel %vm366, %v337, 0
      %v452 = vsel %vm366, %v338, 0
      %v455 = vsel %vm366, %v339, 0
      %v458 = vsel %vm366, %v340, 0
      %v461 = vsel %vm366, %v341, 0
      %v464 = vsel %vm366, %v342, 0
      %v467 = vsel %vm366, %v343, 0
      %v470 = vsel %vm366, %v344, 0
      %v473 = vsel %vm366, %v345, 0
      %v476 = vsel %vm366, %v346, 0
      %v479 = vsel %vm366, %v347, 0
      %v482 = vsel %vm366, %v348, 0
      %v485 = vsel %vm366, %v349, 0
      %v488 = vsel %vm366, %v350, 0
      %v491 = vsel %vm366, %v351, 0
      %v494 = vsel %vm366, %v352, 0
      %v497 = vsel %vm366, %v353, 0
      %v500 = vsel %vm366, %v354, 0
      %v503 = vsel %vm366, %v355, 0
      %v506 = vsel %vm366, %v356, 0
      %v509 = vsel %vm366, %v357, 0
      %vm511 = vcmask 1042432
      %v513 = vsel %vm511, %v358, 0
      %515 = vmatprep.subr.mxu0 0.0
      %516 = vmatpush1.msra.mxu0 %v513
      %517 = vmatprep.subr.mxu0 0.0
      %518 = vmatpush1.msra.mxu0 0.0
      %519 = vmatprep.subr.mxu0 0.0
      %520 = vmatpush1.msra.mxu0 0.0
      %521 = vmatprep.subr.mxu0 0.0
      %522 = vmatpush1.msra.mxu0 0.0
      %523 = vmatprep.subr.mxu0 0.0
      %524 = vmatpush1.msra.mxu0 0.0
      %525 = vmatprep.subr.mxu0 0.0
      %526 = vmatpush1.msra.mxu0 0.0
      %527 = vmatprep.subr.mxu0 0.0
      %528 = vmatpush1.msra.mxu0 0.0
      %529 = vmatprep.subr.mxu0 0.0
      %530 = vmatpush1.msra.mxu0 0.0
      %531 = vmatprep.subr.mxu0 0.0
      %532 = vmatpush1.msra.mxu0 0.0
      %533 = vmatprep.subr.mxu0 0.0
      %534 = vmatpush1.msra.mxu0 0.0
      %535 = vmatprep.subr.mxu0 0.0
      %536 = vmatpush1.msra.mxu0 0.0
      %537 = vmatprep.subr.mxu0 0.0
      %538 = vmatpush1.msra.mxu0 0.0
      %539 = vmatprep.subr.mxu0 0.0
      %540 = vmatpush1.msra.mxu0 0.0
      %541 = vmatprep.subr.mxu0 0.0
      %542 = vmatpush1.msra.mxu0 0.0
      %543 = vmatprep.subr.mxu0 0.0
      %544 = vmatpush1.msra.mxu0 0.0
      %545 = vmatprep.subr.mxu0 0.0
      %546 = vmatpush1.msra.mxu0 0.0
      %547 = vmatprep.subr.mxu0 0.0
      %548 = vmatpush1.msra.mxu0 0.0
      %549 = vmatprep.subr.mxu0 0.0
      %550 = vmatpush1.msra.mxu0 0.0
      %551 = vmatprep.subr.mxu0 0.0
      %552 = vmatpush1.msra.mxu0 0.0
      %553 = vmatprep.subr.mxu0 0.0
      %554 = vmatpush1.msra.mxu0 0.0
      %555 = vmatprep.subr.mxu0 0.0
      %556 = vmatpush1.msra.mxu0 0.0
      %557 = vmatprep.subr.mxu0 0.0
      %558 = vmatpush1.msra.mxu0 0.0
      %559 = vmatprep.subr.mxu0 0.0
      %560 = vmatpush1.msra.mxu0 0.0
      %561 = vmatprep.subr.mxu0 0.0
      %562 = vmatpush1.msra.mxu0 0.0
      %563 = vmatprep.subr.mxu0 0.0
      %564 = vmatpush1.msra.mxu0 0.0
      %565 = vmatprep.subr.mxu0 0.0
      %566 = vmatpush1.msra.mxu0 0.0
      %567 = vmatprep.subr.mxu0 0.0
      %568 = vmatpush1.msra.mxu0 0.0
      %569 = vmatprep.subr.mxu0 0.0
      %570 = vmatpush1.msra.mxu0 0.0
      %571 = vmatprep.subr.mxu0 0.0
      %572 = vmatpush1.msra.mxu0 0.0
      %573 = vmatprep.subr.mxu0 0.0
      %574 = vmatpush1.msra.mxu0 0.0
      %575 = vmatprep.subr.mxu0 0.0
      %576 = vmatpush1.msra.mxu0 0.0
      %577 = vmatprep.subr.mxu0 0.0
      %578 = vmatpush1.msra.mxu0 0.0
      %579 = vmatprep.mubr.f32.mxu0 0.0
      %580 = vmatmul.mubr.f32.gmra.mrb[0].mxu0 %v368
      %v581 = vpop.f32.mrb[0].mxu0
      %v582 = vadd.f32 %v364, %v581
      %v583 = vpop.f32.mrb[0].mxu0
      %584 = vmatprep.mubr.f32.mxu0 0.0
      %585 = vmatmul.mubr.f32.gmra.mrb[0].mxu0 %v371
      %v586 = vpop.f32.mrb[0].mxu0
      %v587 = vadd.f32 %v364, %v586
      %v588 = vpop.f32.mrb[0].mxu0
      %589 = vmatprep.mubr.f32.mxu0 0.0
      %590 = vmatmul.mubr.f32.gmra.mrb[0].mxu0 %v374
      %v591 = vpop.f32.mrb[0].mxu0
      %v592 = vadd.f32 %v364, %v591
      %v593 = vpop.f32.mrb[0].mxu0
      %594 = vmatprep.mubr.f32.mxu0 0.0
      %595 = vmatmul.mubr.f32.gmra.mrb[0].mxu0 %v377
      %v596 = vpop.f32.mrb[0].mxu0
      %v597 = vadd.f32 %v364, %v596
      %v598 = vpop.f32.mrb[0].mxu0
      %599 = vmatprep.mubr.f32.mxu0 0.0
      %600 = vmatmul.mubr.f32.gmra.mrb[0].mxu0 %v380
      %v601 = vpop.f32.mrb[0].mxu0
      %v602 = vadd.f32 %v364, %v601
      %v603 = vpop.f32.mrb[0].mxu0
      %604 = vmatprep.mubr.f32.mxu0 0.0
      %605 = vmatmul.mubr.f32.gmra.mrb[0].mxu0 %v383
      %v606 = vpop.f32.mrb[0].mxu0
      %v607 = vadd.f32 %v364, %v606
      %v608 = vpop.f32.mrb[0].mxu0
      %609 = vmatprep.mubr.f32.mxu0 0.0
      %610 = vmatmul.mubr.f32.gmra.mrb[0].mxu0 %v386
      %v611 = vpop.f32.mrb[0].mxu0
      %v612 = vadd.f32 %v364, %v611
      %v613 = vpop.f32.mrb[0].mxu0
      %614 = vmatprep.mubr.f32.mxu0 0.0
      %615 = vmatmul.mubr.f32.gmra.mrb[0].mxu0 %v389
      %v616 = vpop.f32.mrb[0].mxu0
      %v617 = vadd.f32 %v364, %v616
      %v618 = vpop.f32.mrb[0].mxu0
      %619 = vmatprep.mubr.f32.mxu0 0.0
      %620 = vmatmul.mubr.f32.gmra.mrb[0].mxu0 %v392
      %v621 = vpop.f32.mrb[0].mxu0
      %v622 = vadd.f32 %v364, %v621
      %v623 = vpop.f32.mrb[0].mxu0
      %624 = vmatprep.mubr.f32.mxu0 0.0
      %625 = vmatmul.mubr.f32.gmra.mrb[0].mxu0 %v395
      %v626 = vpop.f32.mrb[0].mxu0
      %v627 = vadd.f32 %v364, %v626
      %v628 = vpop.f32.mrb[0].mxu0
      %629 = vmatprep.mubr.f32.mxu0 0.0
      %630 = vmatmul.mubr.f32.gmra.mrb[0].mxu0 %v398
      %v631 = vpop.f32.mrb[0].mxu0
      %v632 = vadd.f32 %v364, %v631
      %v633 = vpop.f32.mrb[0].mxu0
      %634 = vmatprep.mubr.f32.mxu0 0.0
      %635 = vmatmul.mubr.f32.gmra.mrb[0].mxu0 %v401
      %v636 = vpop.f32.mrb[0].mxu0
      %v637 = vadd.f32 %v364, %v636
      %v638 = vpop.f32.mrb[0].mxu0
      %639 = vmatprep.mubr.f32.mxu0 0.0
      %640 = vmatmul.mubr.f32.gmra.mrb[0].mxu0 %v404
      %v641 = vpop.f32.mrb[0].mxu0
      %v642 = vadd.f32 %v364, %v641
      %v643 = vpop.f32.mrb[0].mxu0
      %644 = vmatprep.mubr.f32.mxu0 0.0
      %645 = vmatmul.mubr.f32.gmra.mrb[0].mxu0 %v407
      %v646 = vpop.f32.mrb[0].mxu0
      %v647 = vadd.f32 %v364, %v646
      %v648 = vpop.f32.mrb[0].mxu0
      %649 = vmatprep.mubr.f32.mxu0 0.0
      %650 = vmatmul.mubr.f32.gmra.mrb[0].mxu0 %v410
      %v651 = vpop.f32.mrb[0].mxu0
      %v652 = vadd.f32 %v364, %v651
      %v653 = vpop.f32.mrb[0].mxu0
      %654 = vmatprep.mubr.f32.mxu0 0.0
      %655 = vmatmul.mubr.f32.gmra.mrb[0].mxu0 %v413
      %v656 = vpop.f32.mrb[0].mxu0
      %v657 = vadd.f32 %v364, %v656
      %v658 = vpop.f32.mrb[0].mxu0
      %659 = vmatprep.mubr.f32.mxu0 0.0
      %660 = vmatmul.mubr.f32.gmra.mrb[0].mxu0 %v416
      %v661 = vpop.f32.mrb[0].mxu0
      %v662 = vadd.f32 %v364, %v661
      %v663 = vpop.f32.mrb[0].mxu0
      %664 = vmatprep.mubr.f32.mxu0 0.0
      %665 = vmatmul.mubr.f32.gmra.mrb[0].mxu0 %v419
      %v666 = vpop.f32.mrb[0].mxu0
      %v667 = vadd.f32 %v364, %v666
      %v668 = vpop.f32.mrb[0].mxu0
      %669 = vmatprep.mubr.f32.mxu0 0.0
      %670 = vmatmul.mubr.f32.gmra.mrb[0].mxu0 %v422
      %v671 = vpop.f32.mrb[0].mxu0
      %v672 = vadd.f32 %v364, %v671
      %v673 = vpop.f32.mrb[0].mxu0
      %674 = vmatprep.mubr.f32.mxu0 0.0
      %675 = vmatmul.mubr.f32.gmra.mrb[0].mxu0 %v425
      %v676 = vpop.f32.mrb[0].mxu0
      %v677 = vadd.f32 %v364, %v676
      %v678 = vpop.f32.mrb[0].mxu0
      %679 = vmatprep.mubr.f32.mxu0 0.0
      %680 = vmatmul.mubr.f32.gmra.mrb[0].mxu0 %v428
      %v681 = vpop.f32.mrb[0].mxu0
      %v682 = vadd.f32 %v364, %v681
      %v683 = vpop.f32.mrb[0].mxu0
      %684 = vmatprep.mubr.f32.mxu0 0.0
      %685 = vmatmul.mubr.f32.gmra.mrb[0].mxu0 %v431
      %v686 = vpop.f32.mrb[0].mxu0
      %v687 = vadd.f32 %v364, %v686
      %v688 = vpop.f32.mrb[0].mxu0
      %689 = vmatprep.mubr.f32.mxu0 0.0
      %690 = vmatmul.mubr.f32.gmra.mrb[0].mxu0 %v434
      %v691 = vpop.f32.mrb[0].mxu0
      %v692 = vadd.f32 %v364, %v691
      %v693 = vpop.f32.mrb[0].mxu0
      %694 = vmatprep.mubr.f32.mxu0 0.0
      %695 = vmatmul.mubr.f32.gmra.mrb[0].mxu0 %v437
      %v696 = vpop.f32.mrb[0].mxu0
      %v697 = vadd.f32 %v364, %v696
      %v698 = vpop.f32.mrb[0].mxu0
      %699 = vmatprep.mubr.f32.mxu0 0.0
      %700 = vmatmul.mubr.f32.gmra.mrb[0].mxu0 %v440
      %v701 = vpop.f32.mrb[0].mxu0
      %v702 = vadd.f32 %v364, %v701
      %v703 = vpop.f32.mrb[0].mxu0
      %704 = vmatprep.mubr.f32.mxu0 0.0
      %705 = vmatmul.mubr.f32.gmra.mrb[0].mxu0 %v443
      %v706 = vpop.f32.mrb[0].mxu0
      %v707 = vadd.f32 %v364, %v706
      %v708 = vpop.f32.mrb[0].mxu0
      %709 = vmatprep.mubr.f32.mxu0 0.0
      %710 = vmatmul.mubr.f32.gmra.mrb[0].mxu0 %v446
      %v711 = vpop.f32.mrb[0].mxu0
      %v712 = vadd.f32 %v364, %v711
      %v713 = vpop.f32.mrb[0].mxu0
      %714 = vmatprep.mubr.f32.mxu0 0.0
      %715 = vmatmul.mubr.f32.gmra.mrb[0].mxu0 %v449
      %v716 = vpop.f32.mrb[0].mxu0
      %v717 = vadd.f32 %v364, %v716
      %v718 = vpop.f32.mrb[0].mxu0
      %719 = vmatprep.mubr.f32.mxu0 0.0
      %720 = vmatmul.mubr.f32.gmra.mrb[0].mxu0 %v452
      %v721 = vpop.f32.mrb[0].mxu0
      %v722 = vadd.f32 %v364, %v721
      %v723 = vpop.f32.mrb[0].mxu0
      %724 = vmatprep.mubr.f32.mxu0 0.0
      %725 = vmatmul.mubr.f32.gmra.mrb[0].mxu0 %v455
      %v726 = vpop.f32.mrb[0].mxu0
      %v727 = vadd.f32 %v364, %v726
      %v728 = vpop.f32.mrb[0].mxu0
      %729 = vmatprep.mubr.f32.mxu0 0.0
      %730 = vmatmul.mubr.f32.gmra.mrb[0].mxu0 %v458
      %v731 = vpop.f32.mrb[0].mxu0
      %v732 = vadd.f32 %v364, %v731
      %v733 = vpop.f32.mrb[0].mxu0
      %734 = vmatprep.mubr.f32.mxu0 0.0
      %735 = vmatmul.mubr.f32.gmra.mrb[0].mxu0 %v461
      %v736 = vpop.f32.mrb[0].mxu0
      %v737 = vadd.f32 %v364, %v736
      %v738 = vpop.f32.mrb[0].mxu0
      %739 = vmatprep.mubr.f32.mxu0 0.0
      %740 = vmatmul.mubr.f32.gmra.mrb[0].mxu0 %v464
      %v741 = vpop.f32.mrb[0].mxu0
      %v742 = vadd.f32 %v364, %v741
      %v743 = vpop.f32.mrb[0].mxu0
      %744 = vmatprep.mubr.f32.mxu0 0.0
      %745 = vmatmul.mubr.f32.gmra.mrb[0].mxu0 %v467
      %v746 = vpop.f32.mrb[0].mxu0
      %v747 = vadd.f32 %v364, %v746
      %v748 = vpop.f32.mrb[0].mxu0
      %749 = vmatprep.mubr.f32.mxu0 0.0
      %750 = vmatmul.mubr.f32.gmra.mrb[0].mxu0 %v470
      %v751 = vpop.f32.mrb[0].mxu0
      %v752 = vadd.f32 %v364, %v751
      %v753 = vpop.f32.mrb[0].mxu0
      %754 = vmatprep.mubr.f32.mxu0 0.0
      %755 = vmatmul.mubr.f32.gmra.mrb[0].mxu0 %v473
      %v756 = vpop.f32.mrb[0].mxu0
      %v757 = vadd.f32 %v364, %v756
      %v758 = vpop.f32.mrb[0].mxu0
      %759 = vmatprep.mubr.f32.mxu0 0.0
      %760 = vmatmul.mubr.f32.gmra.mrb[0].mxu0 %v476
      %v761 = vpop.f32.mrb[0].mxu0
      %v762 = vadd.f32 %v364, %v761
      %v763 = vpop.f32.mrb[0].mxu0
      %764 = vmatprep.mubr.f32.mxu0 0.0
      %765 = vmatmul.mubr.f32.gmra.mrb[0].mxu0 %v479
      %v766 = vpop.f32.mrb[0].mxu0
      %v767 = vadd.f32 %v364, %v766
      %v768 = vpop.f32.mrb[0].mxu0
      %769 = vmatprep.mubr.f32.mxu0 0.0
      %770 = vmatmul.mubr.f32.gmra.mrb[0].mxu0 %v482
      %v771 = vpop.f32.mrb[0].mxu0
      %v772 = vadd.f32 %v364, %v771
      %v773 = vpop.f32.mrb[0].mxu0
      %774 = vmatprep.mubr.f32.mxu0 0.0
      %775 = vmatmul.mubr.f32.gmra.mrb[0].mxu0 %v485
      %v776 = vpop.f32.mrb[0].mxu0
      %v777 = vadd.f32 %v364, %v776
      %v778 = vpop.f32.mrb[0].mxu0
      %779 = vmatprep.mubr.f32.mxu0 0.0
      %780 = vmatmul.mubr.f32.gmra.mrb[0].mxu0 %v488
      %v781 = vpop.f32.mrb[0].mxu0
      %v782 = vadd.f32 %v364, %v781
      %v783 = vpop.f32.mrb[0].mxu0
      %784 = vmatprep.mubr.f32.mxu0 0.0
      %785 = vmatmul.mubr.f32.gmra.mrb[0].mxu0 %v491
      %v786 = vpop.f32.mrb[0].mxu0
      %v787 = vadd.f32 %v364, %v786
      %v788 = vpop.f32.mrb[0].mxu0
      %789 = vmatprep.mubr.f32.mxu0 0.0
      %790 = vmatmul.mubr.f32.gmra.mrb[0].mxu0 %v494
      %v791 = vpop.f32.mrb[0].mxu0
      %v792 = vadd.f32 %v364, %v791
      %v793 = vpop.f32.mrb[0].mxu0
      %794 = vmatprep.mubr.f32.mxu0 0.0
      %795 = vmatmul.mubr.f32.gmra.mrb[0].mxu0 %v497
      %v796 = vpop.f32.mrb[0].mxu0
      %v797 = vadd.f32 %v364, %v796
      %v798 = vpop.f32.mrb[0].mxu0
      %799 = vmatprep.mubr.f32.mxu0 0.0
      %800 = vmatmul.mubr.f32.gmra.mrb[0].mxu0 %v500
      %v801 = vpop.f32.mrb[0].mxu0
      %v802 = vadd.f32 %v364, %v801
      %v803 = vpop.f32.mrb[0].mxu0
      %804 = vmatprep.mubr.f32.mxu0 0.0
      %805 = vmatmul.mubr.f32.gmra.mrb[0].mxu0 %v503
      %v806 = vpop.f32.mrb[0].mxu0
      %v807 = vadd.f32 %v364, %v806
      %v808 = vpop.f32.mrb[0].mxu0
      %809 = vmatprep.mubr.f32.mxu0 0.0
      %810 = vmatmul.mubr.f32.gmra.mrb[0].mxu0 %v506
      %v811 = vpop.f32.mrb[0].mxu0
      %v812 = vadd.f32 %v364, %v811
      %v813 = vpop.f32.mrb[0].mxu0
      %814 = vmatprep.mubr.f32.mxu0 0.0
      %815 = vmatmul.mubr.f32.gmra.mrb[0].mxu0 %v509
      %v816 = vpop.f32.mrb[0].mxu0
      %v817 = vadd.f32 %v364, %v816
      %v818 = vpop.f32.mrb[0].mxu0
      %819 = vdwg.mxu0
      %v820 = vmax.f32 %v582, 0.0
      %v821 = vmax.f32 %v587, 0.0
      %v822 = vmax.f32 %v592, 0.0
      %v823 = vmax.f32 %v597, 0.0
      %v824 = vmax.f32 %v602, 0.0
      %v825 = vmax.f32 %v607, 0.0
      %v826 = vmax.f32 %v612, 0.0
      %v827 = vmax.f32 %v617, 0.0
      %v828 = vmax.f32 %v622, 0.0
      %v829 = vmax.f32 %v627, 0.0
      %v830 = vmax.f32 %v632, 0.0
      %v831 = vmax.f32 %v637, 0.0
      %v832 = vmax.f32 %v642, 0.0
      %v833 = vmax.f32 %v647, 0.0
      %v834 = vmax.f32 %v652, 0.0
      %v835 = vmax.f32 %v657, 0.0
      %v836 = vmax.f32 %v662, 0.0
      %v837 = vmax.f32 %v667, 0.0
      %v838 = vmax.f32 %v672, 0.0
      %v839 = vmax.f32 %v677, 0.0
      %v840 = vmax.f32 %v682, 0.0
      %v841 = vmax.f32 %v687, 0.0
      %v842 = vmax.f32 %v692, 0.0
      %v843 = vmax.f32 %v697, 0.0
      %v844 = vmax.f32 %v702, 0.0
      %v845 = vmax.f32 %v707, 0.0
      %v846 = vmax.f32 %v712, 0.0
      %v847 = vmax.f32 %v717, 0.0
      %v848 = vmax.f32 %v722, 0.0
      %v849 = vmax.f32 %v727, 0.0
      %v850 = vmax.f32 %v732, 0.0
      %v851 = vmax.f32 %v737, 0.0
      %v852 = vmax.f32 %v742, 0.0
      %v853 = vmax.f32 %v747, 0.0
      %v854 = vmax.f32 %v752, 0.0
      %v855 = vmax.f32 %v757, 0.0
      %v856 = vmax.f32 %v762, 0.0
      %v857 = vmax.f32 %v767, 0.0
      %v858 = vmax.f32 %v772, 0.0
      %v859 = vmax.f32 %v777, 0.0
      %v860 = vmax.f32 %v782, 0.0
      %v861 = vmax.f32 %v787, 0.0
      %v862 = vmax.f32 %v792, 0.0
      %v863 = vmax.f32 %v797, 0.0
      %v864 = vmax.f32 %v802, 0.0
      %v865 = vmax.f32 %v807, 0.0
      %v866 = vmax.f32 %v812, 0.0
      %v867 = vmax.f32 %v817, 0.0
      %v868 = vld [vmem:[%s3] sm:$0xff]
      %v869 = vld [vmem:[%s4] sm:$0x1]
      %v871 = vlaneseq
      %v872 = vshrl.u32 %v871, 7
      %v873 = vsub.s32 0, %v872
      %v874 = vrot.slane %v869, %v873
      %vm876 = vcmask 64512
      %v878 = vsel %vm876, %v820, 0
      %v881 = vsel %vm876, %v821, 0
      %v884 = vsel %vm876, %v822, 0
      %v887 = vsel %vm876, %v823, 0
      %v890 = vsel %vm876, %v824, 0
      %v893 = vsel %vm876, %v825, 0
      %v896 = vsel %vm876, %v826, 0
      %v899 = vsel %vm876, %v827, 0
      %v902 = vsel %vm876, %v828, 0
      %v905 = vsel %vm876, %v829, 0
      %v908 = vsel %vm876, %v830, 0
      %v911 = vsel %vm876, %v831, 0
      %v914 = vsel %vm876, %v832, 0
      %v917 = vsel %vm876, %v833, 0
      %v920 = vsel %vm876, %v834, 0
      %v923 = vsel %vm876, %v835, 0
      %v926 = vsel %vm876, %v836, 0
      %v929 = vsel %vm876, %v837, 0
      %v932 = vsel %vm876, %v838, 0
      %v935 = vsel %vm876, %v839, 0
      %v938 = vsel %vm876, %v840, 0
      %v941 = vsel %vm876, %v841, 0
      %v944 = vsel %vm876, %v842, 0
      %v947 = vsel %vm876, %v843, 0
      %v950 = vsel %vm876, %v844, 0
      %v953 = vsel %vm876, %v845, 0
      %v956 = vsel %vm876, %v846, 0
      %v959 = vsel %vm876, %v847, 0
      %v962 = vsel %vm876, %v848, 0
      %v965 = vsel %vm876, %v849, 0
      %v968 = vsel %vm876, %v850, 0
      %v971 = vsel %vm876, %v851, 0
      %v974 = vsel %vm876, %v852, 0
      %v977 = vsel %vm876, %v853, 0
      %v980 = vsel %vm876, %v854, 0
      %v983 = vsel %vm876, %v855, 0
      %v986 = vsel %vm876, %v856, 0
      %v989 = vsel %vm876, %v857, 0
      %v992 = vsel %vm876, %v858, 0
      %v995 = vsel %vm876, %v859, 0
      %v998 = vsel %vm876, %v860, 0
      %v1001 = vsel %vm876, %v861, 0
      %v1004 = vsel %vm876, %v862, 0
      %v1007 = vsel %vm876, %v863, 0
      %v1010 = vsel %vm876, %v864, 0
      %v1013 = vsel %vm876, %v865, 0
      %v1016 = vsel %vm876, %v866, 0
      %v1019 = vsel %vm876, %v867, 0
      %1021 = vmatprep.subr.mxu0 0.0
      %1022 = vmatpush1.msra.mxu0 %v868
      %1023 = vmatprep.subr.mxu0 0.0
      %1024 = vmatpush1.msra.mxu0 0.0
      %1025 = vmatprep.subr.mxu0 0.0
      %1026 = vmatpush1.msra.mxu0 0.0
      %1027 = vmatprep.subr.mxu0 0.0
      %1028 = vmatpush1.msra.mxu0 0.0
      %1029 = vmatprep.subr.mxu0 0.0
      %1030 = vmatpush1.msra.mxu0 0.0
      %1031 = vmatprep.subr.mxu0 0.0
      %1032 = vmatpush1.msra.mxu0 0.0
      %1033 = vmatprep.subr.mxu0 0.0
      %1034 = vmatpush1.msra.mxu0 0.0
      %1035 = vmatprep.subr.mxu0 0.0
      %1036 = vmatpush1.msra.mxu0 0.0
      %1037 = vmatprep.subr.mxu0 0.0
      %1038 = vmatpush1.msra.mxu0 0.0
      %1039 = vmatprep.subr.mxu0 0.0
      %1040 = vmatpush1.msra.mxu0 0.0
      %1041 = vmatprep.subr.mxu0 0.0
      %1042 = vmatpush1.msra.mxu0 0.0
      %1043 = vmatprep.subr.mxu0 0.0
      %1044 = vmatpush1.msra.mxu0 0.0
      %1045 = vmatprep.subr.mxu0 0.0
      %1046 = vmatpush1.msra.mxu0 0.0
      %1047 = vmatprep.subr.mxu0 0.0
      %1048 = vmatpush1.msra.mxu0 0.0
      %1049 = vmatprep.subr.mxu0 0.0
      %1050 = vmatpush1.msra.mxu0 0.0
      %1051 = vmatprep.subr.mxu0 0.0
      %1052 = vmatpush1.msra.mxu0 0.0
      %1053 = vmatprep.subr.mxu0 0.0
      %1054 = vmatpush1.msra.mxu0 0.0
      %1055 = vmatprep.subr.mxu0 0.0
      %1056 = vmatpush1.msra.mxu0 0.0
      %1057 = vmatprep.subr.mxu0 0.0
      %1058 = vmatpush1.msra.mxu0 0.0
      %1059 = vmatprep.subr.mxu0 0.0
      %1060 = vmatpush1.msra.mxu0 0.0
      %1061 = vmatprep.subr.mxu0 0.0
      %1062 = vmatpush1.msra.mxu0 0.0
      %1063 = vmatprep.subr.mxu0 0.0
      %1064 = vmatpush1.msra.mxu0 0.0
      %1065 = vmatprep.subr.mxu0 0.0
      %1066 = vmatpush1.msra.mxu0 0.0
      %1067 = vmatprep.subr.mxu0 0.0
      %1068 = vmatpush1.msra.mxu0 0.0
      %1069 = vmatprep.subr.mxu0 0.0
      %1070 = vmatpush1.msra.mxu0 0.0
      %1071 = vmatprep.subr.mxu0 0.0
      %1072 = vmatpush1.msra.mxu0 0.0
      %1073 = vmatprep.subr.mxu0 0.0
      %1074 = vmatpush1.msra.mxu0 0.0
      %1075 = vmatprep.subr.mxu0 0.0
      %1076 = vmatpush1.msra.mxu0 0.0
      %1077 = vmatprep.subr.mxu0 0.0
      %1078 = vmatpush1.msra.mxu0 0.0
      %1079 = vmatprep.subr.mxu0 0.0
      %1080 = vmatpush1.msra.mxu0 0.0
      %1081 = vmatprep.subr.mxu0 0.0
      %1082 = vmatpush1.msra.mxu0 0.0
      %1083 = vmatprep.subr.mxu0 0.0
      %1084 = vmatpush1.msra.mxu0 0.0
      %1085 = vmatprep.mubr.f32.mxu0 0.0
      %1086 = vmatmul.mubr.f32.gmra.mrb[0].mxu0 %v878
      %v1087 = vpop.f32.mrb[0].mxu0
      %v1088 = vadd.f32 %v874, %v1087
      %v1089 = vpop.f32.mrb[0].mxu0
      %1090 = vmatprep.mubr.f32.mxu0 0.0
      %1091 = vmatmul.mubr.f32.gmra.mrb[0].mxu0 %v881
      %v1092 = vpop.f32.mrb[0].mxu0
      %v1093 = vadd.f32 %v874, %v1092
      %v1094 = vpop.f32.mrb[0].mxu0
      %1095 = vmatprep.mubr.f32.mxu0 0.0
      %1096 = vmatmul.mubr.f32.gmra.mrb[0].mxu0 %v884
      %v1097 = vpop.f32.mrb[0].mxu0
      %v1098 = vadd.f32 %v874, %v1097
      %v1099 = vpop.f32.mrb[0].mxu0
      %1100 = vmatprep.mubr.f32.mxu0 0.0
      %1101 = vmatmul.mubr.f32.gmra.mrb[0].mxu0 %v887
      %v1102 = vpop.f32.mrb[0].mxu0
      %v1103 = vadd.f32 %v874, %v1102
      %v1104 = vpop.f32.mrb[0].mxu0
      %1105 = vmatprep.mubr.f32.mxu0 0.0
      %1106 = vmatmul.mubr.f32.gmra.mrb[0].mxu0 %v890
      %v1107 = vpop.f32.mrb[0].mxu0
      %v1108 = vadd.f32 %v874, %v1107
      %v1109 = vpop.f32.mrb[0].mxu0
      %1110 = vmatprep.mubr.f32.mxu0 0.0
      %1111 = vmatmul.mubr.f32.gmra.mrb[0].mxu0 %v893
      %v1112 = vpop.f32.mrb[0].mxu0
      %v1113 = vadd.f32 %v874, %v1112
      %v1114 = vpop.f32.mrb[0].mxu0
      %1115 = vmatprep.mubr.f32.mxu0 0.0
      %1116 = vmatmul.mubr.f32.gmra.mrb[0].mxu0 %v896
      %v1117 = vpop.f32.mrb[0].mxu0
      %v1118 = vadd.f32 %v874, %v1117
      %v1119 = vpop.f32.mrb[0].mxu0
      %1120 = vmatprep.mubr.f32.mxu0 0.0
      %1121 = vmatmul.mubr.f32.gmra.mrb[0].mxu0 %v899
      %v1122 = vpop.f32.mrb[0].mxu0
      %v1123 = vadd.f32 %v874, %v1122
      %v1124 = vpop.f32.mrb[0].mxu0
      %1125 = vmatprep.mubr.f32.mxu0 0.0
      %1126 = vmatmul.mubr.f32.gmra.mrb[0].mxu0 %v902
      %v1127 = vpop.f32.mrb[0].mxu0
      %v1128 = vadd.f32 %v874, %v1127
      %v1129 = vpop.f32.mrb[0].mxu0
      %1130 = vmatprep.mubr.f32.mxu0 0.0
      %1131 = vmatmul.mubr.f32.gmra.mrb[0].mxu0 %v905
      %v1132 = vpop.f32.mrb[0].mxu0
      %v1133 = vadd.f32 %v874, %v1132
      %v1134 = vpop.f32.mrb[0].mxu0
      %1135 = vmatprep.mubr.f32.mxu0 0.0
      %1136 = vmatmul.mubr.f32.gmra.mrb[0].mxu0 %v908
      %v1137 = vpop.f32.mrb[0].mxu0
      %v1138 = vadd.f32 %v874, %v1137
      %v1139 = vpop.f32.mrb[0].mxu0
      %1140 = vmatprep.mubr.f32.mxu0 0.0
      %1141 = vmatmul.mubr.f32.gmra.mrb[0].mxu0 %v911
      %v1142 = vpop.f32.mrb[0].mxu0
      %v1143 = vadd.f32 %v874, %v1142
      %v1144 = vpop.f32.mrb[0].mxu0
      %1145 = vmatprep.mubr.f32.mxu0 0.0
      %1146 = vmatmul.mubr.f32.gmra.mrb[0].mxu0 %v914
      %v1147 = vpop.f32.mrb[0].mxu0
      %v1148 = vadd.f32 %v874, %v1147
      %v1149 = vpop.f32.mrb[0].mxu0
      %1150 = vmatprep.mubr.f32.mxu0 0.0
      %1151 = vmatmul.mubr.f32.gmra.mrb[0].mxu0 %v917
      %v1152 = vpop.f32.mrb[0].mxu0
      %v1153 = vadd.f32 %v874, %v1152
      %v1154 = vpop.f32.mrb[0].mxu0
      %1155 = vmatprep.mubr.f32.mxu0 0.0
      %1156 = vmatmul.mubr.f32.gmra.mrb[0].mxu0 %v920
      %v1157 = vpop.f32.mrb[0].mxu0
      %v1158 = vadd.f32 %v874, %v1157
      %v1159 = vpop.f32.mrb[0].mxu0
      %1160 = vmatprep.mubr.f32.mxu0 0.0
      %1161 = vmatmul.mubr.f32.gmra.mrb[0].mxu0 %v923
      %v1162 = vpop.f32.mrb[0].mxu0
      %v1163 = vadd.f32 %v874, %v1162
      %v1164 = vpop.f32.mrb[0].mxu0
      %1165 = vmatprep.mubr.f32.mxu0 0.0
      %1166 = vmatmul.mubr.f32.gmra.mrb[0].mxu0 %v926
      %v1167 = vpop.f32.mrb[0].mxu0
      %v1168 = vadd.f32 %v874, %v1167
      %v1169 = vpop.f32.mrb[0].mxu0
      %1170 = vmatprep.mubr.f32.mxu0 0.0
      %1171 = vmatmul.mubr.f32.gmra.mrb[0].mxu0 %v929
      %v1172 = vpop.f32.mrb[0].mxu0
      %v1173 = vadd.f32 %v874, %v1172
      %v1174 = vpop.f32.mrb[0].mxu0
      %1175 = vmatprep.mubr.f32.mxu0 0.0
      %1176 = vmatmul.mubr.f32.gmra.mrb[0].mxu0 %v932
      %v1177 = vpop.f32.mrb[0].mxu0
      %v1178 = vadd.f32 %v874, %v1177
      %v1179 = vpop.f32.mrb[0].mxu0
      %1180 = vmatprep.mubr.f32.mxu0 0.0
      %1181 = vmatmul.mubr.f32.gmra.mrb[0].mxu0 %v935
      %v1182 = vpop.f32.mrb[0].mxu0
      %v1183 = vadd.f32 %v874, %v1182
      %v1184 = vpop.f32.mrb[0].mxu0
      %1185 = vmatprep.mubr.f32.mxu0 0.0
      %1186 = vmatmul.mubr.f32.gmra.mrb[0].mxu0 %v938
      %v1187 = vpop.f32.mrb[0].mxu0
      %v1188 = vadd.f32 %v874, %v1187
      %v1189 = vpop.f32.mrb[0].mxu0
      %1190 = vmatprep.mubr.f32.mxu0 0.0
      %1191 = vmatmul.mubr.f32.gmra.mrb[0].mxu0 %v941
      %v1192 = vpop.f32.mrb[0].mxu0
      %v1193 = vadd.f32 %v874, %v1192
      %v1194 = vpop.f32.mrb[0].mxu0
      %1195 = vmatprep.mubr.f32.mxu0 0.0
      %1196 = vmatmul.mubr.f32.gmra.mrb[0].mxu0 %v944
      %v1197 = vpop.f32.mrb[0].mxu0
      %v1198 = vadd.f32 %v874, %v1197
      %v1199 = vpop.f32.mrb[0].mxu0
      %1200 = vmatprep.mubr.f32.mxu0 0.0
      %1201 = vmatmul.mubr.f32.gmra.mrb[0].mxu0 %v947
      %v1202 = vpop.f32.mrb[0].mxu0
      %v1203 = vadd.f32 %v874, %v1202
      %v1204 = vpop.f32.mrb[0].mxu0
      %1205 = vmatprep.mubr.f32.mxu0 0.0
      %1206 = vmatmul.mubr.f32.gmra.mrb[0].mxu0 %v950
      %v1207 = vpop.f32.mrb[0].mxu0
      %v1208 = vadd.f32 %v874, %v1207
      %v1209 = vpop.f32.mrb[0].mxu0
      %1210 = vmatprep.mubr.f32.mxu0 0.0
      %1211 = vmatmul.mubr.f32.gmra.mrb[0].mxu0 %v953
      %v1212 = vpop.f32.mrb[0].mxu0
      %v1213 = vadd.f32 %v874, %v1212
      %v1214 = vpop.f32.mrb[0].mxu0
      %1215 = vmatprep.mubr.f32.mxu0 0.0
      %1216 = vmatmul.mubr.f32.gmra.mrb[0].mxu0 %v956
      %v1217 = vpop.f32.mrb[0].mxu0
      %v1218 = vadd.f32 %v874, %v1217
      %v1219 = vpop.f32.mrb[0].mxu0
      %1220 = vmatprep.mubr.f32.mxu0 0.0
      %1221 = vmatmul.mubr.f32.gmra.mrb[0].mxu0 %v959
      %v1222 = vpop.f32.mrb[0].mxu0
      %v1223 = vadd.f32 %v874, %v1222
      %v1224 = vpop.f32.mrb[0].mxu0
      %1225 = vmatprep.mubr.f32.mxu0 0.0
      %1226 = vmatmul.mubr.f32.gmra.mrb[0].mxu0 %v962
      %v1227 = vpop.f32.mrb[0].mxu0
      %v1228 = vadd.f32 %v874, %v1227
      %v1229 = vpop.f32.mrb[0].mxu0
      %1230 = vmatprep.mubr.f32.mxu0 0.0
      %1231 = vmatmul.mubr.f32.gmra.mrb[0].mxu0 %v965
      %v1232 = vpop.f32.mrb[0].mxu0
      %v1233 = vadd.f32 %v874, %v1232
      %v1234 = vpop.f32.mrb[0].mxu0
      %1235 = vmatprep.mubr.f32.mxu0 0.0
      %1236 = vmatmul.mubr.f32.gmra.mrb[0].mxu0 %v968
      %v1237 = vpop.f32.mrb[0].mxu0
      %v1238 = vadd.f32 %v874, %v1237
      %v1239 = vpop.f32.mrb[0].mxu0
      %1240 = vmatprep.mubr.f32.mxu0 0.0
      %1241 = vmatmul.mubr.f32.gmra.mrb[0].mxu0 %v971
      %v1242 = vpop.f32.mrb[0].mxu0
      %v1243 = vadd.f32 %v874, %v1242
      %v1244 = vpop.f32.mrb[0].mxu0
      %1245 = vmatprep.mubr.f32.mxu0 0.0
      %1246 = vmatmul.mubr.f32.gmra.mrb[0].mxu0 %v974
      %v1247 = vpop.f32.mrb[0].mxu0
      %v1248 = vadd.f32 %v874, %v1247
      %v1249 = vpop.f32.mrb[0].mxu0
      %1250 = vmatprep.mubr.f32.mxu0 0.0
      %1251 = vmatmul.mubr.f32.gmra.mrb[0].mxu0 %v977
      %v1252 = vpop.f32.mrb[0].mxu0
      %v1253 = vadd.f32 %v874, %v1252
      %v1254 = vpop.f32.mrb[0].mxu0
      %1255 = vmatprep.mubr.f32.mxu0 0.0
      %1256 = vmatmul.mubr.f32.gmra.mrb[0].mxu0 %v980
      %v1257 = vpop.f32.mrb[0].mxu0
      %v1258 = vadd.f32 %v874, %v1257
      %v1259 = vpop.f32.mrb[0].mxu0
      %1260 = vmatprep.mubr.f32.mxu0 0.0
      %1261 = vmatmul.mubr.f32.gmra.mrb[0].mxu0 %v983
      %v1262 = vpop.f32.mrb[0].mxu0
      %v1263 = vadd.f32 %v874, %v1262
      %v1264 = vpop.f32.mrb[0].mxu0
      %1265 = vmatprep.mubr.f32.mxu0 0.0
      %1266 = vmatmul.mubr.f32.gmra.mrb[0].mxu0 %v986
      %v1267 = vpop.f32.mrb[0].mxu0
      %v1268 = vadd.f32 %v874, %v1267
      %v1269 = vpop.f32.mrb[0].mxu0
      %1270 = vmatprep.mubr.f32.mxu0 0.0
      %1271 = vmatmul.mubr.f32.gmra.mrb[0].mxu0 %v989
      %v1272 = vpop.f32.mrb[0].mxu0
      %v1273 = vadd.f32 %v874, %v1272
      %v1274 = vpop.f32.mrb[0].mxu0
      %1275 = vmatprep.mubr.f32.mxu0 0.0
      %1276 = vmatmul.mubr.f32.gmra.mrb[0].mxu0 %v992
      %v1277 = vpop.f32.mrb[0].mxu0
      %v1278 = vadd.f32 %v874, %v1277
      %v1279 = vpop.f32.mrb[0].mxu0
      %1280 = vmatprep.mubr.f32.mxu0 0.0
      %1281 = vmatmul.mubr.f32.gmra.mrb[0].mxu0 %v995
      %v1282 = vpop.f32.mrb[0].mxu0
      %v1283 = vadd.f32 %v874, %v1282
      %v1284 = vpop.f32.mrb[0].mxu0
      %1285 = vmatprep.mubr.f32.mxu0 0.0
      %1286 = vmatmul.mubr.f32.gmra.mrb[0].mxu0 %v998
      %v1287 = vpop.f32.mrb[0].mxu0
      %v1288 = vadd.f32 %v874, %v1287
      %v1289 = vpop.f32.mrb[0].mxu0
      %1290 = vmatprep.mubr.f32.mxu0 0.0
      %1291 = vmatmul.mubr.f32.gmra.mrb[0].mxu0 %v1001
      %v1292 = vpop.f32.mrb[0].mxu0
      %v1293 = vadd.f32 %v874, %v1292
      %v1294 = vpop.f32.mrb[0].mxu0
      %1295 = vmatprep.mubr.f32.mxu0 0.0
      %1296 = vmatmul.mubr.f32.gmra.mrb[0].mxu0 %v1004
      %v1297 = vpop.f32.mrb[0].mxu0
      %v1298 = vadd.f32 %v874, %v1297
      %v1299 = vpop.f32.mrb[0].mxu0
      %1300 = vmatprep.mubr.f32.mxu0 0.0
      %1301 = vmatmul.mubr.f32.gmra.mrb[0].mxu0 %v1007
      %v1302 = vpop.f32.mrb[0].mxu0
      %v1303 = vadd.f32 %v874, %v1302
      %v1304 = vpop.f32.mrb[0].mxu0
      %1305 = vmatprep.mubr.f32.mxu0 0.0
      %1306 = vmatmul.mubr.f32.gmra.mrb[0].mxu0 %v1010
      %v1307 = vpop.f32.mrb[0].mxu0
      %v1308 = vadd.f32 %v874, %v1307
      %v1309 = vpop.f32.mrb[0].mxu0
      %1310 = vmatprep.mubr.f32.mxu0 0.0
      %1311 = vmatmul.mubr.f32.gmra.mrb[0].mxu0 %v1013
      %v1312 = vpop.f32.mrb[0].mxu0
      %v1313 = vadd.f32 %v874, %v1312
      %v1314 = vpop.f32.mrb[0].mxu0
      %1315 = vmatprep.mubr.f32.mxu0 0.0
      %1316 = vmatmul.mubr.f32.gmra.mrb[0].mxu0 %v1016
      %v1317 = vpop.f32.mrb[0].mxu0
      %v1318 = vadd.f32 %v874, %v1317
      %v1319 = vpop.f32.mrb[0].mxu0
      %1320 = vmatprep.mubr.f32.mxu0 0.0
      %1321 = vmatmul.mubr.f32.gmra.mrb[0].mxu0 %v1019
      %v1322 = vpop.f32.mrb[0].mxu0
      %v1323 = vadd.f32 %v874, %v1322
      %v1324 = vpop.f32.mrb[0].mxu0
      %1325 = vdwg.mxu0
      %v1326 = vmax.f32 %v1088, 0.0
      %v1327 = vmax.f32 %v1093, 0.0
      %v1328 = vmax.f32 %v1098, 0.0
      %v1329 = vmax.f32 %v1103, 0.0
      %v1330 = vmax.f32 %v1108, 0.0
      %v1331 = vmax.f32 %v1113, 0.0
      %v1332 = vmax.f32 %v1118, 0.0
      %v1333 = vmax.f32 %v1123, 0.0
      %v1334 = vmax.f32 %v1128, 0.0
      %v1335 = vmax.f32 %v1133, 0.0
      %v1336 = vmax.f32 %v1138, 0.0
      %v1337 = vmax.f32 %v1143, 0.0
      %v1338 = vmax.f32 %v1148, 0.0
      %v1339 = vmax.f32 %v1153, 0.0
      %v1340 = vmax.f32 %v1158, 0.0
      %v1341 = vmax.f32 %v1163, 0.0
      %v1342 = vmax.f32 %v1168, 0.0
      %v1343 = vmax.f32 %v1173, 0.0
      %v1344 = vmax.f32 %v1178, 0.0
      %v1345 = vmax.f32 %v1183, 0.0
      %v1346 = vmax.f32 %v1188, 0.0
      %v1347 = vmax.f32 %v1193, 0.0
      %v1348 = vmax.f32 %v1198, 0.0
      %v1349 = vmax.f32 %v1203, 0.0
      %v1350 = vmax.f32 %v1208, 0.0
      %v1351 = vmax.f32 %v1213, 0.0
      %v1352 = vmax.f32 %v1218, 0.0
      %v1353 = vmax.f32 %v1223, 0.0
      %v1354 = vmax.f32 %v1228, 0.0
      %v1355 = vmax.f32 %v1233, 0.0
      %v1356 = vmax.f32 %v1238, 0.0
      %v1357 = vmax.f32 %v1243, 0.0
      %v1358 = vmax.f32 %v1248, 0.0
      %v1359 = vmax.f32 %v1253, 0.0
      %v1360 = vmax.f32 %v1258, 0.0
      %v1361 = vmax.f32 %v1263, 0.0
      %v1362 = vmax.f32 %v1268, 0.0
      %v1363 = vmax.f32 %v1273, 0.0
      %v1364 = vmax.f32 %v1278, 0.0
      %v1365 = vmax.f32 %v1283, 0.0
      %v1366 = vmax.f32 %v1288, 0.0
      %v1367 = vmax.f32 %v1293, 0.0
      %v1368 = vmax.f32 %v1298, 0.0
      %v1369 = vmax.f32 %v1303, 0.0
      %v1370 = vmax.f32 %v1308, 0.0
      %v1371 = vmax.f32 %v1313, 0.0
      %v1372 = vmax.f32 %v1318, 0.0
      %v1373 = vmax.f32 %v1323, 0.0
      %v1374 = vsel %vm876, %v1326, -inf
      %v1375 = vrot.slane %v1374, 4
      %v1376 = vmax.f32 %v1374, %v1375
      %v1377 = vrot.slane %v1376, 2
      %v1378 = vmax.f32 %v1376, %v1377
      %v1379 = vrot.slane %v1378, 1
      %v1380 = vmax.f32 %v1378, %v1379
      %v1381 = vsel %vm876, %v1327, -inf
      %v1382 = vrot.slane %v1381, 4
      %v1383 = vmax.f32 %v1381, %v1382
      %v1384 = vrot.slane %v1383, 2
      %v1385 = vmax.f32 %v1383, %v1384
      %v1386 = vrot.slane %v1385, 1
      %v1387 = vmax.f32 %v1385, %v1386
      %v1388 = vsel %vm876, %v1328, -inf
      %v1389 = vrot.slane %v1388, 4
      %v1390 = vmax.f32 %v1388, %v1389
      %v1391 = vrot.slane %v1390, 2
      %v1392 = vmax.f32 %v1390, %v1391
      %v1393 = vrot.slane %v1392, 1
      %v1394 = vmax.f32 %v1392, %v1393
      %v1395 = vsel %vm876, %v1329, -inf
      %v1396 = vrot.slane %v1395, 4
      %v1397 = vmax.f32 %v1395, %v1396
      %v1398 = vrot.slane %v1397, 2
      %v1399 = vmax.f32 %v1397, %v1398
      %v1400 = vrot.slane %v1399, 1
      %v1401 = vmax.f32 %v1399, %v1400
      %v1402 = vsel %vm876, %v1330, -inf
      %v1403 = vrot.slane %v1402, 4
      %v1404 = vmax.f32 %v1402, %v1403
      %v1405 = vrot.slane %v1404, 2
      %v1406 = vmax.f32 %v1404, %v1405
      %v1407 = vrot.slane %v1406, 1
      %v1408 = vmax.f32 %v1406, %v1407
      %v1409 = vsel %vm876, %v1331, -inf
      %v1410 = vrot.slane %v1409, 4
      %v1411 = vmax.f32 %v1409, %v1410
      %v1412 = vrot.slane %v1411, 2
      %v1413 = vmax.f32 %v1411, %v1412
      %v1414 = vrot.slane %v1413, 1
      %v1415 = vmax.f32 %v1413, %v1414
      %v1416 = vsel %vm876, %v1332, -inf
      %v1417 = vrot.slane %v1416, 4
      %v1418 = vmax.f32 %v1416, %v1417
      %v1419 = vrot.slane %v1418, 2
      %v1420 = vmax.f32 %v1418, %v1419
      %v1421 = vrot.slane %v1420, 1
      %v1422 = vmax.f32 %v1420, %v1421
      %v1423 = vsel %vm876, %v1333, -inf
      %v1424 = vrot.slane %v1423, 4
      %v1425 = vmax.f32 %v1423, %v1424
      %v1426 = vrot.slane %v1425, 2
      %v1427 = vmax.f32 %v1425, %v1426
      %v1428 = vrot.slane %v1427, 1
      %v1429 = vmax.f32 %v1427, %v1428
      %v1430 = vsel %vm876, %v1334, -inf
      %v1431 = vrot.slane %v1430, 4
      %v1432 = vmax.f32 %v1430, %v1431
      %v1433 = vrot.slane %v1432, 2
      %v1434 = vmax.f32 %v1432, %v1433
      %v1435 = vrot.slane %v1434, 1
      %v1436 = vmax.f32 %v1434, %v1435
      %v1437 = vsel %vm876, %v1335, -inf
      %v1438 = vrot.slane %v1437, 4
      %v1439 = vmax.f32 %v1437, %v1438
      %v1440 = vrot.slane %v1439, 2
      %v1441 = vmax.f32 %v1439, %v1440
      %v1442 = vrot.slane %v1441, 1
      %v1443 = vmax.f32 %v1441, %v1442
      %v1444 = vsel %vm876, %v1336, -inf
      %v1445 = vrot.slane %v1444, 4
      %v1446 = vmax.f32 %v1444, %v1445
      %v1447 = vrot.slane %v1446, 2
      %v1448 = vmax.f32 %v1446, %v1447
      %v1449 = vrot.slane %v1448, 1
      %v1450 = vmax.f32 %v1448, %v1449
      %v1451 = vsel %vm876, %v1337, -inf
      %v1452 = vrot.slane %v1451, 4
      %v1453 = vmax.f32 %v1451, %v1452
      %v1454 = vrot.slane %v1453, 2
      %v1455 = vmax.f32 %v1453, %v1454
      %v1456 = vrot.slane %v1455, 1
      %v1457 = vmax.f32 %v1455, %v1456
      %v1458 = vsel %vm876, %v1338, -inf
      %v1459 = vrot.slane %v1458, 4
      %v1460 = vmax.f32 %v1458, %v1459
      %v1461 = vrot.slane %v1460, 2
      %v1462 = vmax.f32 %v1460, %v1461
      %v1463 = vrot.slane %v1462, 1
      %v1464 = vmax.f32 %v1462, %v1463
      %v1465 = vsel %vm876, %v1339, -inf
      %v1466 = vrot.slane %v1465, 4
      %v1467 = vmax.f32 %v1465, %v1466
      %v1468 = vrot.slane %v1467, 2
      %v1469 = vmax.f32 %v1467, %v1468
      %v1470 = vrot.slane %v1469, 1
      %v1471 = vmax.f32 %v1469, %v1470
      %v1472 = vsel %vm876, %v1340, -inf
      %v1473 = vrot.slane %v1472, 4
      %v1474 = vmax.f32 %v1472, %v1473
      %v1475 = vrot.slane %v1474, 2
      %v1476 = vmax.f32 %v1474, %v1475
      %v1477 = vrot.slane %v1476, 1
      %v1478 = vmax.f32 %v1476, %v1477
      %v1479 = vsel %vm876, %v1341, -inf
      %v1480 = vrot.slane %v1479, 4
      %v1481 = vmax.f32 %v1479, %v1480
      %v1482 = vrot.slane %v1481, 2
      %v1483 = vmax.f32 %v1481, %v1482
      %v1484 = vrot.slane %v1483, 1
      %v1485 = vmax.f32 %v1483, %v1484
      %v1486 = vsel %vm876, %v1342, -inf
      %v1487 = vrot.slane %v1486, 4
      %v1488 = vmax.f32 %v1486, %v1487
      %v1489 = vrot.slane %v1488, 2
      %v1490 = vmax.f32 %v1488, %v1489
      %v1491 = vrot.slane %v1490, 1
      %v1492 = vmax.f32 %v1490, %v1491
      %v1493 = vsel %vm876, %v1343, -inf
      %v1494 = vrot.slane %v1493, 4
      %v1495 = vmax.f32 %v1493, %v1494
      %v1496 = vrot.slane %v1495, 2
      %v1497 = vmax.f32 %v1495, %v1496
      %v1498 = vrot.slane %v1497, 1
      %v1499 = vmax.f32 %v1497, %v1498
      %v1500 = vsel %vm876, %v1344, -inf
      %v1501 = vrot.slane %v1500, 4
      %v1502 = vmax.f32 %v1500, %v1501
      %v1503 = vrot.slane %v1502, 2
      %v1504 = vmax.f32 %v1502, %v1503
      %v1505 = vrot.slane %v1504, 1
      %v1506 = vmax.f32 %v1504, %v1505
      %v1507 = vsel %vm876, %v1345, -inf
      %v1508 = vrot.slane %v1507, 4
      %v1509 = vmax.f32 %v1507, %v1508
      %v1510 = vrot.slane %v1509, 2
      %v1511 = vmax.f32 %v1509, %v1510
      %v1512 = vrot.slane %v1511, 1
      %v1513 = vmax.f32 %v1511, %v1512
      %v1514 = vsel %vm876, %v1346, -inf
      %v1515 = vrot.slane %v1514, 4
      %v1516 = vmax.f32 %v1514, %v1515
      %v1517 = vrot.slane %v1516, 2
      %v1518 = vmax.f32 %v1516, %v1517
      %v1519 = vrot.slane %v1518, 1
      %v1520 = vmax.f32 %v1518, %v1519
      %v1521 = vsel %vm876, %v1347, -inf
      %v1522 = vrot.slane %v1521, 4
      %v1523 = vmax.f32 %v1521, %v1522
      %v1524 = vrot.slane %v1523, 2
      %v1525 = vmax.f32 %v1523, %v1524
      %v1526 = vrot.slane %v1525, 1
      %v1527 = vmax.f32 %v1525, %v1526
      %v1528 = vsel %vm876, %v1348, -inf
      %v1529 = vrot.slane %v1528, 4
      %v1530 = vmax.f32 %v1528, %v1529
      %v1531 = vrot.slane %v1530, 2
      %v1532 = vmax.f32 %v1530, %v1531
      %v1533 = vrot.slane %v1532, 1
      %v1534 = vmax.f32 %v1532, %v1533
      %v1535 = vsel %vm876, %v1349, -inf
      %v1536 = vrot.slane %v1535, 4
      %v1537 = vmax.f32 %v1535, %v1536
      %v1538 = vrot.slane %v1537, 2
      %v1539 = vmax.f32 %v1537, %v1538
      %v1540 = vrot.slane %v1539, 1
      %v1541 = vmax.f32 %v1539, %v1540
      %v1542 = vsel %vm876, %v1350, -inf
      %v1543 = vrot.slane %v1542, 4
      %v1544 = vmax.f32 %v1542, %v1543
      %v1545 = vrot.slane %v1544, 2
      %v1546 = vmax.f32 %v1544, %v1545
      %v1547 = vrot.slane %v1546, 1
      %v1548 = vmax.f32 %v1546, %v1547
      %v1549 = vsel %vm876, %v1351, -inf
      %v1550 = vrot.slane %v1549, 4
      %v1551 = vmax.f32 %v1549, %v1550
      %v1552 = vrot.slane %v1551, 2
      %v1553 = vmax.f32 %v1551, %v1552
      %v1554 = vrot.slane %v1553, 1
      %v1555 = vmax.f32 %v1553, %v1554
      %v1556 = vsel %vm876, %v1352, -inf
      %v1557 = vrot.slane %v1556, 4
      %v1558 = vmax.f32 %v1556, %v1557
      %v1559 = vrot.slane %v1558, 2
      %v1560 = vmax.f32 %v1558, %v1559
      %v1561 = vrot.slane %v1560, 1
      %v1562 = vmax.f32 %v1560, %v1561
      %v1563 = vsel %vm876, %v1353, -inf
      %v1564 = vrot.slane %v1563, 4
      %v1565 = vmax.f32 %v1563, %v1564
      %v1566 = vrot.slane %v1565, 2
      %v1567 = vmax.f32 %v1565, %v1566
      %v1568 = vrot.slane %v1567, 1
      %v1569 = vmax.f32 %v1567, %v1568
      %v1570 = vsel %vm876, %v1354, -inf
      %v1571 = vrot.slane %v1570, 4
      %v1572 = vmax.f32 %v1570, %v1571
      %v1573 = vrot.slane %v1572, 2
      %v1574 = vmax.f32 %v1572, %v1573
      %v1575 = vrot.slane %v1574, 1
      %v1576 = vmax.f32 %v1574, %v1575
      %v1577 = vsel %vm876, %v1355, -inf
      %v1578 = vrot.slane %v1577, 4
      %v1579 = vmax.f32 %v1577, %v1578
      %v1580 = vrot.slane %v1579, 2
      %v1581 = vmax.f32 %v1579, %v1580
      %v1582 = vrot.slane %v1581, 1
      %v1583 = vmax.f32 %v1581, %v1582
      %v1584 = vsel %vm876, %v1356, -inf
      %v1585 = vrot.slane %v1584, 4
      %v1586 = vmax.f32 %v1584, %v1585
      %v1587 = vrot.slane %v1586, 2
      %v1588 = vmax.f32 %v1586, %v1587
      %v1589 = vrot.slane %v1588, 1
      %v1590 = vmax.f32 %v1588, %v1589
      %v1591 = vsel %vm876, %v1357, -inf
      %v1592 = vrot.slane %v1591, 4
      %v1593 = vmax.f32 %v1591, %v1592
      %v1594 = vrot.slane %v1593, 2
      %v1595 = vmax.f32 %v1593, %v1594
      %v1596 = vrot.slane %v1595, 1
      %v1597 = vmax.f32 %v1595, %v1596
      %v1598 = vsel %vm876, %v1358, -inf
      %v1599 = vrot.slane %v1598, 4
      %v1600 = vmax.f32 %v1598, %v1599
      %v1601 = vrot.slane %v1600, 2
      %v1602 = vmax.f32 %v1600, %v1601
      %v1603 = vrot.slane %v1602, 1
      %v1604 = vmax.f32 %v1602, %v1603
      %v1605 = vsel %vm876, %v1359, -inf
      %v1606 = vrot.slane %v1605, 4
      %v1607 = vmax.f32 %v1605, %v1606
      %v1608 = vrot.slane %v1607, 2
      %v1609 = vmax.f32 %v1607, %v1608
      %v1610 = vrot.slane %v1609, 1
      %v1611 = vmax.f32 %v1609, %v1610
      %v1612 = vsel %vm876, %v1360, -inf
      %v1613 = vrot.slane %v1612, 4
      %v1614 = vmax.f32 %v1612, %v1613
      %v1615 = vrot.slane %v1614, 2
      %v1616 = vmax.f32 %v1614, %v1615
      %v1617 = vrot.slane %v1616, 1
      %v1618 = vmax.f32 %v1616, %v1617
      %v1619 = vsel %vm876, %v1361, -inf
      %v1620 = vrot.slane %v1619, 4
      %v1621 = vmax.f32 %v1619, %v1620
      %v1622 = vrot.slane %v1621, 2
      %v1623 = vmax.f32 %v1621, %v1622
      %v1624 = vrot.slane %v1623, 1
      %v1625 = vmax.f32 %v1623, %v1624
      %v1626 = vsel %vm876, %v1362, -inf
      %v1627 = vrot.slane %v1626, 4
      %v1628 = vmax.f32 %v1626, %v1627
      %v1629 = vrot.slane %v1628, 2
      %v1630 = vmax.f32 %v1628, %v1629
      %v1631 = vrot.slane %v1630, 1
      %v1632 = vmax.f32 %v1630, %v1631
      %v1633 = vsel %vm876, %v1363, -inf
      %v1634 = vrot.slane %v1633, 4
      %v1635 = vmax.f32 %v1633, %v1634
      %v1636 = vrot.slane %v1635, 2
      %v1637 = vmax.f32 %v1635, %v1636
      %v1638 = vrot.slane %v1637, 1
      %v1639 = vmax.f32 %v1637, %v1638
      %v1640 = vsel %vm876, %v1364, -inf
      %v1641 = vrot.slane %v1640, 4
      %v1642 = vmax.f32 %v1640, %v1641
      %v1643 = vrot.slane %v1642, 2
      %v1644 = vmax.f32 %v1642, %v1643
      %v1645 = vrot.slane %v1644, 1
      %v1646 = vmax.f32 %v1644, %v1645
      %v1647 = vsel %vm876, %v1365, -inf
      %v1648 = vrot.slane %v1647, 4
      %v1649 = vmax.f32 %v1647, %v1648
      %v1650 = vrot.slane %v1649, 2
      %v1651 = vmax.f32 %v1649, %v1650
      %v1652 = vrot.slane %v1651, 1
      %v1653 = vmax.f32 %v1651, %v1652
      %v1654 = vsel %vm876, %v1366, -inf
      %v1655 = vrot.slane %v1654, 4
      %v1656 = vmax.f32 %v1654, %v1655
      %v1657 = vrot.slane %v1656, 2
      %v1658 = vmax.f32 %v1656, %v1657
      %v1659 = vrot.slane %v1658, 1
      %v1660 = vmax.f32 %v1658, %v1659
      %v1661 = vsel %vm876, %v1367, -inf
      %v1662 = vrot.slane %v1661, 4
      %v1663 = vmax.f32 %v1661, %v1662
      %v1664 = vrot.slane %v1663, 2
      %v1665 = vmax.f32 %v1663, %v1664
      %v1666 = vrot.slane %v1665, 1
      %v1667 = vmax.f32 %v1665, %v1666
      %v1668 = vsel %vm876, %v1368, -inf
      %v1669 = vrot.slane %v1668, 4
      %v1670 = vmax.f32 %v1668, %v1669
      %v1671 = vrot.slane %v1670, 2
      %v1672 = vmax.f32 %v1670, %v1671
      %v1673 = vrot.slane %v1672, 1
      %v1674 = vmax.f32 %v1672, %v1673
      %v1675 = vsel %vm876, %v1369, -inf
      %v1676 = vrot.slane %v1675, 4
      %v1677 = vmax.f32 %v1675, %v1676
      %v1678 = vrot.slane %v1677, 2
      %v1679 = vmax.f32 %v1677, %v1678
      %v1680 = vrot.slane %v1679, 1
      %v1681 = vmax.f32 %v1679, %v1680
      %v1682 = vsel %vm876, %v1370, -inf
      %v1683 = vrot.slane %v1682, 4
      %v1684 = vmax.f32 %v1682, %v1683
      %v1685 = vrot.slane %v1684, 2
      %v1686 = vmax.f32 %v1684, %v1685
      %v1687 = vrot.slane %v1686, 1
      %v1688 = vmax.f32 %v1686, %v1687
      %v1689 = vsel %vm876, %v1371, -inf
      %v1690 = vrot.slane %v1689, 4
      %v1691 = vmax.f32 %v1689, %v1690
      %v1692 = vrot.slane %v1691, 2
      %v1693 = vmax.f32 %v1691, %v1692
      %v1694 = vrot.slane %v1693, 1
      %v1695 = vmax.f32 %v1693, %v1694
      %v1696 = vsel %vm876, %v1372, -inf
      %v1697 = vrot.slane %v1696, 4
      %v1698 = vmax.f32 %v1696, %v1697
      %v1699 = vrot.slane %v1698, 2
      %v1700 = vmax.f32 %v1698, %v1699
      %v1701 = vrot.slane %v1700, 1
      %v1702 = vmax.f32 %v1700, %v1701
      %v1703 = vsel %vm876, %v1373, -inf
      %v1704 = vrot.slane %v1703, 4
      %v1705 = vmax.f32 %v1703, %v1704
      %v1706 = vrot.slane %v1705, 2
      %v1707 = vmax.f32 %v1705, %v1706
      %v1708 = vrot.slane %v1707, 1
      %v1709 = vmax.f32 %v1707, %v1708
      %v1710 = vld [vmem:[%s5] sm:$0xff]
      %vm1759 = vcmask 1041409
      %v1760 = vsel %vm1759, %v1387, %v1380
      %vm1761 = vcmask 1042434
      %v1762 = vsel %vm1761, %v1394, %v1760
      %vm1763 = vcmask 1043459
      %v1764 = vsel %vm1763, %v1401, %v1762
      %vm1765 = vcmask 1044484
      %v1766 = vsel %vm1765, %v1408, %v1764
      %vm1767 = vcmask 1045509
      %v1768 = vsel %vm1767, %v1415, %v1766
      %vm1769 = vcmask 1046534
      %v1770 = vsel %vm1769, %v1422, %v1768
      %vm1771 = vcmask 1047559
      %v1772 = vsel %vm1771, %v1429, %v1770
      %v1773 = vsel %vm1759, %v1443, %v1436
      %v1774 = vsel %vm1761, %v1450, %v1773
      %v1775 = vsel %vm1763, %v1457, %v1774
      %v1776 = vsel %vm1765, %v1464, %v1775
      %v1777 = vsel %vm1767, %v1471, %v1776
      %v1778 = vsel %vm1769, %v1478, %v1777
      %v1779 = vsel %vm1771, %v1485, %v1778
      %v1780 = vsel %vm1759, %v1499, %v1492
      %v1781 = vsel %vm1761, %v1506, %v1780
      %v1782 = vsel %vm1763, %v1513, %v1781
      %v1783 = vsel %vm1765, %v1520, %v1782
      %v1784 = vsel %vm1767, %v1527, %v1783
      %v1785 = vsel %vm1769, %v1534, %v1784
      %v1786 = vsel %vm1771, %v1541, %v1785
      %v1787 = vsel %vm1759, %v1555, %v1548
      %v1788 = vsel %vm1761, %v1562, %v1787
      %v1789 = vsel %vm1763, %v1569, %v1788
      %v1790 = vsel %vm1765, %v1576, %v1789
      %v1791 = vsel %vm1767, %v1583, %v1790
      %v1792 = vsel %vm1769, %v1590, %v1791
      %v1793 = vsel %vm1771, %v1597, %v1792
      %v1794 = vsel %vm1759, %v1611, %v1604
      %v1795 = vsel %vm1761, %v1618, %v1794
      %v1796 = vsel %vm1763, %v1625, %v1795
      %v1797 = vsel %vm1765, %v1632, %v1796
      %v1798 = vsel %vm1767, %v1639, %v1797
      %v1799 = vsel %vm1769, %v1646, %v1798
      %v1800 = vsel %vm1771, %v1653, %v1799
      %v1801 = vsel %vm1759, %v1667, %v1660
      %v1802 = vsel %vm1761, %v1674, %v1801
      %v1803 = vsel %vm1763, %v1681, %v1802
      %v1804 = vsel %vm1765, %v1688, %v1803
      %v1805 = vsel %vm1767, %v1695, %v1804
      %v1806 = vsel %vm1769, %v1702, %v1805
      %v1807 = vsel %vm1771, %v1709, %v1806
      %v1808 = vsel %vm876, %v1772, 0
      %v1810 = vsel %vm876, %v1779, 0
      %v1812 = vsel %vm876, %v1786, 0
      %v1814 = vsel %vm876, %v1793, 0
      %v1816 = vsel %vm876, %v1800, 0
      %v1818 = vsel %vm876, %v1807, 0
      %1820 = vmatprep.subr.mxu0 0.0
      %1821 = vmatpush1.msra.mxu0 %v1710
      %1822 = vmatprep.subr.mxu0 0.0
      %1823 = vmatpush1.msra.mxu0 0.0
      %1824 = vmatprep.subr.mxu0 0.0
      %1825 = vmatpush1.msra.mxu0 0.0
      %1826 = vmatprep.subr.mxu0 0.0
      %1827 = vmatpush1.msra.mxu0 0.0
      %1828 = vmatprep.subr.mxu0 0.0
      %1829 = vmatpush1.msra.mxu0 0.0
      %1830 = vmatprep.subr.mxu0 0.0
      %1831 = vmatpush1.msra.mxu0 0.0
      %1832 = vmatprep.subr.mxu0 0.0
      %1833 = vmatpush1.msra.mxu0 0.0
      %1834 = vmatprep.subr.mxu0 0.0
      %1835 = vmatpush1.msra.mxu0 0.0
      %1836 = vmatprep.subr.mxu0 0.0
      %1837 = vmatpush1.msra.mxu0 0.0
      %1838 = vmatprep.subr.mxu0 0.0
      %1839 = vmatpush1.msra.mxu0 0.0
      %1840 = vmatprep.subr.mxu0 0.0
      %1841 = vmatpush1.msra.mxu0 0.0
      %1842 = vmatprep.subr.mxu0 0.0
      %1843 = vmatpush1.msra.mxu0 0.0
      %1844 = vmatprep.subr.mxu0 0.0
      %1845 = vmatpush1.msra.mxu0 0.0
      %1846 = vmatprep.subr.mxu0 0.0
      %1847 = vmatpush1.msra.mxu0 0.0
      %1848 = vmatprep.subr.mxu0 0.0
      %1849 = vmatpush1.msra.mxu0 0.0
      %1850 = vmatprep.subr.mxu0 0.0
      %1851 = vmatpush1.msra.mxu0 0.0
      %1852 = vmatprep.subr.mxu0 0.0
      %1853 = vmatpush1.msra.mxu0 0.0
      %1854 = vmatprep.subr.mxu0 0.0
      %1855 = vmatpush1.msra.mxu0 0.0
      %1856 = vmatprep.subr.mxu0 0.0
      %1857 = vmatpush1.msra.mxu0 0.0
      %1858 = vmatprep.subr.mxu0 0.0
      %1859 = vmatpush1.msra.mxu0 0.0
      %1860 = vmatprep.subr.mxu0 0.0
      %1861 = vmatpush1.msra.mxu0 0.0
      %1862 = vmatprep.subr.mxu0 0.0
      %1863 = vmatpush1.msra.mxu0 0.0
      %1864 = vmatprep.subr.mxu0 0.0
      %1865 = vmatpush1.msra.mxu0 0.0
      %1866 = vmatprep.subr.mxu0 0.0
      %1867 = vmatpush1.msra.mxu0 0.0
      %1868 = vmatprep.subr.mxu0 0.0
      %1869 = vmatpush1.msra.mxu0 0.0
      %1870 = vmatprep.subr.mxu0 0.0
      %1871 = vmatpush1.msra.mxu0 0.0
      %1872 = vmatprep.subr.mxu0 0.0
      %1873 = vmatpush1.msra.mxu0 0.0
      %1874 = vmatprep.subr.mxu0 0.0
      %1875 = vmatpush1.msra.mxu0 0.0
      %1876 = vmatprep.subr.mxu0 0.0
      %1877 = vmatpush1.msra.mxu0 0.0
      %1878 = vmatprep.subr.mxu0 0.0
      %1879 = vmatpush1.msra.mxu0 0.0
      %1880 = vmatprep.subr.mxu0 0.0
      %1881 = vmatpush1.msra.mxu0 0.0
      %1882 = vmatprep.subr.mxu0 0.0
      %1883 = vmatpush1.msra.mxu0 0.0
      %1884 = vmatprep.mubr.f32.mxu0 0.0
      %1885 = vmatmul.mubr.f32.gmra.mrb[0].mxu0 %v1808
      %v1886 = vpop.f32.mrb[0].mxu0
      %v1887 = vadd.f32 0.0, %v1886
      %v1888 = vpop.f32.mrb[0].mxu0
      %1889 = vmatprep.mubr.f32.mxu0 0.0
      %1890 = vmatmul.mubr.f32.gmra.mrb[0].mxu0 %v1810
      %v1891 = vpop.f32.mrb[0].mxu0
      %v1892 = vadd.f32 0.0, %v1891
      %v1893 = vpop.f32.mrb[0].mxu0
      %1894 = vmatprep.mubr.f32.mxu0 0.0
      %1895 = vmatmul.mubr.f32.gmra.mrb[0].mxu0 %v1812
      %v1896 = vpop.f32.mrb[0].mxu0
      %v1897 = vadd.f32 0.0, %v1896
      %v1898 = vpop.f32.mrb[0].mxu0
      %1899 = vmatprep.mubr.f32.mxu0 0.0
      %1900 = vmatmul.mubr.f32.gmra.mrb[0].mxu0 %v1814
      %v1901 = vpop.f32.mrb[0].mxu0
      %v1902 = vadd.f32 0.0, %v1901
      %v1903 = vpop.f32.mrb[0].mxu0
      %1904 = vmatprep.mubr.f32.mxu0 0.0
      %1905 = vmatmul.mubr.f32.gmra.mrb[0].mxu0 %v1816
      %v1906 = vpop.f32.mrb[0].mxu0
      %v1907 = vadd.f32 0.0, %v1906
      %v1908 = vpop.f32.mrb[0].mxu0
      %1909 = vmatprep.mubr.f32.mxu0 0.0
      %1910 = vmatmul.mubr.f32.gmra.mrb[0].mxu0 %v1818
      %v1911 = vpop.f32.mrb[0].mxu0
      %v1912 = vadd.f32 0.0, %v1911
      %v1913 = vpop.f32.mrb[0].mxu0
      %1914 = vdwg.mxu0
      %v1915 = vld [vmem:[%s6] sm:$0xff]
      %v1916 = vld [vmem:[%s6 + $0x8] sm:$0xff]
      %v1917 = vadd.f32 %v1887, %v1915
      %v1918 = vadd.f32 %v1892, %v1916
      %v1919 = vadd.f32 %v1897, %v1915
      %v1920 = vadd.f32 %v1902, %v1916
      %v1921 = vadd.f32 %v1907, %v1915
      %v1922 = vadd.f32 %v1912, %v1916
      %v1923 = vmax.f32 %v1917, %v1918
      %v1924 = vrot.slane %v1923, 4
      %v1925 = vmax.f32 %v1923, %v1924
      %v1926 = vrot.slane %v1925, 2
      %v1927 = vmax.f32 %v1925, %v1926
      %v1928 = vrot.slane %v1927, 1
      %v1929 = vmax.f32 %v1927, %v1928
      %v1930 = vmax.f32 %v1919, %v1920
      %v1931 = vrot.slane %v1930, 4
      %v1932 = vmax.f32 %v1930, %v1931
      %v1933 = vrot.slane %v1932, 2
      %v1934 = vmax.f32 %v1932, %v1933
      %v1935 = vrot.slane %v1934, 1
      %v1936 = vmax.f32 %v1934, %v1935
      %v1937 = vmax.f32 %v1921, %v1922
      %v1938 = vrot.slane %v1937, 4
      %v1939 = vmax.f32 %v1937, %v1938
      %v1940 = vrot.slane %v1939, 2
      %v1941 = vmax.f32 %v1939, %v1940
      %v1942 = vrot.slane %v1941, 1
      %v1943 = vmax.f32 %v1941, %v1942
      %v1944 = vld [vmem:[%s7] sm:$0x1]
      %v1946 = vlaneseq
      %v1947 = vshrl.u32 %v1946, 7
      %v1948 = vsub.s32 0, %v1947
      %v1949 = vrot.slane %v1944, %v1948
      %v1951 = vmax.f32 %v1929, %v1949
      %v1952 = vmax.f32 %v1936, %v1949
      %v1953 = vmax.f32 %v1943, %v1949
      %1954 = vst [vmem:[%s308] sm:$0x1] %v1951
      %1955 = vst [vmem:[%s308 + $0x1] sm:$0x1] %v1952
      %1956 = vst [vmem:[%s308 + $0x2] sm:$0x1] %v1953
      %s1957 = smul.u32 3, %s19
      %p1958 = scmp.lt.s32.totalorder %s1957, 5
      %s1959 = scalar_select %p1958, %s1957, 5
      %s1960 = scalar_lea.vmem %s8, %s1959
      // Predicated region
      $region53: #{_lambda_.10} parent=51 // pred_check
        %p1961 = pneg %p210
      $region54: #{_lambda_.10} parent=51 // pred_check_branch
        %1963 = sbr.rel (%p1961) target = $region56
      $region55: #{_lambda_.10} parent=51 // pred_region
        %s1964 = smul.u32 3, %s19
      $region56: #{_lambda_.10} parent=51 // pred_fallthru
        _
    $region52: #{_lambda_.10} parent=5 // pred_fallthru
      _
    %p1965 = scmp.le.s32.totalorder 2, %s14
    // Predicated region
    $region57: #{_lambda_.10} parent=5 // pred_check
      %p1966 = pneg %p1965
    $region58: #{_lambda_.10} parent=5 // pred_check_branch
      %1968 = sbr.rel (%p1966) target = $region60
    $region59: #{_lambda_.10} parent=5 // pred_region
      %s1969 = ssub.s32 %s14, 2
      // Predicated region
      $region61: #{_lambda_.10} parent=59 // pred_check
        %p1970 = pneg %p216
      $region62: #{_lambda_.10} parent=59 // pred_check_branch
        %1972 = sbr.rel (%p1970) target = $region64
      $region63: #{_lambda_.10} parent=59 // pred_region
        %s1973 = smul.u32 3, %s20
        %p1974 = scmp.lt.s32.totalorder %s1973, 5
        %s1975 = scalar_select %p1974, %s1973, 5
        %s1976 = scalar_lea.vmem %s8, %s1975
      $region64: #{_lambda_.10} parent=59 // pred_fallthru
        _
    $region60: #{_lambda_.10} parent=5 // pred_fallthru
      _
  $region6: #{_lambda_.10} parent=0 // loop_footer
    %s18 = sadd.s32 1, %s14
  $region7: #{_lambda_.10} parent=0 // loop_footer_branch
    %13 = sbr.rel target = $region3
  $region8: #{_lambda_.10} parent=0 // loop_exit
    _

// kernel: _lambda_.11
$region0: #{_lambda_.11}
  #allocation0 [shape = 'u32[]', space=smem, size = 0x4, offset = 0x4, fixed_abs, tag = 'smem constant byte address 0x4 - core index']
  #allocation1 [shape = 'u32[144,128]{1,0:T(1,128)}', space=vmem, size = 0x12000, scoped, tag = 'internal scratch']
  %s0 = inlined_call_operand.vmem [shape: f32[2,8,24], index: 0, kind: input, shape index: {}]
  %s1 = inlined_call_operand.vmem [shape: f32[2,128,24], index: 1, kind: input, shape index: {}]
  %s2 = inlined_call_operand.vmem [shape: f32[2,1,128], index: 2, kind: input, shape index: {}]
  %s3 = inlined_call_operand.vmem [shape: f32[2,8,128], index: 3, kind: output, shape index: {}]
  %s4 = sld [smem:[#allocation0]]
  $region22: #{_lambda_.11} parent=0
    _
  %s6 = ssub.s32 1, %s4
  %s7 = scalar_select 0, %s6, %s4
  // Predicated region
  $region2: #{_lambda_.11} parent=0 // pred_check
    _
  $region3: #{_lambda_.11} parent=0 // pred_check_branch
    %9 = sbr.rel (0) target = $region5
  $region4: #{_lambda_.11} parent=0 // pred_region
    _
  $region5: #{_lambda_.11} parent=0 // pred_fallthru
    _
  // Predicated region
  $region6: #{_lambda_.11} parent=0 // pred_check
    _
  $region7: #{_lambda_.11} parent=0 // pred_check_branch
    %11 = sbr.rel (0) target = $region9
  $region8: #{_lambda_.11} parent=0 // pred_region
    _
  $region9: #{_lambda_.11} parent=0 // pred_fallthru
    _
  // Predicated region
  $region10: #{_lambda_.11} parent=0 // pred_check
    _
  $region11: #{_lambda_.11} parent=0 // pred_check_branch
    %13 = sbr.rel (0) target = $region13
  $region12: #{_lambda_.11} parent=0 // pred_region
    _
  $region13: #{_lambda_.11} parent=0 // pred_fallthru
    _
  %v14 = vld [vmem:[%s0] sm:$0xff]
  %v15 = vld [vmem:[%s0 + $0x8] sm:$0xff]
  %v16 = vld [vmem:[%s1] sm:$0xff]
  %v17 = vld [vmem:[%s1 + $0x8] sm:$0xff]
  %v18 = vld [vmem:[%s1 + $0x10] sm:$0xff]
  %v19 = vld [vmem:[%s1 + $0x18] sm:$0xff]
  %v20 = vld [vmem:[%s1 + $0x20] sm:$0xff]
  %v21 = vld [vmem:[%s1 + $0x28] sm:$0xff]
  %v22 = vld [vmem:[%s1 + $0x30] sm:$0xff]
  %v23 = vld [vmem:[%s1 + $0x38] sm:$0xff]
  %v24 = vld [vmem:[%s1 + $0x40] sm:$0xff]
  %v25 = vld [vmem:[%s1 + $0x48] sm:$0xff]
  %v26 = vld [vmem:[%s1 + $0x50] sm:$0xff]
  %v27 = vld [vmem:[%s1 + $0x58] sm:$0xff]
  %v28 = vld [vmem:[%s1 + $0x60] sm:$0xff]
  %v29 = vld [vmem:[%s1 + $0x68] sm:$0xff]
  %v30 = vld [vmem:[%s1 + $0x70] sm:$0xff]
  %v31 = vld [vmem:[%s1 + $0x78] sm:$0xff]
  %v32 = vld [vmem:[%s1 + $0x80] sm:$0xff]
  %v33 = vld [vmem:[%s1 + $0x88] sm:$0xff]
  %v34 = vld [vmem:[%s1 + $0x90] sm:$0xff]
  %v35 = vld [vmem:[%s1 + $0x98] sm:$0xff]
  %v36 = vld [vmem:[%s1 + $0xa0] sm:$0xff]
  %v37 = vld [vmem:[%s1 + $0xa8] sm:$0xff]
  %v38 = vld [vmem:[%s1 + $0xb0] sm:$0xff]
  %v39 = vld [vmem:[%s1 + $0xb8] sm:$0xff]
  %v40 = vld [vmem:[%s1 + $0xc0] sm:$0xff]
  %v41 = vld [vmem:[%s1 + $0xc8] sm:$0xff]
  %v42 = vld [vmem:[%s1 + $0xd0] sm:$0xff]
  %v43 = vld [vmem:[%s1 + $0xd8] sm:$0xff]
  %v44 = vld [vmem:[%s1 + $0xe0] sm:$0xff]
  %v45 = vld [vmem:[%s1 + $0xe8] sm:$0xff]
  %v46 = vld [vmem:[%s1 + $0xf0] sm:$0xff]
  %v47 = vld [vmem:[%s1 + $0xf8] sm:$0xff]
  %vm48 = vcmask 195584
  %v50 = vsel %vm48, %v14, 0
  %v53 = vsel %vm48, %v16, 0
  %v56 = vsel %vm48, %v17, 0
  %v59 = vsel %vm48, %v18, 0
  %v62 = vsel %vm48, %v19, 0
  %v65 = vsel %vm48, %v20, 0
  %v68 = vsel %vm48, %v21, 0
  %v71 = vsel %vm48, %v22, 0
  %v74 = vsel %vm48, %v23, 0
  %v77 = vsel %vm48, %v24, 0
  %v80 = vsel %vm48, %v25, 0
  %v83 = vsel %vm48, %v26, 0
  %v86 = vsel %vm48, %v27, 0
  %v89 = vsel %vm48, %v28, 0
  %v92 = vsel %vm48, %v29, 0
  %v95 = vsel %vm48, %v30, 0
  %v98 = vsel %vm48, %v31, 0
  %100 = vmatprep.subr.mxu0 0.0
  %101 = vmatpush1.xpose.msra.mxu0 %v53
  %102 = vmatprep.subr.mxu0 0.0
  %103 = vmatpush1.xpose.msra.mxu0 %v56
  %104 = vmatprep.subr.mxu0 0.0
  %105 = vmatpush1.xpose.msra.mxu0 %v59
  %106 = vmatprep.subr.mxu0 0.0
  %107 = vmatpush1.xpose.msra.mxu0 %v62
  %108 = vmatprep.subr.mxu0 0.0
  %109 = vmatpush1.xpose.msra.mxu0 %v65
  %110 = vmatprep.subr.mxu0 0.0
  %111 = vmatpush1.xpose.msra.mxu0 %v68
  %112 = vmatprep.subr.mxu0 0.0
  %113 = vmatpush1.xpose.msra.mxu0 %v71
  %114 = vmatprep.subr.mxu0 0.0
  %115 = vmatpush1.xpose.msra.mxu0 %v74
  %116 = vmatprep.subr.mxu0 0.0
  %117 = vmatpush1.xpose.msra.mxu0 %v77
  %118 = vmatprep.subr.mxu0 0.0
  %119 = vmatpush1.xpose.msra.mxu0 %v80
  %120 = vmatprep.subr.mxu0 0.0
  %121 = vmatpush1.xpose.msra.mxu0 %v83
  %122 = vmatprep.subr.mxu0 0.0
  %123 = vmatpush1.xpose.msra.mxu0 %v86
  %124 = vmatprep.subr.mxu0 0.0
  %125 = vmatpush1.xpose.msra.mxu0 %v89
  %126 = vmatprep.subr.mxu0 0.0
  %127 = vmatpush1.xpose.msra.mxu0 %v92
  %128 = vmatprep.subr.mxu0 0.0
  %129 = vmatpush1.xpose.msra.mxu0 %v95
  %130 = vmatprep.subr.mxu0 0.0
  %131 = vmatpush1.xpose.msra.mxu0 %v98
  %132 = vmatprep.subr.mxu0 0.0
  %133 = vmatpush1.xpose.msra.mxu0 0.0
  %134 = vmatprep.subr.mxu0 0.0
  %135 = vmatpush1.xpose.msra.mxu0 0.0
  %136 = vmatprep.subr.mxu0 0.0
  %137 = vmatpush1.xpose.msra.mxu0 0.0
  %138 = vmatprep.subr.mxu0 0.0
  %139 = vmatpush1.xpose.msra.mxu0 0.0
  %140 = vmatprep.subr.mxu0 0.0
  %141 = vmatpush1.xpose.msra.mxu0 0.0
  %142 = vmatprep.subr.mxu0 0.0
  %143 = vmatpush1.xpose.msra.mxu0 0.0
  %144 = vmatprep.subr.mxu0 0.0
  %145 = vmatpush1.xpose.msra.mxu0 0.0
  %146 = vmatprep.subr.mxu0 0.0
  %147 = vmatpush1.xpose.msra.mxu0 0.0
  %148 = vmatprep.subr.mxu0 0.0
  %149 = vmatpush1.xpose.msra.mxu0 0.0
  %150 = vmatprep.subr.mxu0 0.0
  %151 = vmatpush1.xpose.msra.mxu0 0.0
  %152 = vmatprep.subr.mxu0 0.0
  %153 = vmatpush1.xpose.msra.mxu0 0.0
  %154 = vmatprep.subr.mxu0 0.0
  %155 = vmatpush1.xpose.msra.mxu0 0.0
  %156 = vmatprep.subr.mxu0 0.0
  %157 = vmatpush1.xpose.msra.mxu0 0.0
  %158 = vmatprep.subr.mxu0 0.0
  %159 = vmatpush1.xpose.msra.mxu0 0.0
  %160 = vmatprep.subr.mxu0 0.0
  %161 = vmatpush1.xpose.msra.mxu0 0.0
  %162 = vmatprep.subr.mxu0 0.0
  %163 = vmatpush1.xpose.msra.mxu0 0.0
  %164 = vmatprep.mubr.f32.mxu0 0.0
  %165 = vmatmul.mubr.f32.gmra.mrb[0].mxu0 %v50
  %v166 = vpop.f32.mrb[0].mxu0
  %v167 = vadd.f32 0.0, %v166
  %v168 = vpop.f32.mrb[0].mxu0
  %169 = vdwg.mxu0
  %v171 = vsel %vm48, %v15, 0
  %v174 = vsel %vm48, %v32, 0
  %v177 = vsel %vm48, %v33, 0
  %v180 = vsel %vm48, %v34, 0
  %v183 = vsel %vm48, %v35, 0
  %v186 = vsel %vm48, %v36, 0
  %v189 = vsel %vm48, %v37, 0
  %v192 = vsel %vm48, %v38, 0
  %v195 = vsel %vm48, %v39, 0
  %v198 = vsel %vm48, %v40, 0
  %v201 = vsel %vm48, %v41, 0
  %v204 = vsel %vm48, %v42, 0
  %v207 = vsel %vm48, %v43, 0
  %v210 = vsel %vm48, %v44, 0
  %v213 = vsel %vm48, %v45, 0
  %v216 = vsel %vm48, %v46, 0
  %v219 = vsel %vm48, %v47, 0
  %221 = vmatprep.subr.mxu0 0.0
  %222 = vmatpush1.xpose.msra.mxu0 %v174
  %223 = vmatprep.subr.mxu0 0.0
  %224 = vmatpush1.xpose.msra.mxu0 %v177
  %225 = vmatprep.subr.mxu0 0.0
  %226 = vmatpush1.xpose.msra.mxu0 %v180
  %227 = vmatprep.subr.mxu0 0.0
  %228 = vmatpush1.xpose.msra.mxu0 %v183
  %229 = vmatprep.subr.mxu0 0.0
  %230 = vmatpush1.xpose.msra.mxu0 %v186
  %231 = vmatprep.subr.mxu0 0.0
  %232 = vmatpush1.xpose.msra.mxu0 %v189
  %233 = vmatprep.subr.mxu0 0.0
  %234 = vmatpush1.xpose.msra.mxu0 %v192
  %235 = vmatprep.subr.mxu0 0.0
  %236 = vmatpush1.xpose.msra.mxu0 %v195
  %237 = vmatprep.subr.mxu0 0.0
  %238 = vmatpush1.xpose.msra.mxu0 %v198
  %239 = vmatprep.subr.mxu0 0.0
  %240 = vmatpush1.xpose.msra.mxu0 %v201
  %241 = vmatprep.subr.mxu0 0.0
  %242 = vmatpush1.xpose.msra.mxu0 %v204
  %243 = vmatprep.subr.mxu0 0.0
  %244 = vmatpush1.xpose.msra.mxu0 %v207
  %245 = vmatprep.subr.mxu0 0.0
  %246 = vmatpush1.xpose.msra.mxu0 %v210
  %247 = vmatprep.subr.mxu0 0.0
  %248 = vmatpush1.xpose.msra.mxu0 %v213
  %249 = vmatprep.subr.mxu0 0.0
  %250 = vmatpush1.xpose.msra.mxu0 %v216
  %251 = vmatprep.subr.mxu0 0.0
  %252 = vmatpush1.xpose.msra.mxu0 %v219
  %253 = vmatprep.subr.mxu0 0.0
  %254 = vmatpush1.xpose.msra.mxu0 0.0
  %255 = vmatprep.subr.mxu0 0.0
  %256 = vmatpush1.xpose.msra.mxu0 0.0
  %257 = vmatprep.subr.mxu0 0.0
  %258 = vmatpush1.xpose.msra.mxu0 0.0
  %259 = vmatprep.subr.mxu0 0.0
  %260 = vmatpush1.xpose.msra.mxu0 0.0
  %261 = vmatprep.subr.mxu0 0.0
  %262 = vmatpush1.xpose.msra.mxu0 0.0
  %263 = vmatprep.subr.mxu0 0.0
  %264 = vmatpush1.xpose.msra.mxu0 0.0
  %265 = vmatprep.subr.mxu0 0.0
  %266 = vmatpush1.xpose.msra.mxu0 0.0
  %267 = vmatprep.subr.mxu0 0.0
  %268 = vmatpush1.xpose.msra.mxu0 0.0
  %269 = vmatprep.subr.mxu0 0.0
  %270 = vmatpush1.xpose.msra.mxu0 0.0
  %271 = vmatprep.subr.mxu0 0.0
  %272 = vmatpush1.xpose.msra.mxu0 0.0
  %273 = vmatprep.subr.mxu0 0.0
  %274 = vmatpush1.xpose.msra.mxu0 0.0
  %275 = vmatprep.subr.mxu0 0.0
  %276 = vmatpush1.xpose.msra.mxu0 0.0
  %277 = vmatprep.subr.mxu0 0.0
  %278 = vmatpush1.xpose.msra.mxu0 0.0
  %279 = vmatprep.subr.mxu0 0.0
  %280 = vmatpush1.xpose.msra.mxu0 0.0
  %281 = vmatprep.subr.mxu0 0.0
  %282 = vmatpush1.xpose.msra.mxu0 0.0
  %283 = vmatprep.subr.mxu0 0.0
  %284 = vmatpush1.xpose.msra.mxu0 0.0
  %285 = vmatprep.mubr.f32.mxu0 0.0
  %286 = vmatmul.mubr.f32.gmra.mrb[0].mxu0 %v171
  %v287 = vpop.f32.mrb[0].mxu0
  %v288 = vadd.f32 0.0, %v287
  %v289 = vpop.f32.mrb[0].mxu0
  %290 = vdwg.mxu0
  %v291 = vmul.f32 %v14, %v14
  %v292 = vmul.f32 %v15, %v15
  %v293 = vsel %vm48, %v291, 0.0
  %294 = vadd.xlane.f32.xlu0 %v293
  %v295 = vpop.xlane.xlu0 %294
  %v296 = vsel %vm48, %v292, 0.0
  %297 = vadd.xlane.f32.xlu0 %v296
  %v298 = vpop.xlane.xlu0 %297
  %v299 = vld [vmem:[%s2] sm:$0x1]
  %v300 = vld [vmem:[%s2 + $0x1] sm:$0x1]
  %v303 = vlaneseq
  %v304 = vshrl.u32 %v303, 7
  %v305 = vsub.s32 0, %v304
  %v306 = vrot.slane %v299, %v305
  %v307 = vlaneseq
  %v308 = vshrl.u32 %v307, 7
  %v309 = vsub.s32 0, %v308
  %v310 = vrot.slane %v300, %v309
  %v313 = vadd.f32 %v295, %v306
  %v314 = vadd.f32 %v298, %v310
  %v315 = vmul.f32 %v167, 2.0
  %v316 = vmul.f32 %v288, 2.0
  %v317 = vsub.f32 %v313, %v315
  %v318 = vsub.f32 %v314, %v316
  %319 = vst [vmem:[%s3] sm:$0xff] %v317
  %320 = vst [vmem:[%s3 + $0x8] sm:$0xff] %v318
  // Predicated region
  $region14: #{_lambda_.11} parent=0 // pred_check
    _
  $region15: #{_lambda_.11} parent=0 // pred_check_branch
    %322 = sbr.rel (0) target = $region17
  $region16: #{_lambda_.11} parent=0 // pred_region
    _
  $region17: #{_lambda_.11} parent=0 // pred_fallthru
    _
  // Predicated region
  $region18: #{_lambda_.11} parent=0 // pred_check
    _
  $region19: #{_lambda_.11} parent=0 // pred_check_branch
    %324 = sbr.rel (0) target = $region21
  $region20: #{_lambda_.11} parent=0 // pred_region
    _
  $region21: #{_lambda_.11} parent=0 // pred_fallthru
    _

// kernel: _lambda_.12
$region0: #{_lambda_.12}
  #allocation0 [shape = 'u32[]', space=smem, size = 0x4, offset = 0x4, fixed_abs, tag = 'smem constant byte address 0x4 - core index']
  #allocation1 [shape = 'u32[144,128]{1,0:T(1,128)}', space=vmem, size = 0x12000, scoped, tag = 'internal scratch']
  %s0 = inlined_call_operand.vmem [shape: f32[6,8,8,24], index: 0, kind: input, shape index: {}]
  %s1 = inlined_call_operand.vmem [shape: f32[24,8], index: 1, kind: input, shape index: {}]
  %s2 = inlined_call_operand.vmem [shape: f32[1,8], index: 2, kind: input, shape index: {}]
  %s3 = inlined_call_operand.vmem [shape: f32[8,8], index: 3, kind: input, shape index: {}]
  %s4 = inlined_call_operand.vmem [shape: f32[1,8], index: 4, kind: input, shape index: {}]
  %s5 = inlined_call_operand.vmem [shape: f32[8,64], index: 5, kind: input, shape index: {}]
  %s6 = inlined_call_operand.vmem [shape: f32[8,64], index: 6, kind: input, shape index: {}]
  %s7 = inlined_call_operand.vmem [shape: f32[1,64], index: 7, kind: input, shape index: {}]
  %s8 = inlined_call_operand.vmem [shape: f32[6,1,64], index: 8, kind: output, shape index: {}]
  %s9 = sld [smem:[#allocation0]]
  $region65: #{_lambda_.12} parent=0
    _
  %s11 = ssub.s32 1, %s9
  %s12 = scalar_select 0, %s11, %s9
  loop: start=0, step=1, limit=4
  $region2: #{_lambda_.12} parent=0 // loop_pre_header
    _
  $region3: #{_lambda_.12} parent=0 // loop_header
    %s14 = sphi 0, %s18
    %p15 = scmp.ge.s32.totalorder %s14, 4
    %s24 = sphi 0, %s26
    %s27 = sphi 0, %s24
    %s28 = sphi 0, %s27
    %s44 = sphi 0, %s28
    %s48 = sphi 0, %s48
    %s50 = sphi 0, %s48
    %s51 = sphi 0, %s50
    %s65 = sphi 0, %s51
    %s69 = sphi 0, %s69
    %s71 = sphi 0, %s69
    %s72 = sphi 0, %s71
    %s86 = sphi 0, %s72
    %s90 = sphi 0, %s90
    %s92 = sphi 0, %s90
    %s93 = sphi 0, %s92
    %s107 = sphi 0, %s93
    %s111 = sphi 0, %s111
    %s113 = sphi 0, %s111
    %s114 = sphi 0, %s113
    %s128 = sphi 0, %s114
    %s132 = sphi 0, %s132
    %s134 = sphi 0, %s132
    %s135 = sphi 0, %s134
    %s149 = sphi 0, %s135
    %s153 = sphi 0, %s153
    %s155 = sphi 0, %s153
    %s156 = sphi 0, %s155
    %s170 = sphi 0, %s156
    %s174 = sphi 0, %s174
    %s176 = sphi 0, %s174
    %s177 = sphi 0, %s176
    %s191 = sphi 0, %s177
    %s197 = sphi 0, %s199
    %s200 = sphi 0, %s197
    %s201 = sphi 0, %s200
    %s217 = sphi 0, %s201
  $region4: #{_lambda_.12} parent=0 // loop_header_branch
    %17 = sbr.rel (%p15) target = $region8
  $region5: #{_lambda_.12} parent=0 // loop_body
    %s19 = ssub.s32 %s14, 1
    %s20 = ssub.s32 %s14, 2
    %s21 = sadd.s32 %s14, 1
    %s22 = ssub.s32 %s14, %s21
    %p23 = scmp.eq.s32.totalorder %s22, 0
    %s25 = sadd.s32 %s24, 1
    %s26 = scalar_select %p23, %s24, %s25
    %p29 = pneg %p23
    %p30 = scmp.eq.s32.totalorder %s14, 1
    %p31 = por %p29, %p30
    %p32 = scmp.ne.s32.totalorder %s24, %s27
    %p33 = scmp.eq.s32.totalorder %s14, 0
    %p34 = por %p32, %p33
    %p35 = scmp.ne.s32.totalorder %s24, %s27
    %p36 = scmp.eq.s32.totalorder %s19, 1
    %p37 = por %p35, %p36
    %p38 = scmp.ne.s32.totalorder %s27, %s28
    %p39 = scmp.eq.s32.totalorder %s19, 0
    %p40 = por %p38, %p39
    %p41 = scmp.ne.s32.totalorder %s27, %s28
    %p42 = scmp.eq.s32.totalorder %s20, 1
    %p43 = por %p41, %p42
    %p45 = scmp.ne.s32.totalorder %s28, %s44
    %p46 = scmp.eq.s32.totalorder %s20, 0
    %p47 = por %p45, %p46
    %s49 = sadd.s32 %s48, 1
    %p52 = scmp.eq.s32.totalorder %s14, 1
    %p53 = scmp.ne.s32.totalorder %s48, %s50
    %p54 = scmp.eq.s32.totalorder %s14, 0
    %p55 = por %p53, %p54
    %p56 = scmp.ne.s32.totalorder %s48, %s50
    %p57 = scmp.eq.s32.totalorder %s19, 1
    %p58 = por %p56, %p57
    %p59 = scmp.ne.s32.totalorder %s50, %s51
    %p60 = scmp.eq.s32.totalorder %s19, 0
    %p61 = por %p59, %p60
    %p62 = scmp.ne.s32.totalorder %s50, %s51
    %p63 = scmp.eq.s32.totalorder %s20, 1
    %p64 = por %p62, %p63
    %p66 = scmp.ne.s32.totalorder %s51, %s65
    %p67 = scmp.eq.s32.totalorder %s20, 0
    %p68 = por %p66, %p67
    %s70 = sadd.s32 %s69, 1
    %p73 = scmp.eq.s32.totalorder %s14, 1
    %p74 = scmp.ne.s32.totalorder %s69, %s71
    %p75 = scmp.eq.s32.totalorder %s14, 0
    %p76 = por %p74, %p75
    %p77 = scmp.ne.s32.totalorder %s69, %s71
    %p78 = scmp.eq.s32.totalorder %s19, 1
    %p79 = por %p77, %p78
    %p80 = scmp.ne.s32.totalorder %s71, %s72
    %p81 = scmp.eq.s32.totalorder %s19, 0
    %p82 = por %p80, %p81
    %p83 = scmp.ne.s32.totalorder %s71, %s72
    %p84 = scmp.eq.s32.totalorder %s20, 1
    %p85 = por %p83, %p84
    %p87 = scmp.ne.s32.totalorder %s72, %s86
    %p88 = scmp.eq.s32.totalorder %s20, 0
    %p89 = por %p87, %p88
    %s91 = sadd.s32 %s90, 1
    %p94 = scmp.eq.s32.totalorder %s14, 1
    %p95 = scmp.ne.s32.totalorder %s90, %s92
    %p96 = scmp.eq.s32.totalorder %s14, 0
    %p97 = por %p95, %p96
    %p98 = scmp.ne.s32.totalorder %s90, %s92
    %p99 = scmp.eq.s32.totalorder %s19, 1
    %p100 = por %p98, %p99
    %p101 = scmp.ne.s32.totalorder %s92, %s93
    %p102 = scmp.eq.s32.totalorder %s19, 0
    %p103 = por %p101, %p102
    %p104 = scmp.ne.s32.totalorder %s92, %s93
    %p105 = scmp.eq.s32.totalorder %s20, 1
    %p106 = por %p104, %p105
    %p108 = scmp.ne.s32.totalorder %s93, %s107
    %p109 = scmp.eq.s32.totalorder %s20, 0
    %p110 = por %p108, %p109
    %s112 = sadd.s32 %s111, 1
    %p115 = scmp.eq.s32.totalorder %s14, 1
    %p116 = scmp.ne.s32.totalorder %s111, %s113
    %p117 = scmp.eq.s32.totalorder %s14, 0
    %p118 = por %p116, %p117
    %p119 = scmp.ne.s32.totalorder %s111, %s113
    %p120 = scmp.eq.s32.totalorder %s19, 1
    %p121 = por %p119, %p120
    %p122 = scmp.ne.s32.totalorder %s113, %s114
    %p123 = scmp.eq.s32.totalorder %s19, 0
    %p124 = por %p122, %p123
    %p125 = scmp.ne.s32.totalorder %s113, %s114
    %p126 = scmp.eq.s32.totalorder %s20, 1
    %p127 = por %p125, %p126
    %p129 = scmp.ne.s32.totalorder %s114, %s128
    %p130 = scmp.eq.s32.totalorder %s20, 0
    %p131 = por %p129, %p130
    %s133 = sadd.s32 %s132, 1
    %p136 = scmp.eq.s32.totalorder %s14, 1
    %p137 = scmp.ne.s32.totalorder %s132, %s134
    %p138 = scmp.eq.s32.totalorder %s14, 0
    %p139 = por %p137, %p138
    %p140 = scmp.ne.s32.totalorder %s132, %s134
    %p141 = scmp.eq.s32.totalorder %s19, 1
    %p142 = por %p140, %p141
    %p143 = scmp.ne.s32.totalorder %s134, %s135
    %p144 = scmp.eq.s32.totalorder %s19, 0
    %p145 = por %p143, %p144
    %p146 = scmp.ne.s32.totalorder %s134, %s135
    %p147 = scmp.eq.s32.totalorder %s20, 1
    %p148 = por %p146, %p147
    %p150 = scmp.ne.s32.totalorder %s135, %s149
    %p151 = scmp.eq.s32.totalorder %s20, 0
    %p152 = por %p150, %p151
    %s154 = sadd.s32 %s153, 1
    %p157 = scmp.eq.s32.totalorder %s14, 1
    %p158 = scmp.ne.s32.totalorder %s153, %s155
    %p159 = scmp.eq.s32.totalorder %s14, 0
    %p160 = por %p158, %p159
    %p161 = scmp.ne.s32.totalorder %s153, %s155
    %p162 = scmp.eq.s32.totalorder %s19, 1
    %p163 = por %p161, %p162
    %p164 = scmp.ne.s32.totalorder %s155, %s156
    %p165 = scmp.eq.s32.totalorder %s19, 0
    %p166 = por %p164, %p165
    %p167 = scmp.ne.s32.totalorder %s155, %s156
    %p168 = scmp.eq.s32.totalorder %s20, 1
    %p169 = por %p167, %p168
    %p171 = scmp.ne.s32.totalorder %s156, %s170
    %p172 = scmp.eq.s32.totalorder %s20, 0
    %p173 = por %p171, %p172
    %s175 = sadd.s32 %s174, 1
    %p178 = scmp.eq.s32.totalorder %s14, 1
    %p179 = scmp.ne.s32.totalorder %s174, %s176
    %p180 = scmp.eq.s32.totalorder %s14, 0
    %p181 = por %p179, %p180
    %p182 = scmp.ne.s32.totalorder %s174, %s176
    %p183 = scmp.eq.s32.totalorder %s19, 1
    %p184 = por %p182, %p183
    %p185 = scmp.ne.s32.totalorder %s176, %s177
    %p186 = scmp.eq.s32.totalorder %s19, 0
    %p187 = por %p185, %p186
    %p188 = scmp.ne.s32.totalorder %s176, %s177
    %p189 = scmp.eq.s32.totalorder %s20, 1
    %p190 = por %p188, %p189
    %p192 = scmp.ne.s32.totalorder %s177, %s191
    %p193 = scmp.eq.s32.totalorder %s20, 0
    %p194 = por %p192, %p193
    %s195 = ssub.s32 %s14, %s21
    %p196 = scmp.eq.s32.totalorder %s195, 0
    %s198 = sadd.s32 %s197, 1
    %s199 = scalar_select %p196, %s197, %s198
    %p202 = pneg %p196
    %p203 = scmp.eq.s32.totalorder %s14, 1
    %p204 = por %p202, %p203
    %p205 = scmp.ne.s32.totalorder %s197, %s200
    %p206 = scmp.eq.s32.totalorder %s14, 0
    %p207 = por %p205, %p206
    %p208 = scmp.ne.s32.totalorder %s197, %s200
    %p209 = scmp.eq.s32.totalorder %s19, 1
    %p210 = por %p208, %p209
    %p211 = scmp.ne.s32.totalorder %s200, %s201
    %p212 = scmp.eq.s32.totalorder %s19, 0
    %p213 = por %p211, %p212
    %p214 = scmp.ne.s32.totalorder %s200, %s201
    %p215 = scmp.eq.s32.totalorder %s20, 1
    %p216 = por %p214, %p215
    %p218 = scmp.ne.s32.totalorder %s201, %s217
    %p219 = scmp.eq.s32.totalorder %s20, 0
    %p220 = por %p218, %p219
    %p221 = scmp.le.s32.totalorder 1, %s14
    %p222 = scmp.lt.s32.totalorder %s14, 3
    %p223 = pnand %p221, %p222
    %p224 = pneg %p223
    // Predicated region
    $region9: #{_lambda_.12} parent=5 // pred_check
      _
    $region10: #{_lambda_.12} parent=5 // pred_check_branch
      %226 = sbr.rel (%p223) target = $region12
    $region11: #{_lambda_.12} parent=5 // pred_region
      %s227 = ssub.s32 %s14, 1
      // Predicated region
      $region13: #{_lambda_.12} parent=11 // pred_check
        %p228 = pneg %p61
      $region14: #{_lambda_.12} parent=11 // pred_check_branch
        %230 = sbr.rel (%p228) target = $region16
      $region15: #{_lambda_.12} parent=11 // pred_region
        _
      $region16: #{_lambda_.12} parent=11 // pred_fallthru
        _
      // Predicated region
      $region17: #{_lambda_.12} parent=11 // pred_check
        %p231 = pneg %p82
      $region18: #{_lambda_.12} parent=11 // pred_check_branch
        %233 = sbr.rel (%p231) target = $region20
      $region19: #{_lambda_.12} parent=11 // pred_region
        _
      $region20: #{_lambda_.12} parent=11 // pred_fallthru
        _
      // Predicated region
      $region21: #{_lambda_.12} parent=11 // pred_check
        %p234 = pneg %p103
      $region22: #{_lambda_.12} parent=11 // pred_check_branch
        %236 = sbr.rel (%p234) target = $region24
      $region23: #{_lambda_.12} parent=11 // pred_region
        _
      $region24: #{_lambda_.12} parent=11 // pred_fallthru
        _
      // Predicated region
      $region25: #{_lambda_.12} parent=11 // pred_check
        %p237 = pneg %p124
      $region26: #{_lambda_.12} parent=11 // pred_check_branch
        %239 = sbr.rel (%p237) target = $region28
      $region27: #{_lambda_.12} parent=11 // pred_region
        _
      $region28: #{_lambda_.12} parent=11 // pred_fallthru
        _
      // Predicated region
      $region29: #{_lambda_.12} parent=11 // pred_check
        %p240 = pneg %p145
      $region30: #{_lambda_.12} parent=11 // pred_check_branch
        %242 = sbr.rel (%p240) target = $region32
      $region31: #{_lambda_.12} parent=11 // pred_region
        _
      $region32: #{_lambda_.12} parent=11 // pred_fallthru
        _
      // Predicated region
      $region33: #{_lambda_.12} parent=11 // pred_check
        %p243 = pneg %p166
      $region34: #{_lambda_.12} parent=11 // pred_check_branch
        %245 = sbr.rel (%p243) target = $region36
      $region35: #{_lambda_.12} parent=11 // pred_region
        _
      $region36: #{_lambda_.12} parent=11 // pred_fallthru
        _
      // Predicated region
      $region37: #{_lambda_.12} parent=11 // pred_check
        %p246 = pneg %p187
      $region38: #{_lambda_.12} parent=11 // pred_check_branch
        %248 = sbr.rel (%p246) target = $region40
      $region39: #{_lambda_.12} parent=11 // pred_region
        _
      $region40: #{_lambda_.12} parent=11 // pred_fallthru
        _
    $region12: #{_lambda_.12} parent=5 // pred_fallthru
      _
    %p249 = scmp.lt.s32.totalorder %s14, 2
    // Predicated region
    $region41: #{_lambda_.12} parent=5 // pred_check
      %p250 = pneg %p249
    $region42: #{_lambda_.12} parent=5 // pred_check_branch
      %252 = sbr.rel (%p250) target = $region44
    $region43: #{_lambda_.12} parent=5 // pred_region
      // Predicated region
      $region45: #{_lambda_.12} parent=43 // pred_check
        %p253 = pneg %p34
      $region46: #{_lambda_.12} parent=43 // pred_check_branch
        %255 = sbr.rel (%p253) target = $region48
      $region47: #{_lambda_.12} parent=43 // pred_region
        %s256 = smul.u32 3, %s14
        %p257 = scmp.lt.s32.totalorder %s256, 5
        %s258 = scalar_select %p257, %s256, 5
        %s259 = smul.addr %s258, 8
        %s260 = smul.addr %s259, 8
        %s261 = scalar_lea.vmem %s0, %s260
        %s262 = smul.u32 3, %s14
      $region48: #{_lambda_.12} parent=43 // pred_fallthru
        _
    $region44: #{_lambda_.12} parent=5 // pred_fallthru
      _
    %p263 = scmp.le.s32.totalorder 1, %s14
    %p264 = scmp.lt.s32.totalorder %s14, 3
    %p265 = pnand %p263, %p264
    %p266 = pneg %p265
    // Predicated region
    $region49: #{_lambda_.12} parent=5 // pred_check
      _
    $region50: #{_lambda_.12} parent=5 // pred_check_branch
      %268 = sbr.rel (%p265) target = $region52
    $region51: #{_lambda_.12} parent=5 // pred_region
      %s269 = ssub.s32 %s14, 1
      %s270 = smul.u32 3, %s19
      %p271 = scmp.lt.s32.totalorder %s270, 5
      %s272 = scalar_select %p271, %s270, 5
      %s273 = smul.addr %s272, 8
      %s274 = smul.addr %s273, 8
      %s275 = scalar_lea.vmem %s0, %s274
      %p276 = pneg %p40
      %p277 = pneg %p37
      %p278 = pneg %p61
      %p279 = pneg %p58
      %p280 = pneg %p82
      %p281 = pneg %p79
      %p282 = pneg %p103
      %p283 = pneg %p100
      %p284 = pneg %p124
      %p285 = pneg %p121
      %p286 = pneg %p145
      %p287 = pneg %p142
      %p288 = pneg %p166
      %p289 = pneg %p163
      %p290 = pneg %p187
      %p291 = pneg %p184
      %p292 = pneg %p213
      %p293 = pneg %p210
      %s294 = smul.u32 3, %s19
      %p295 = scmp.lt.s32.totalorder %s294, 5
      %s296 = scalar_select %p295, %s294, 5
      %s297 = scalar_lea.vmem %s8, %s296
      %s298 = smul.u32 3, %s19
      %p299 = scmp.lt.s32.totalorder %s298, 5
      %s300 = scalar_select %p299, %s298, 5
      %s301 = smul.addr %s300, 8
      %s302 = smul.addr %s301, 8
      %s303 = scalar_lea.vmem %s0, %s302
      %s304 = smul.u32 3, %s19
      %s305 = smul.u32 3, %s19
      %p306 = scmp.lt.s32.totalorder %s305, 5
      %s307 = scalar_select %p306, %s305, 5
      %s308 = scalar_lea.vmem %s8, %s307
      %s309 = smul.u32 3, %s19
      %v310 = vld [vmem:[%s303] sm:$0xff]
      %v311 = vld [vmem:[%s303 + $0x8] sm:$0xff]
      %v312 = vld [vmem:[%s303 + $0x10] sm:$0xff]
      %v313 = vld [vmem:[%s303 + $0x18] sm:$0xff]
      %v314 = vld [vmem:[%s303 + $0x20] sm:$0xff]
      %v315 = vld [vmem:[%s303 + $0x28] sm:$0xff]
      %v316 = vld [vmem:[%s303 + $0x30] sm:$0xff]
      %v317 = vld [vmem:[%s303 + $0x38] sm:$0xff]
      %v318 = vld [vmem:[%s303 + $0x40] sm:$0xff]
      %v319 = vld [vmem:[%s303 + $0x48] sm:$0xff]
      %v320 = vld [vmem:[%s303 + $0x50] sm:$0xff]
      %v321 = vld [vmem:[%s303 + $0x58] sm:$0xff]
      %v322 = vld [vmem:[%s303 + $0x60] sm:$0xff]
      %v323 = vld [vmem:[%s303 + $0x68] sm:$0xff]
      %v324 = vld [vmem:[%s303 + $0x70] sm:$0xff]
      %v325 = vld [vmem:[%s303 + $0x78] sm:$0xff]
      %v326 = vld [vmem:[%s303 + $0x80] sm:$0xff]
      %v327 = vld [vmem:[%s303 + $0x88] sm:$0xff]
      %v328 = vld [vmem:[%s303 + $0x90] sm:$0xff]
      %v329 = vld [vmem:[%s303 + $0x98] sm:$0xff]
      %v330 = vld [vmem:[%s303 + $0xa0] sm:$0xff]
      %v331 = vld [vmem:[%s303 + $0xa8] sm:$0xff]
      %v332 = vld [vmem:[%s303 + $0xb0] sm:$0xff]
      %v333 = vld [vmem:[%s303 + $0xb8] sm:$0xff]
      %v334 = vld [vmem:[%s1] sm:$0xff]
      %v335 = vld [vmem:[%s1 + $0x8] sm:$0xff]
      %v336 = vld [vmem:[%s1 + $0x10] sm:$0xff]
      %v337 = vld [vmem:[%s2] sm:$0x1]
      %v339 = vlaneseq
      %v340 = vshrl.u32 %v339, 7
      %v341 = vsub.s32 0, %v340
      %v342 = vrot.slane %v337, %v341
      %vm344 = vcmask 195584
      %v346 = vsel %vm344, %v310, 0
      %v349 = vsel %vm344, %v311, 0
      %v352 = vsel %vm344, %v312, 0
      %v355 = vsel %vm344, %v313, 0
      %v358 = vsel %vm344, %v314, 0
      %v361 = vsel %vm344, %v315, 0
      %v364 = vsel %vm344, %v316, 0
      %v367 = vsel %vm344, %v317, 0
      %v370 = vsel %vm344, %v318, 0
      %v373 = vsel %vm344, %v319, 0
      %v376 = vsel %vm344, %v320, 0
      %v379 = vsel %vm344, %v321, 0
      %v382 = vsel %vm344, %v322, 0
      %v385 = vsel %vm344, %v323, 0
      %v388 = vsel %vm344, %v324, 0
      %v391 = vsel %vm344, %v325, 0
      %v394 = vsel %vm344, %v326, 0
      %v397 = vsel %vm344, %v327, 0
      %v400 = vsel %vm344, %v328, 0
      %v403 = vsel %vm344, %v329, 0
      %v406 = vsel %vm344, %v330, 0
      %v409 = vsel %vm344, %v331, 0
      %v412 = vsel %vm344, %v332, 0
      %v415 = vsel %vm344, %v333, 0
      %417 = vmatprep.subr.mxu0 0.0
      %418 = vmatpush1.msra.mxu0 %v334
      %419 = vmatprep.subr.mxu0 0.0
      %420 = vmatpush1.msra.mxu0 %v335
      %421 = vmatprep.subr.mxu0 0.0
      %422 = vmatpush1.msra.mxu0 %v336
      %423 = vmatprep.subr.mxu0 0.0
      %424 = vmatpush1.msra.mxu0 0.0
      %425 = vmatprep.subr.mxu0 0.0
      %426 = vmatpush1.msra.mxu0 0.0
      %427 = vmatprep.subr.mxu0 0.0
      %428 = vmatpush1.msra.mxu0 0.0
      %429 = vmatprep.subr.mxu0 0.0
      %430 = vmatpush1.msra.mxu0 0.0
      %431 = vmatprep.subr.mxu0 0.0
      %432 = vmatpush1.msra.mxu0 0.0
      %433 = vmatprep.subr.mxu0 0.0
      %434 = vmatpush1.msra.mxu0 0.0
      %435 = vmatprep.subr.mxu0 0.0
      %436 = vmatpush1.msra.mxu0 0.0
      %437 = vmatprep.subr.mxu0 0.0
      %438 = vmatpush1.msra.mxu0 0.0
      %439 = vmatprep.subr.mxu0 0.0
      %440 = vmatpush1.msra.mxu0 0.0
      %441 = vmatprep.subr.mxu0 0.0
      %442 = vmatpush1.msra.mxu0 0.0
      %443 = vmatprep.subr.mxu0 0.0
      %444 = vmatpush1.msra.mxu0 0.0
      %445 = vmatprep.subr.mxu0 0.0
      %446 = vmatpush1.msra.mxu0 0.0
      %447 = vmatprep.subr.mxu0 0.0
      %448 = vmatpush1.msra.mxu0 0.0
      %449 = vmatprep.subr.mxu0 0.0
      %450 = vmatpush1.msra.mxu0 0.0
      %451 = vmatprep.subr.mxu0 0.0
      %452 = vmatpush1.msra.mxu0 0.0
      %453 = vmatprep.subr.mxu0 0.0
      %454 = vmatpush1.msra.mxu0 0.0
      %455 = vmatprep.subr.mxu0 0.0
      %456 = vmatpush1.msra.mxu0 0.0
      %457 = vmatprep.subr.mxu0 0.0
      %458 = vmatpush1.msra.mxu0 0.0
      %459 = vmatprep.subr.mxu0 0.0
      %460 = vmatpush1.msra.mxu0 0.0
      %461 = vmatprep.subr.mxu0 0.0
      %462 = vmatpush1.msra.mxu0 0.0
      %463 = vmatprep.subr.mxu0 0.0
      %464 = vmatpush1.msra.mxu0 0.0
      %465 = vmatprep.subr.mxu0 0.0
      %466 = vmatpush1.msra.mxu0 0.0
      %467 = vmatprep.subr.mxu0 0.0
      %468 = vmatpush1.msra.mxu0 0.0
      %469 = vmatprep.subr.mxu0 0.0
      %470 = vmatpush1.msra.mxu0 0.0
      %471 = vmatprep.subr.mxu0 0.0
      %472 = vmatpush1.msra.mxu0 0.0
      %473 = vmatprep.subr.mxu0 0.0
      %474 = vmatpush1.msra.mxu0 0.0
      %475 = vmatprep.subr.mxu0 0.0
      %476 = vmatpush1.msra.mxu0 0.0
      %477 = vmatprep.subr.mxu0 0.0
      %478 = vmatpush1.msra.mxu0 0.0
      %479 = vmatprep.subr.mxu0 0.0
      %480 = vmatpush1.msra.mxu0 0.0
      %481 = vmatprep.mubr.f32.mxu0 0.0
      %482 = vmatmul.mubr.f32.gmra.mrb[0].mxu0 %v346
      %v483 = vpop.f32.mrb[0].mxu0
      %v484 = vadd.f32 %v342, %v483
      %v485 = vpop.f32.mrb[0].mxu0
      %486 = vmatprep.mubr.f32.mxu0 0.0
      %487 = vmatmul.mubr.f32.gmra.mrb[0].mxu0 %v349
      %v488 = vpop.f32.mrb[0].mxu0
      %v489 = vadd.f32 %v342, %v488
      %v490 = vpop.f32.mrb[0].mxu0
      %491 = vmatprep.mubr.f32.mxu0 0.0
      %492 = vmatmul.mubr.f32.gmra.mrb[0].mxu0 %v352
      %v493 = vpop.f32.mrb[0].mxu0
      %v494 = vadd.f32 %v342, %v493
      %v495 = vpop.f32.mrb[0].mxu0
      %496 = vmatprep.mubr.f32.mxu0 0.0
      %497 = vmatmul.mubr.f32.gmra.mrb[0].mxu0 %v355
      %v498 = vpop.f32.mrb[0].mxu0
      %v499 = vadd.f32 %v342, %v498
      %v500 = vpop.f32.mrb[0].mxu0
      %501 = vmatprep.mubr.f32.mxu0 0.0
      %502 = vmatmul.mubr.f32.gmra.mrb[0].mxu0 %v358
      %v503 = vpop.f32.mrb[0].mxu0
      %v504 = vadd.f32 %v342, %v503
      %v505 = vpop.f32.mrb[0].mxu0
      %506 = vmatprep.mubr.f32.mxu0 0.0
      %507 = vmatmul.mubr.f32.gmra.mrb[0].mxu0 %v361
      %v508 = vpop.f32.mrb[0].mxu0
      %v509 = vadd.f32 %v342, %v508
      %v510 = vpop.f32.mrb[0].mxu0
      %511 = vmatprep.mubr.f32.mxu0 0.0
      %512 = vmatmul.mubr.f32.gmra.mrb[0].mxu0 %v364
      %v513 = vpop.f32.mrb[0].mxu0
      %v514 = vadd.f32 %v342, %v513
      %v515 = vpop.f32.mrb[0].mxu0
      %516 = vmatprep.mubr.f32.mxu0 0.0
      %517 = vmatmul.mubr.f32.gmra.mrb[0].mxu0 %v367
      %v518 = vpop.f32.mrb[0].mxu0
      %v519 = vadd.f32 %v342, %v518
      %v520 = vpop.f32.mrb[0].mxu0
      %521 = vmatprep.mubr.f32.mxu0 0.0
      %522 = vmatmul.mubr.f32.gmra.mrb[0].mxu0 %v370
      %v523 = vpop.f32.mrb[0].mxu0
      %v524 = vadd.f32 %v342, %v523
      %v525 = vpop.f32.mrb[0].mxu0
      %526 = vmatprep.mubr.f32.mxu0 0.0
      %527 = vmatmul.mubr.f32.gmra.mrb[0].mxu0 %v373
      %v528 = vpop.f32.mrb[0].mxu0
      %v529 = vadd.f32 %v342, %v528
      %v530 = vpop.f32.mrb[0].mxu0
      %531 = vmatprep.mubr.f32.mxu0 0.0
      %532 = vmatmul.mubr.f32.gmra.mrb[0].mxu0 %v376
      %v533 = vpop.f32.mrb[0].mxu0
      %v534 = vadd.f32 %v342, %v533
      %v535 = vpop.f32.mrb[0].mxu0
      %536 = vmatprep.mubr.f32.mxu0 0.0
      %537 = vmatmul.mubr.f32.gmra.mrb[0].mxu0 %v379
      %v538 = vpop.f32.mrb[0].mxu0
      %v539 = vadd.f32 %v342, %v538
      %v540 = vpop.f32.mrb[0].mxu0
      %541 = vmatprep.mubr.f32.mxu0 0.0
      %542 = vmatmul.mubr.f32.gmra.mrb[0].mxu0 %v382
      %v543 = vpop.f32.mrb[0].mxu0
      %v544 = vadd.f32 %v342, %v543
      %v545 = vpop.f32.mrb[0].mxu0
      %546 = vmatprep.mubr.f32.mxu0 0.0
      %547 = vmatmul.mubr.f32.gmra.mrb[0].mxu0 %v385
      %v548 = vpop.f32.mrb[0].mxu0
      %v549 = vadd.f32 %v342, %v548
      %v550 = vpop.f32.mrb[0].mxu0
      %551 = vmatprep.mubr.f32.mxu0 0.0
      %552 = vmatmul.mubr.f32.gmra.mrb[0].mxu0 %v388
      %v553 = vpop.f32.mrb[0].mxu0
      %v554 = vadd.f32 %v342, %v553
      %v555 = vpop.f32.mrb[0].mxu0
      %556 = vmatprep.mubr.f32.mxu0 0.0
      %557 = vmatmul.mubr.f32.gmra.mrb[0].mxu0 %v391
      %v558 = vpop.f32.mrb[0].mxu0
      %v559 = vadd.f32 %v342, %v558
      %v560 = vpop.f32.mrb[0].mxu0
      %561 = vmatprep.mubr.f32.mxu0 0.0
      %562 = vmatmul.mubr.f32.gmra.mrb[0].mxu0 %v394
      %v563 = vpop.f32.mrb[0].mxu0
      %v564 = vadd.f32 %v342, %v563
      %v565 = vpop.f32.mrb[0].mxu0
      %566 = vmatprep.mubr.f32.mxu0 0.0
      %567 = vmatmul.mubr.f32.gmra.mrb[0].mxu0 %v397
      %v568 = vpop.f32.mrb[0].mxu0
      %v569 = vadd.f32 %v342, %v568
      %v570 = vpop.f32.mrb[0].mxu0
      %571 = vmatprep.mubr.f32.mxu0 0.0
      %572 = vmatmul.mubr.f32.gmra.mrb[0].mxu0 %v400
      %v573 = vpop.f32.mrb[0].mxu0
      %v574 = vadd.f32 %v342, %v573
      %v575 = vpop.f32.mrb[0].mxu0
      %576 = vmatprep.mubr.f32.mxu0 0.0
      %577 = vmatmul.mubr.f32.gmra.mrb[0].mxu0 %v403
      %v578 = vpop.f32.mrb[0].mxu0
      %v579 = vadd.f32 %v342, %v578
      %v580 = vpop.f32.mrb[0].mxu0
      %581 = vmatprep.mubr.f32.mxu0 0.0
      %582 = vmatmul.mubr.f32.gmra.mrb[0].mxu0 %v406
      %v583 = vpop.f32.mrb[0].mxu0
      %v584 = vadd.f32 %v342, %v583
      %v585 = vpop.f32.mrb[0].mxu0
      %586 = vmatprep.mubr.f32.mxu0 0.0
      %587 = vmatmul.mubr.f32.gmra.mrb[0].mxu0 %v409
      %v588 = vpop.f32.mrb[0].mxu0
      %v589 = vadd.f32 %v342, %v588
      %v590 = vpop.f32.mrb[0].mxu0
      %591 = vmatprep.mubr.f32.mxu0 0.0
      %592 = vmatmul.mubr.f32.gmra.mrb[0].mxu0 %v412
      %v593 = vpop.f32.mrb[0].mxu0
      %v594 = vadd.f32 %v342, %v593
      %v595 = vpop.f32.mrb[0].mxu0
      %596 = vmatprep.mubr.f32.mxu0 0.0
      %597 = vmatmul.mubr.f32.gmra.mrb[0].mxu0 %v415
      %v598 = vpop.f32.mrb[0].mxu0
      %v599 = vadd.f32 %v342, %v598
      %v600 = vpop.f32.mrb[0].mxu0
      %601 = vdwg.mxu0
      %v602 = vmax.f32 %v484, 0.0
      %v603 = vmax.f32 %v489, 0.0
      %v604 = vmax.f32 %v494, 0.0
      %v605 = vmax.f32 %v499, 0.0
      %v606 = vmax.f32 %v504, 0.0
      %v607 = vmax.f32 %v509, 0.0
      %v608 = vmax.f32 %v514, 0.0
      %v609 = vmax.f32 %v519, 0.0
      %v610 = vmax.f32 %v524, 0.0
      %v611 = vmax.f32 %v529, 0.0
      %v612 = vmax.f32 %v534, 0.0
      %v613 = vmax.f32 %v539, 0.0
      %v614 = vmax.f32 %v544, 0.0
      %v615 = vmax.f32 %v549, 0.0
      %v616 = vmax.f32 %v554, 0.0
      %v617 = vmax.f32 %v559, 0.0
      %v618 = vmax.f32 %v564, 0.0
      %v619 = vmax.f32 %v569, 0.0
      %v620 = vmax.f32 %v574, 0.0
      %v621 = vmax.f32 %v579, 0.0
      %v622 = vmax.f32 %v584, 0.0
      %v623 = vmax.f32 %v589, 0.0
      %v624 = vmax.f32 %v594, 0.0
      %v625 = vmax.f32 %v599, 0.0
      %v626 = vld [vmem:[%s3] sm:$0xff]
      %v627 = vld [vmem:[%s4] sm:$0x1]
      %v629 = vlaneseq
      %v630 = vshrl.u32 %v629, 7
      %v631 = vsub.s32 0, %v630
      %v632 = vrot.slane %v627, %v631
      %vm634 = vcmask 64512
      %v636 = vsel %vm634, %v602, 0
      %v639 = vsel %vm634, %v603, 0
      %v642 = vsel %vm634, %v604, 0
      %v645 = vsel %vm634, %v605, 0
      %v648 = vsel %vm634, %v606, 0
      %v651 = vsel %vm634, %v607, 0
      %v654 = vsel %vm634, %v608, 0
      %v657 = vsel %vm634, %v609, 0
      %v660 = vsel %vm634, %v610, 0
      %v663 = vsel %vm634, %v611, 0
      %v666 = vsel %vm634, %v612, 0
      %v669 = vsel %vm634, %v613, 0
      %v672 = vsel %vm634, %v614, 0
      %v675 = vsel %vm634, %v615, 0
      %v678 = vsel %vm634, %v616, 0
      %v681 = vsel %vm634, %v617, 0
      %v684 = vsel %vm634, %v618, 0
      %v687 = vsel %vm634, %v619, 0
      %v690 = vsel %vm634, %v620, 0
      %v693 = vsel %vm634, %v621, 0
      %v696 = vsel %vm634, %v622, 0
      %v699 = vsel %vm634, %v623, 0
      %v702 = vsel %vm634, %v624, 0
      %v705 = vsel %vm634, %v625, 0
      %707 = vmatprep.subr.mxu0 0.0
      %708 = vmatpush1.msra.mxu0 %v626
      %709 = vmatprep.subr.mxu0 0.0
      %710 = vmatpush1.msra.mxu0 0.0
      %711 = vmatprep.subr.mxu0 0.0
      %712 = vmatpush1.msra.mxu0 0.0
      %713 = vmatprep.subr.mxu0 0.0
      %714 = vmatpush1.msra.mxu0 0.0
      %715 = vmatprep.subr.mxu0 0.0
      %716 = vmatpush1.msra.mxu0 0.0
      %717 = vmatprep.subr.mxu0 0.0
      %718 = vmatpush1.msra.mxu0 0.0
      %719 = vmatprep.subr.mxu0 0.0
      %720 = vmatpush1.msra.mxu0 0.0
      %721 = vmatprep.subr.mxu0 0.0
      %722 = vmatpush1.msra.mxu0 0.0
      %723 = vmatprep.subr.mxu0 0.0
      %724 = vmatpush1.msra.mxu0 0.0
      %725 = vmatprep.subr.mxu0 0.0
      %726 = vmatpush1.msra.mxu0 0.0
      %727 = vmatprep.subr.mxu0 0.0
      %728 = vmatpush1.msra.mxu0 0.0
      %729 = vmatprep.subr.mxu0 0.0
      %730 = vmatpush1.msra.mxu0 0.0
      %731 = vmatprep.subr.mxu0 0.0
      %732 = vmatpush1.msra.mxu0 0.0
      %733 = vmatprep.subr.mxu0 0.0
      %734 = vmatpush1.msra.mxu0 0.0
      %735 = vmatprep.subr.mxu0 0.0
      %736 = vmatpush1.msra.mxu0 0.0
      %737 = vmatprep.subr.mxu0 0.0
      %738 = vmatpush1.msra.mxu0 0.0
      %739 = vmatprep.subr.mxu0 0.0
      %740 = vmatpush1.msra.mxu0 0.0
      %741 = vmatprep.subr.mxu0 0.0
      %742 = vmatpush1.msra.mxu0 0.0
      %743 = vmatprep.subr.mxu0 0.0
      %744 = vmatpush1.msra.mxu0 0.0
      %745 = vmatprep.subr.mxu0 0.0
      %746 = vmatpush1.msra.mxu0 0.0
      %747 = vmatprep.subr.mxu0 0.0
      %748 = vmatpush1.msra.mxu0 0.0
      %749 = vmatprep.subr.mxu0 0.0
      %750 = vmatpush1.msra.mxu0 0.0
      %751 = vmatprep.subr.mxu0 0.0
      %752 = vmatpush1.msra.mxu0 0.0
      %753 = vmatprep.subr.mxu0 0.0
      %754 = vmatpush1.msra.mxu0 0.0
      %755 = vmatprep.subr.mxu0 0.0
      %756 = vmatpush1.msra.mxu0 0.0
      %757 = vmatprep.subr.mxu0 0.0
      %758 = vmatpush1.msra.mxu0 0.0
      %759 = vmatprep.subr.mxu0 0.0
      %760 = vmatpush1.msra.mxu0 0.0
      %761 = vmatprep.subr.mxu0 0.0
      %762 = vmatpush1.msra.mxu0 0.0
      %763 = vmatprep.subr.mxu0 0.0
      %764 = vmatpush1.msra.mxu0 0.0
      %765 = vmatprep.subr.mxu0 0.0
      %766 = vmatpush1.msra.mxu0 0.0
      %767 = vmatprep.subr.mxu0 0.0
      %768 = vmatpush1.msra.mxu0 0.0
      %769 = vmatprep.subr.mxu0 0.0
      %770 = vmatpush1.msra.mxu0 0.0
      %771 = vmatprep.mubr.f32.mxu0 0.0
      %772 = vmatmul.mubr.f32.gmra.mrb[0].mxu0 %v636
      %v773 = vpop.f32.mrb[0].mxu0
      %v774 = vadd.f32 %v632, %v773
      %v775 = vpop.f32.mrb[0].mxu0
      %776 = vmatprep.mubr.f32.mxu0 0.0
      %777 = vmatmul.mubr.f32.gmra.mrb[0].mxu0 %v639
      %v778 = vpop.f32.mrb[0].mxu0
      %v779 = vadd.f32 %v632, %v778
      %v780 = vpop.f32.mrb[0].mxu0
      %781 = vmatprep.mubr.f32.mxu0 0.0
      %782 = vmatmul.mubr.f32.gmra.mrb[0].mxu0 %v642
      %v783 = vpop.f32.mrb[0].mxu0
      %v784 = vadd.f32 %v632, %v783
      %v785 = vpop.f32.mrb[0].mxu0
      %786 = vmatprep.mubr.f32.mxu0 0.0
      %787 = vmatmul.mubr.f32.gmra.mrb[0].mxu0 %v645
      %v788 = vpop.f32.mrb[0].mxu0
      %v789 = vadd.f32 %v632, %v788
      %v790 = vpop.f32.mrb[0].mxu0
      %791 = vmatprep.mubr.f32.mxu0 0.0
      %792 = vmatmul.mubr.f32.gmra.mrb[0].mxu0 %v648
      %v793 = vpop.f32.mrb[0].mxu0
      %v794 = vadd.f32 %v632, %v793
      %v795 = vpop.f32.mrb[0].mxu0
      %796 = vmatprep.mubr.f32.mxu0 0.0
      %797 = vmatmul.mubr.f32.gmra.mrb[0].mxu0 %v651
      %v798 = vpop.f32.mrb[0].mxu0
      %v799 = vadd.f32 %v632, %v798
      %v800 = vpop.f32.mrb[0].mxu0
      %801 = vmatprep.mubr.f32.mxu0 0.0
      %802 = vmatmul.mubr.f32.gmra.mrb[0].mxu0 %v654
      %v803 = vpop.f32.mrb[0].mxu0
      %v804 = vadd.f32 %v632, %v803
      %v805 = vpop.f32.mrb[0].mxu0
      %806 = vmatprep.mubr.f32.mxu0 0.0
      %807 = vmatmul.mubr.f32.gmra.mrb[0].mxu0 %v657
      %v808 = vpop.f32.mrb[0].mxu0
      %v809 = vadd.f32 %v632, %v808
      %v810 = vpop.f32.mrb[0].mxu0
      %811 = vmatprep.mubr.f32.mxu0 0.0
      %812 = vmatmul.mubr.f32.gmra.mrb[0].mxu0 %v660
      %v813 = vpop.f32.mrb[0].mxu0
      %v814 = vadd.f32 %v632, %v813
      %v815 = vpop.f32.mrb[0].mxu0
      %816 = vmatprep.mubr.f32.mxu0 0.0
      %817 = vmatmul.mubr.f32.gmra.mrb[0].mxu0 %v663
      %v818 = vpop.f32.mrb[0].mxu0
      %v819 = vadd.f32 %v632, %v818
      %v820 = vpop.f32.mrb[0].mxu0
      %821 = vmatprep.mubr.f32.mxu0 0.0
      %822 = vmatmul.mubr.f32.gmra.mrb[0].mxu0 %v666
      %v823 = vpop.f32.mrb[0].mxu0
      %v824 = vadd.f32 %v632, %v823
      %v825 = vpop.f32.mrb[0].mxu0
      %826 = vmatprep.mubr.f32.mxu0 0.0
      %827 = vmatmul.mubr.f32.gmra.mrb[0].mxu0 %v669
      %v828 = vpop.f32.mrb[0].mxu0
      %v829 = vadd.f32 %v632, %v828
      %v830 = vpop.f32.mrb[0].mxu0
      %831 = vmatprep.mubr.f32.mxu0 0.0
      %832 = vmatmul.mubr.f32.gmra.mrb[0].mxu0 %v672
      %v833 = vpop.f32.mrb[0].mxu0
      %v834 = vadd.f32 %v632, %v833
      %v835 = vpop.f32.mrb[0].mxu0
      %836 = vmatprep.mubr.f32.mxu0 0.0
      %837 = vmatmul.mubr.f32.gmra.mrb[0].mxu0 %v675
      %v838 = vpop.f32.mrb[0].mxu0
      %v839 = vadd.f32 %v632, %v838
      %v840 = vpop.f32.mrb[0].mxu0
      %841 = vmatprep.mubr.f32.mxu0 0.0
      %842 = vmatmul.mubr.f32.gmra.mrb[0].mxu0 %v678
      %v843 = vpop.f32.mrb[0].mxu0
      %v844 = vadd.f32 %v632, %v843
      %v845 = vpop.f32.mrb[0].mxu0
      %846 = vmatprep.mubr.f32.mxu0 0.0
      %847 = vmatmul.mubr.f32.gmra.mrb[0].mxu0 %v681
      %v848 = vpop.f32.mrb[0].mxu0
      %v849 = vadd.f32 %v632, %v848
      %v850 = vpop.f32.mrb[0].mxu0
      %851 = vmatprep.mubr.f32.mxu0 0.0
      %852 = vmatmul.mubr.f32.gmra.mrb[0].mxu0 %v684
      %v853 = vpop.f32.mrb[0].mxu0
      %v854 = vadd.f32 %v632, %v853
      %v855 = vpop.f32.mrb[0].mxu0
      %856 = vmatprep.mubr.f32.mxu0 0.0
      %857 = vmatmul.mubr.f32.gmra.mrb[0].mxu0 %v687
      %v858 = vpop.f32.mrb[0].mxu0
      %v859 = vadd.f32 %v632, %v858
      %v860 = vpop.f32.mrb[0].mxu0
      %861 = vmatprep.mubr.f32.mxu0 0.0
      %862 = vmatmul.mubr.f32.gmra.mrb[0].mxu0 %v690
      %v863 = vpop.f32.mrb[0].mxu0
      %v864 = vadd.f32 %v632, %v863
      %v865 = vpop.f32.mrb[0].mxu0
      %866 = vmatprep.mubr.f32.mxu0 0.0
      %867 = vmatmul.mubr.f32.gmra.mrb[0].mxu0 %v693
      %v868 = vpop.f32.mrb[0].mxu0
      %v869 = vadd.f32 %v632, %v868
      %v870 = vpop.f32.mrb[0].mxu0
      %871 = vmatprep.mubr.f32.mxu0 0.0
      %872 = vmatmul.mubr.f32.gmra.mrb[0].mxu0 %v696
      %v873 = vpop.f32.mrb[0].mxu0
      %v874 = vadd.f32 %v632, %v873
      %v875 = vpop.f32.mrb[0].mxu0
      %876 = vmatprep.mubr.f32.mxu0 0.0
      %877 = vmatmul.mubr.f32.gmra.mrb[0].mxu0 %v699
      %v878 = vpop.f32.mrb[0].mxu0
      %v879 = vadd.f32 %v632, %v878
      %v880 = vpop.f32.mrb[0].mxu0
      %881 = vmatprep.mubr.f32.mxu0 0.0
      %882 = vmatmul.mubr.f32.gmra.mrb[0].mxu0 %v702
      %v883 = vpop.f32.mrb[0].mxu0
      %v884 = vadd.f32 %v632, %v883
      %v885 = vpop.f32.mrb[0].mxu0
      %886 = vmatprep.mubr.f32.mxu0 0.0
      %887 = vmatmul.mubr.f32.gmra.mrb[0].mxu0 %v705
      %v888 = vpop.f32.mrb[0].mxu0
      %v889 = vadd.f32 %v632, %v888
      %v890 = vpop.f32.mrb[0].mxu0
      %891 = vdwg.mxu0
      %v892 = vmax.f32 %v774, 0.0
      %v893 = vmax.f32 %v779, 0.0
      %v894 = vmax.f32 %v784, 0.0
      %v895 = vmax.f32 %v789, 0.0
      %v896 = vmax.f32 %v794, 0.0
      %v897 = vmax.f32 %v799, 0.0
      %v898 = vmax.f32 %v804, 0.0
      %v899 = vmax.f32 %v809, 0.0
      %v900 = vmax.f32 %v814, 0.0
      %v901 = vmax.f32 %v819, 0.0
      %v902 = vmax.f32 %v824, 0.0
      %v903 = vmax.f32 %v829, 0.0
      %v904 = vmax.f32 %v834, 0.0
      %v905 = vmax.f32 %v839, 0.0
      %v906 = vmax.f32 %v844, 0.0
      %v907 = vmax.f32 %v849, 0.0
      %v908 = vmax.f32 %v854, 0.0
      %v909 = vmax.f32 %v859, 0.0
      %v910 = vmax.f32 %v864, 0.0
      %v911 = vmax.f32 %v869, 0.0
      %v912 = vmax.f32 %v874, 0.0
      %v913 = vmax.f32 %v879, 0.0
      %v914 = vmax.f32 %v884, 0.0
      %v915 = vmax.f32 %v889, 0.0
      %v916 = vsel %vm634, %v892, -inf
      %v917 = vrot.slane %v916, 4
      %v918 = vmax.f32 %v916, %v917
      %v919 = vrot.slane %v918, 2
      %v920 = vmax.f32 %v918, %v919
      %v921 = vrot.slane %v920, 1
      %v922 = vmax.f32 %v920, %v921
      %v923 = vsel %vm634, %v893, -inf
      %v924 = vrot.slane %v923, 4
      %v925 = vmax.f32 %v923, %v924
      %v926 = vrot.slane %v925, 2
      %v927 = vmax.f32 %v925, %v926
      %v928 = vrot.slane %v927, 1
      %v929 = vmax.f32 %v927, %v928
      %v930 = vsel %vm634, %v894, -inf
      %v931 = vrot.slane %v930, 4
      %v932 = vmax.f32 %v930, %v931
      %v933 = vrot.slane %v932, 2
      %v934 = vmax.f32 %v932, %v933
      %v935 = vrot.slane %v934, 1
      %v936 = vmax.f32 %v934, %v935
      %v937 = vsel %vm634, %v895, -inf
      %v938 = vrot.slane %v937, 4
      %v939 = vmax.f32 %v937, %v938
      %v940 = vrot.slane %v939, 2
      %v941 = vmax.f32 %v939, %v940
      %v942 = vrot.slane %v941, 1
      %v943 = vmax.f32 %v941, %v942
      %v944 = vsel %vm634, %v896, -inf
      %v945 = vrot.slane %v944, 4
      %v946 = vmax.f32 %v944, %v945
      %v947 = vrot.slane %v946, 2
      %v948 = vmax.f32 %v946, %v947
      %v949 = vrot.slane %v948, 1
      %v950 = vmax.f32 %v948, %v949
      %v951 = vsel %vm634, %v897, -inf
      %v952 = vrot.slane %v951, 4
      %v953 = vmax.f32 %v951, %v952
      %v954 = vrot.slane %v953, 2
      %v955 = vmax.f32 %v953, %v954
      %v956 = vrot.slane %v955, 1
      %v957 = vmax.f32 %v955, %v956
      %v958 = vsel %vm634, %v898, -inf
      %v959 = vrot.slane %v958, 4
      %v960 = vmax.f32 %v958, %v959
      %v961 = vrot.slane %v960, 2
      %v962 = vmax.f32 %v960, %v961
      %v963 = vrot.slane %v962, 1
      %v964 = vmax.f32 %v962, %v963
      %v965 = vsel %vm634, %v899, -inf
      %v966 = vrot.slane %v965, 4
      %v967 = vmax.f32 %v965, %v966
      %v968 = vrot.slane %v967, 2
      %v969 = vmax.f32 %v967, %v968
      %v970 = vrot.slane %v969, 1
      %v971 = vmax.f32 %v969, %v970
      %v972 = vsel %vm634, %v900, -inf
      %v973 = vrot.slane %v972, 4
      %v974 = vmax.f32 %v972, %v973
      %v975 = vrot.slane %v974, 2
      %v976 = vmax.f32 %v974, %v975
      %v977 = vrot.slane %v976, 1
      %v978 = vmax.f32 %v976, %v977
      %v979 = vsel %vm634, %v901, -inf
      %v980 = vrot.slane %v979, 4
      %v981 = vmax.f32 %v979, %v980
      %v982 = vrot.slane %v981, 2
      %v983 = vmax.f32 %v981, %v982
      %v984 = vrot.slane %v983, 1
      %v985 = vmax.f32 %v983, %v984
      %v986 = vsel %vm634, %v902, -inf
      %v987 = vrot.slane %v986, 4
      %v988 = vmax.f32 %v986, %v987
      %v989 = vrot.slane %v988, 2
      %v990 = vmax.f32 %v988, %v989
      %v991 = vrot.slane %v990, 1
      %v992 = vmax.f32 %v990, %v991
      %v993 = vsel %vm634, %v903, -inf
      %v994 = vrot.slane %v993, 4
      %v995 = vmax.f32 %v993, %v994
      %v996 = vrot.slane %v995, 2
      %v997 = vmax.f32 %v995, %v996
      %v998 = vrot.slane %v997, 1
      %v999 = vmax.f32 %v997, %v998
      %v1000 = vsel %vm634, %v904, -inf
      %v1001 = vrot.slane %v1000, 4
      %v1002 = vmax.f32 %v1000, %v1001
      %v1003 = vrot.slane %v1002, 2
      %v1004 = vmax.f32 %v1002, %v1003
      %v1005 = vrot.slane %v1004, 1
      %v1006 = vmax.f32 %v1004, %v1005
      %v1007 = vsel %vm634, %v905, -inf
      %v1008 = vrot.slane %v1007, 4
      %v1009 = vmax.f32 %v1007, %v1008
      %v1010 = vrot.slane %v1009, 2
      %v1011 = vmax.f32 %v1009, %v1010
      %v1012 = vrot.slane %v1011, 1
      %v1013 = vmax.f32 %v1011, %v1012
      %v1014 = vsel %vm634, %v906, -inf
      %v1015 = vrot.slane %v1014, 4
      %v1016 = vmax.f32 %v1014, %v1015
      %v1017 = vrot.slane %v1016, 2
      %v1018 = vmax.f32 %v1016, %v1017
      %v1019 = vrot.slane %v1018, 1
      %v1020 = vmax.f32 %v1018, %v1019
      %v1021 = vsel %vm634, %v907, -inf
      %v1022 = vrot.slane %v1021, 4
      %v1023 = vmax.f32 %v1021, %v1022
      %v1024 = vrot.slane %v1023, 2
      %v1025 = vmax.f32 %v1023, %v1024
      %v1026 = vrot.slane %v1025, 1
      %v1027 = vmax.f32 %v1025, %v1026
      %v1028 = vsel %vm634, %v908, -inf
      %v1029 = vrot.slane %v1028, 4
      %v1030 = vmax.f32 %v1028, %v1029
      %v1031 = vrot.slane %v1030, 2
      %v1032 = vmax.f32 %v1030, %v1031
      %v1033 = vrot.slane %v1032, 1
      %v1034 = vmax.f32 %v1032, %v1033
      %v1035 = vsel %vm634, %v909, -inf
      %v1036 = vrot.slane %v1035, 4
      %v1037 = vmax.f32 %v1035, %v1036
      %v1038 = vrot.slane %v1037, 2
      %v1039 = vmax.f32 %v1037, %v1038
      %v1040 = vrot.slane %v1039, 1
      %v1041 = vmax.f32 %v1039, %v1040
      %v1042 = vsel %vm634, %v910, -inf
      %v1043 = vrot.slane %v1042, 4
      %v1044 = vmax.f32 %v1042, %v1043
      %v1045 = vrot.slane %v1044, 2
      %v1046 = vmax.f32 %v1044, %v1045
      %v1047 = vrot.slane %v1046, 1
      %v1048 = vmax.f32 %v1046, %v1047
      %v1049 = vsel %vm634, %v911, -inf
      %v1050 = vrot.slane %v1049, 4
      %v1051 = vmax.f32 %v1049, %v1050
      %v1052 = vrot.slane %v1051, 2
      %v1053 = vmax.f32 %v1051, %v1052
      %v1054 = vrot.slane %v1053, 1
      %v1055 = vmax.f32 %v1053, %v1054
      %v1056 = vsel %vm634, %v912, -inf
      %v1057 = vrot.slane %v1056, 4
      %v1058 = vmax.f32 %v1056, %v1057
      %v1059 = vrot.slane %v1058, 2
      %v1060 = vmax.f32 %v1058, %v1059
      %v1061 = vrot.slane %v1060, 1
      %v1062 = vmax.f32 %v1060, %v1061
      %v1063 = vsel %vm634, %v913, -inf
      %v1064 = vrot.slane %v1063, 4
      %v1065 = vmax.f32 %v1063, %v1064
      %v1066 = vrot.slane %v1065, 2
      %v1067 = vmax.f32 %v1065, %v1066
      %v1068 = vrot.slane %v1067, 1
      %v1069 = vmax.f32 %v1067, %v1068
      %v1070 = vsel %vm634, %v914, -inf
      %v1071 = vrot.slane %v1070, 4
      %v1072 = vmax.f32 %v1070, %v1071
      %v1073 = vrot.slane %v1072, 2
      %v1074 = vmax.f32 %v1072, %v1073
      %v1075 = vrot.slane %v1074, 1
      %v1076 = vmax.f32 %v1074, %v1075
      %v1077 = vsel %vm634, %v915, -inf
      %v1078 = vrot.slane %v1077, 4
      %v1079 = vmax.f32 %v1077, %v1078
      %v1080 = vrot.slane %v1079, 2
      %v1081 = vmax.f32 %v1079, %v1080
      %v1082 = vrot.slane %v1081, 1
      %v1083 = vmax.f32 %v1081, %v1082
      %v1084 = vld [vmem:[%s5] sm:$0xff]
      %vm1109 = vcmask 1041409
      %v1110 = vsel %vm1109, %v929, %v922
      %vm1111 = vcmask 1042434
      %v1112 = vsel %vm1111, %v936, %v1110
      %vm1113 = vcmask 1043459
      %v1114 = vsel %vm1113, %v943, %v1112
      %vm1115 = vcmask 1044484
      %v1116 = vsel %vm1115, %v950, %v1114
      %vm1117 = vcmask 1045509
      %v1118 = vsel %vm1117, %v957, %v1116
      %vm1119 = vcmask 1046534
      %v1120 = vsel %vm1119, %v964, %v1118
      %vm1121 = vcmask 1047559
      %v1122 = vsel %vm1121, %v971, %v1120
      %v1123 = vsel %vm1109, %v985, %v978
      %v1124 = vsel %vm1111, %v992, %v1123
      %v1125 = vsel %vm1113, %v999, %v1124
      %v1126 = vsel %vm1115, %v1006, %v1125
      %v1127 = vsel %vm1117, %v1013, %v1126
      %v1128 = vsel %vm1119, %v1020, %v1127
      %v1129 = vsel %vm1121, %v1027, %v1128
      %v1130 = vsel %vm1109, %v1041, %v1034
      %v1131 = vsel %vm1111, %v1048, %v1130
      %v1132 = vsel %vm1113, %v1055, %v1131
      %v1133 = vsel %vm1115, %v1062, %v1132
      %v1134 = vsel %vm1117, %v1069, %v1133
      %v1135 = vsel %vm1119, %v1076, %v1134
      %v1136 = vsel %vm1121, %v1083, %v1135
      %v1137 = vsel %vm634, %v1122, 0
      %v1139 = vsel %vm634, %v1129, 0
      %v1141 = vsel %vm634, %v1136, 0
      %1143 = vmatprep.subr.mxu0 0.0
      %1144 = vmatpush1.msra.mxu0 %v1084
      %1145 = vmatprep.subr.mxu0 0.0
      %1146 = vmatpush1.msra.mxu0 0.0
      %1147 = vmatprep.subr.mxu0 0.0
      %1148 = vmatpush1.msra.mxu0 0.0
      %1149 = vmatprep.subr.mxu0 0.0
      %1150 = vmatpush1.msra.mxu0 0.0
      %1151 = vmatprep.subr.mxu0 0.0
      %1152 = vmatpush1.msra.mxu0 0.0
      %1153 = vmatprep.subr.mxu0 0.0
      %1154 = vmatpush1.msra.mxu0 0.0
      %1155 = vmatprep.subr.mxu0 0.0
      %1156 = vmatpush1.msra.mxu0 0.0
      %1157 = vmatprep.subr.mxu0 0.0
      %1158 = vmatpush1.msra.mxu0 0.0
      %1159 = vmatprep.subr.mxu0 0.0
      %1160 = vmatpush1.msra.mxu0 0.0
      %1161 = vmatprep.subr.mxu0 0.0
      %1162 = vmatpush1.msra.mxu0 0.0
      %1163 = vmatprep.subr.mxu0 0.0
      %1164 = vmatpush1.msra.mxu0 0.0
      %1165 = vmatprep.subr.mxu0 0.0
      %1166 = vmatpush1.msra.mxu0 0.0
      %1167 = vmatprep.subr.mxu0 0.0
      %1168 = vmatpush1.msra.mxu0 0.0
      %1169 = vmatprep.subr.mxu0 0.0
      %1170 = vmatpush1.msra.mxu0 0.0
      %1171 = vmatprep.subr.mxu0 0.0
      %1172 = vmatpush1.msra.mxu0 0.0
      %1173 = vmatprep.subr.mxu0 0.0
      %1174 = vmatpush1.msra.mxu0 0.0
      %1175 = vmatprep.subr.mxu0 0.0
      %1176 = vmatpush1.msra.mxu0 0.0
      %1177 = vmatprep.subr.mxu0 0.0
      %1178 = vmatpush1.msra.mxu0 0.0
      %1179 = vmatprep.subr.mxu0 0.0
      %1180 = vmatpush1.msra.mxu0 0.0
      %1181 = vmatprep.subr.mxu0 0.0
      %1182 = vmatpush1.msra.mxu0 0.0
      %1183 = vmatprep.subr.mxu0 0.0
      %1184 = vmatpush1.msra.mxu0 0.0
      %1185 = vmatprep.subr.mxu0 0.0
      %1186 = vmatpush1.msra.mxu0 0.0
      %1187 = vmatprep.subr.mxu0 0.0
      %1188 = vmatpush1.msra.mxu0 0.0
      %1189 = vmatprep.subr.mxu0 0.0
      %1190 = vmatpush1.msra.mxu0 0.0
      %1191 = vmatprep.subr.mxu0 0.0
      %1192 = vmatpush1.msra.mxu0 0.0
      %1193 = vmatprep.subr.mxu0 0.0
      %1194 = vmatpush1.msra.mxu0 0.0
      %1195 = vmatprep.subr.mxu0 0.0
      %1196 = vmatpush1.msra.mxu0 0.0
      %1197 = vmatprep.subr.mxu0 0.0
      %1198 = vmatpush1.msra.mxu0 0.0
      %1199 = vmatprep.subr.mxu0 0.0
      %1200 = vmatpush1.msra.mxu0 0.0
      %1201 = vmatprep.subr.mxu0 0.0
      %1202 = vmatpush1.msra.mxu0 0.0
      %1203 = vmatprep.subr.mxu0 0.0
      %1204 = vmatpush1.msra.mxu0 0.0
      %1205 = vmatprep.subr.mxu0 0.0
      %1206 = vmatpush1.msra.mxu0 0.0
      %1207 = vmatprep.mubr.f32.mxu0 0.0
      %1208 = vmatmul.mubr.f32.gmra.mrb[0].mxu0 %v1137
      %v1209 = vpop.f32.mrb[0].mxu0
      %v1210 = vadd.f32 0.0, %v1209
      %v1211 = vpop.f32.mrb[0].mxu0
      %1212 = vmatprep.mubr.f32.mxu0 0.0
      %1213 = vmatmul.mubr.f32.gmra.mrb[0].mxu0 %v1139
      %v1214 = vpop.f32.mrb[0].mxu0
      %v1215 = vadd.f32 0.0, %v1214
      %v1216 = vpop.f32.mrb[0].mxu0
      %1217 = vmatprep.mubr.f32.mxu0 0.0
      %1218 = vmatmul.mubr.f32.gmra.mrb[0].mxu0 %v1141
      %v1219 = vpop.f32.mrb[0].mxu0
      %v1220 = vadd.f32 0.0, %v1219
      %v1221 = vpop.f32.mrb[0].mxu0
      %1222 = vdwg.mxu0
      %v1223 = vld [vmem:[%s6] sm:$0xff]
      %v1224 = vadd.f32 %v1210, %v1223
      %v1225 = vadd.f32 %v1215, %v1223
      %v1226 = vadd.f32 %v1220, %v1223
      %vm1227 = vcmask 523264
      %v1228 = vsel %vm1227, %v1224, -inf
      %v1229 = vrot.slane %v1228, 4
      %v1230 = vmax.f32 %v1228, %v1229
      %v1231 = vrot.slane %v1230, 2
      %v1232 = vmax.f32 %v1230, %v1231
      %v1233 = vrot.slane %v1232, 1
      %v1234 = vmax.f32 %v1232, %v1233
      %v1235 = vsel %vm1227, %v1225, -inf
      %v1236 = vrot.slane %v1235, 4
      %v1237 = vmax.f32 %v1235, %v1236
      %v1238 = vrot.slane %v1237, 2
      %v1239 = vmax.f32 %v1237, %v1238
      %v1240 = vrot.slane %v1239, 1
      %v1241 = vmax.f32 %v1239, %v1240
      %v1242 = vsel %vm1227, %v1226, -inf
      %v1243 = vrot.slane %v1242, 4
      %v1244 = vmax.f32 %v1242, %v1243
      %v1245 = vrot.slane %v1244, 2
      %v1246 = vmax.f32 %v1244, %v1245
      %v1247 = vrot.slane %v1246, 1
      %v1248 = vmax.f32 %v1246, %v1247
      %v1249 = vld [vmem:[%s7] sm:$0x1]
      %v1251 = vlaneseq
      %v1252 = vshrl.u32 %v1251, 7
      %v1253 = vsub.s32 0, %v1252
      %v1254 = vrot.slane %v1249, %v1253
      %v1256 = vmax.f32 %v1234, %v1254
      %v1257 = vmax.f32 %v1241, %v1254
      %v1258 = vmax.f32 %v1248, %v1254
      %vm1259 = vcmask 516096
      %1260 = vst.msk [vmem:[%s308] sm:$0x1] %vm1259, %v1256
      %1261 = vst.msk [vmem:[%s308 + $0x1] sm:$0x1] %vm1259, %v1257
      %1262 = vst.msk [vmem:[%s308 + $0x2] sm:$0x1] %vm1259, %v1258
      %s1263 = smul.u32 3, %s19
      %p1264 = scmp.lt.s32.totalorder %s1263, 5
      %s1265 = scalar_select %p1264, %s1263, 5
      %s1266 = scalar_lea.vmem %s8, %s1265
      // Predicated region
      $region53: #{_lambda_.12} parent=51 // pred_check
        %p1267 = pneg %p210
      $region54: #{_lambda_.12} parent=51 // pred_check_branch
        %1269 = sbr.rel (%p1267) target = $region56
      $region55: #{_lambda_.12} parent=51 // pred_region
        %s1270 = smul.u32 3, %s19
      $region56: #{_lambda_.12} parent=51 // pred_fallthru
        _
    $region52: #{_lambda_.12} parent=5 // pred_fallthru
      _
    %p1271 = scmp.le.s32.totalorder 2, %s14
    // Predicated region
    $region57: #{_lambda_.12} parent=5 // pred_check
      %p1272 = pneg %p1271
    $region58: #{_lambda_.12} parent=5 // pred_check_branch
      %1274 = sbr.rel (%p1272) target = $region60
    $region59: #{_lambda_.12} parent=5 // pred_region
      %s1275 = ssub.s32 %s14, 2
      // Predicated region
      $region61: #{_lambda_.12} parent=59 // pred_check
        %p1276 = pneg %p216
      $region62: #{_lambda_.12} parent=59 // pred_check_branch
        %1278 = sbr.rel (%p1276) target = $region64
      $region63: #{_lambda_.12} parent=59 // pred_region
        %s1279 = smul.u32 3, %s20
        %p1280 = scmp.lt.s32.totalorder %s1279, 5
        %s1281 = scalar_select %p1280, %s1279, 5
        %s1282 = scalar_lea.vmem %s8, %s1281
      $region64: #{_lambda_.12} parent=59 // pred_fallthru
        _
    $region60: #{_lambda_.12} parent=5 // pred_fallthru
      _
  $region6: #{_lambda_.12} parent=0 // loop_footer
    %s18 = sadd.s32 1, %s14
  $region7: #{_lambda_.12} parent=0 // loop_footer_branch
    %13 = sbr.rel target = $region3
  $region8: #{_lambda_.12} parent=0 // loop_exit
    _

// kernel: _lambda_.13
$region0: #{_lambda_.13}
  #allocation0 [shape = 'u32[]', space=smem, size = 0x4, offset = 0x4, fixed_abs, tag = 'smem constant byte address 0x4 - core index']
  #allocation1 [shape = 'u32[144,128]{1,0:T(1,128)}', space=vmem, size = 0x12000, scoped, tag = 'internal scratch']
  %s0 = inlined_call_operand.vmem [shape: f32[16,27], index: 0, kind: input, shape index: {}]
  %s1 = inlined_call_operand.vmem [shape: f32[27,16], index: 1, kind: input, shape index: {}]
  %s2 = inlined_call_operand.hbm [shape: f32[16,16], index: 2, kind: output, shape index: {}]
  %s3 = sld [smem:[#allocation0]]
  $region18: #{_lambda_.13} parent=0
    _
  %s5 = ssub.s32 1, %s3
  %s6 = scalar_select 0, %s5, %s3
  $region1: #{_lambda_.13} parent=0
    #allocation2 [shape = 'u8[8192]{0}', space=vmem, size = 0x2000, scoped, tag = 'output window, operand 0, single buffered']
    #allocation3 [shape = 's32[1]{0}', space=sflag, size = 0x4, scoped, tag = 'scoped memory for _lambda_.13']
    %7 = vsyncpa [#allocation3], 0
    // Predicated region
    $region2: #{_lambda_.13} parent=1 // pred_check
      _
    $region3: #{_lambda_.13} parent=1 // pred_check_branch
      %9 = sbr.rel (0) target = $region5
    $region4: #{_lambda_.13} parent=1 // pred_region
      _
    $region5: #{_lambda_.13} parent=1 // pred_fallthru
      _
    // Predicated region
    $region6: #{_lambda_.13} parent=1 // pred_check
      _
    $region7: #{_lambda_.13} parent=1 // pred_check_branch
      %11 = sbr.rel (0) target = $region9
    $region8: #{_lambda_.13} parent=1 // pred_region
      _
    $region9: #{_lambda_.13} parent=1 // pred_fallthru
      _
    %v12 = vld [vmem:[%s0] sm:$0xff]
    %v13 = vld [vmem:[%s0 + $0x8] sm:$0xff]
    %v14 = vld [vmem:[%s1] sm:$0xff]
    %v15 = vld [vmem:[%s1 + $0x8] sm:$0xff]
    %v16 = vld [vmem:[%s1 + $0x10] sm:$0xff]
    %v17 = vld [vmem:[%s1 + $0x18] sm:$0x7]
    %vm18 = vcmask 220160
    %v20 = vsel %vm18, %v12, 0
    %v23 = vsel %vm18, %v13, 0
    %vm25 = vcmask 1042432
    %v27 = vsel %vm25, %v17, 0
    %29 = vmatprep.subr.mxu0 0.0
    %30 = vmatpush1.msra.mxu0 %v14
    %31 = vmatprep.subr.mxu0 0.0
    %32 = vmatpush1.msra.mxu0 %v15
    %33 = vmatprep.subr.mxu0 0.0
    %34 = vmatpush1.msra.mxu0 %v16
    %35 = vmatprep.subr.mxu0 0.0
    %36 = vmatpush1.msra.mxu0 %v27
    %37 = vmatprep.subr.mxu0 0.0
    %38 = vmatpush1.msra.mxu0 0.0
    %39 = vmatprep.subr.mxu0 0.0
    %40 = vmatpush1.msra.mxu0 0.0
    %41 = vmatprep.subr.mxu0 0.0
    %42 = vmatpush1.msra.mxu0 0.0
    %43 = vmatprep.subr.mxu0 0.0
    %44 = vmatpush1.msra.mxu0 0.0
    %45 = vmatprep.subr.mxu0 0.0
    %46 = vmatpush1.msra.mxu0 0.0
    %47 = vmatprep.subr.mxu0 0.0
    %48 = vmatpush1.msra.mxu0 0.0
    %49 = vmatprep.subr.mxu0 0.0
    %50 = vmatpush1.msra.mxu0 0.0
    %51 = vmatprep.subr.mxu0 0.0
    %52 = vmatpush1.msra.mxu0 0.0
    %53 = vmatprep.subr.mxu0 0.0
    %54 = vmatpush1.msra.mxu0 0.0
    %55 = vmatprep.subr.mxu0 0.0
    %56 = vmatpush1.msra.mxu0 0.0
    %57 = vmatprep.subr.mxu0 0.0
    %58 = vmatpush1.msra.mxu0 0.0
    %59 = vmatprep.subr.mxu0 0.0
    %60 = vmatpush1.msra.mxu0 0.0
    %61 = vmatprep.subr.mxu0 0.0
    %62 = vmatpush1.msra.mxu0 0.0
    %63 = vmatprep.subr.mxu0 0.0
    %64 = vmatpush1.msra.mxu0 0.0
    %65 = vmatprep.subr.mxu0 0.0
    %66 = vmatpush1.msra.mxu0 0.0
    %67 = vmatprep.subr.mxu0 0.0
    %68 = vmatpush1.msra.mxu0 0.0
    %69 = vmatprep.subr.mxu0 0.0
    %70 = vmatpush1.msra.mxu0 0.0
    %71 = vmatprep.subr.mxu0 0.0
    %72 = vmatpush1.msra.mxu0 0.0
    %73 = vmatprep.subr.mxu0 0.0
    %74 = vmatpush1.msra.mxu0 0.0
    %75 = vmatprep.subr.mxu0 0.0
    %76 = vmatpush1.msra.mxu0 0.0
    %77 = vmatprep.subr.mxu0 0.0
    %78 = vmatpush1.msra.mxu0 0.0
    %79 = vmatprep.subr.mxu0 0.0
    %80 = vmatpush1.msra.mxu0 0.0
    %81 = vmatprep.subr.mxu0 0.0
    %82 = vmatpush1.msra.mxu0 0.0
    %83 = vmatprep.subr.mxu0 0.0
    %84 = vmatpush1.msra.mxu0 0.0
    %85 = vmatprep.subr.mxu0 0.0
    %86 = vmatpush1.msra.mxu0 0.0
    %87 = vmatprep.subr.mxu0 0.0
    %88 = vmatpush1.msra.mxu0 0.0
    %89 = vmatprep.subr.mxu0 0.0
    %90 = vmatpush1.msra.mxu0 0.0
    %91 = vmatprep.subr.mxu0 0.0
    %92 = vmatpush1.msra.mxu0 0.0
    %93 = vmatprep.mubr.f32.mxu0 0.0
    %94 = vmatmul.mubr.f32.gmra.mrb[0].mxu0 %v20
    %v95 = vpop.f32.mrb[0].mxu0
    %v96 = vadd.f32 0.0, %v95
    %v97 = vpop.f32.mrb[0].mxu0
    %98 = vmatprep.mubr.f32.mxu0 0.0
    %99 = vmatmul.mubr.f32.gmra.mrb[0].mxu0 %v23
    %v100 = vpop.f32.mrb[0].mxu0
    %v101 = vadd.f32 0.0, %v100
    %v102 = vpop.f32.mrb[0].mxu0
    %103 = vdwg.mxu0
    %vm104 = vcmask 130048
    %105 = vst.msk [vmem:[#allocation2] sm:$0xff] %vm104, %v96
    %106 = vst.msk [vmem:[#allocation2 + $0x8] sm:$0xff] %vm104, %v101
    // Predicated region
    $region10: #{_lambda_.13} parent=1 // pred_check
      _
    $region11: #{_lambda_.13} parent=1 // pred_check_branch
      %108 = sbr.rel (0) target = $region13
    $region12: #{_lambda_.13} parent=1 // pred_region
      %s110 = ssub.s32 256, 256
      %111 = vsyncadd [#allocation3], %s110
      %s112 = sshll.u32 [#allocation2], 4
      %s113 = int_to_ptr.vmem [resolvable:$true] %s112
      %118 = dma.vmem_to_hbm [thread:$0]  %s113, 256, %s2, [#allocation3], 128, 128, 8
    $region13: #{_lambda_.13} parent=1 // pred_fallthru
      _
    // Predicated region
    $region14: #{_lambda_.13} parent=1 // pred_check
      _
    $region15: #{_lambda_.13} parent=1 // pred_check_branch
      %120 = sbr.rel (0) target = $region17
    $region16: #{_lambda_.13} parent=1 // pred_region
      %121 = dma.done [#allocation3], 256
    $region17: #{_lambda_.13} parent=1 // pred_fallthru
      _
    %122 = vsyncpa [#allocation3], 1

</llo_original>
